<compile_context>
chip_gen: v7x
topology: tpu7x:2x2x1
jax: 0.10.0
libtpu: 0.0.40
codegen_flags: <defaults>
</compile_context>

<pallas_src>
import functools

import jax
import jax.numpy as jnp
import numpy as np
from jax import lax
from jax.experimental import pallas as pl
from jax.experimental.pallas import tpu as pltpu

LN_EPS = 1e-5


def _saa_kernel(head_num, matmul_dtype,
                nodes_ref, k_ref, v_ref, bias_ref, paths_ref,
                wq_ref, bq_ref, wskT_ref, bsk_ref, wsv_ref, bsv_ref,
                wo_ref, bo_ref, ln_g_ref, ln_b_ref,
                out_ref, w_ref):
    f32 = jnp.float32
    cd = matmul_dtype

    nodes_q = nodes_ref[0]            # (TQ, H) f32 query-tile rows (also residual input)
    k = k_ref[0]                      # (N, H)  precomputed keys   (matmul dtype)
    v = v_ref[0]                      # (N, H)  precomputed values (matmul dtype)
    bias = bias_ref[0, 0]             # (N,)    additive key bias  (f32)
    paths = paths_ref[0]              # (TQ, N, P) path features   (matmul dtype)

    TQ, H = nodes_q.shape
    N = k.shape[0]
    D = H // head_num
    scale = D ** (-0.5)

    # ---- Q projection for this tile (single MXU GEMM; softmax scale folded in) ----
    q = (jnp.dot(nodes_q.astype(cd), wq_ref[...], preferred_element_type=f32)
         + bq_ref[...]) * scale                                              # (TQ, H) f32

    # Head views are plain reshapes (no scratch round trips, no per-head loops).
    q_r32 = q.reshape(TQ, head_num, D)
    q_r = q_r32.astype(cd)            # 'ihd'
    k_r = k.reshape(N, head_num, D)   # 'jhd'
    v_r = v.reshape(N, head_num, D)   # 'jhd'

    # ---- path LayerNorm (affine folded into wskT/bsk/wsv/bsv by the wrapper); f32 stats ----
    pf = paths.astype(f32)
    mu = jnp.mean(pf, axis=-1, keepdims=True)
    var = jnp.mean(jnp.square(pf - mu), axis=-1, keepdims=True)
    paths_n = ((pf - mu) * lax.rsqrt(var + LN_EPS)).astype(cd)               # (TQ, N, P)

    # ---- logits ----
    logits = jnp.einsum('ihd,jhd->hij', q_r, k_r,
                        preferred_element_type=f32)                          # (heads, TQ, N)
    # struct_k eliminated algebraically: q.(paths_n@wsk + bsk) == (q@wsk^T).paths_n + q.bsk
    qp = jnp.einsum('ihd,dp->ihp', q_r, wskT_ref[...],
                    preferred_element_type=f32).astype(cd)                   # (TQ, heads, P)
    # NOTE: per-query-row batched matmul (M = heads).  TODO(synk): if bundle audit shows it
    # dominates, move this P-contraction to VPU multiply + XLU reduce.
    logits = logits + jnp.einsum('ihp,ijp->hij', qp, paths_n,
                                 preferred_element_type=f32)
    qb = jnp.sum(q_r32 * bsk_ref[0], axis=-1)                                # (TQ, heads)
    logits = logits + qb.T[:, :, None] + bias[None, None, :]

    # ---- softmax over keys (exact: these probabilities are returned to the caller) ----
    m = jnp.max(logits, axis=-1, keepdims=True)
    e = jnp.exp(logits - m)
    denom = jnp.sum(e, axis=-1, keepdims=True)
    probs = e / denom                                                        # (heads, TQ, N) f32

    # Lane-dense store of all heads at once (bf16 optional via weights_dtype).
    w_ref[0] = probs.astype(w_ref.dtype)

    # ---- attention outputs, kept in (TQ, heads, D) so combine_heads is a plain reshape ----
    probs_c = probs.astype(cd)
    out_heads = jnp.einsum('hij,jhd->ihd', probs_c, v_r,
                           preferred_element_type=f32)                       # (TQ, heads, D)
    # struct_v eliminated algebraically:
    #   probs.(paths_n@wsv + bsv) == (probs.paths_n)@wsv + bsv * rowsum(probs)
    pw = jnp.einsum('hij,ijp->ihp', probs_c, paths_n,
                    preferred_element_type=f32).astype(cd)                   # (TQ, heads, P)
    rowsum = jnp.sum(probs, axis=-1)                                         # (heads, TQ)
    out_heads = out_heads + (
        jnp.einsum('ihp,pd->ihd', pw, wsv_ref[...], preferred_element_type=f32)
        + rowsum.T[:, :, None] * bsv_ref[0])

    attn_out = out_heads.reshape(TQ, H)                                      # combine heads

    # ---- output projection, ReLU, residual + LayerNorm (dropout = identity / eval) ----
    out = jnp.dot(attn_out.astype(cd), wo_ref[...], preferred_element_type=f32) + bo_ref[...]
    out = jnp.maximum(out, 0.0)

    res = nodes_q + out
    mu2 = jnp.mean(res, axis=-1, keepdims=True)
    var2 = jnp.mean(jnp.square(res - mu2), axis=-1, keepdims=True)
    y = (res - mu2) * lax.rsqrt(var2 + LN_EPS)
    out_ref[0] = (y * ln_g_ref[...] + ln_b_ref[...]).astype(out_ref.dtype)


def _vmem_capacity_bytes():
    try:
        cap = getattr(pltpu.get_tpu_info(), "vmem_capacity_bytes", None)
        if cap:
            return int(cap)
    except Exception:
        pass
    return 64 * 1024 * 1024     # conservative fallback (v7x per-TensorCore VMEM)


def _step_vmem_bytes(tq, n, h, p, heads, in_bytes, w_bytes):
    """Live VMEM per grid step: double-buffered blocks + in-kernel intermediates."""
    v = 2 * (4 * tq * h + 2 * in_bytes * n * h + 4 * n + in_bytes * tq * n * p)  # input blocks x2
    v += 2 * (4 * tq * h + w_bytes * heads * tq * n)                             # output blocks x2
    v += 4 * tq * n * p                                       # paths_n (f32 statistics)
    if in_bytes != 4:
        v += in_bytes * tq * n * p                            # low-precision matmul copy
    v += 4 * 3 * heads * tq * n                               # logits / exp / probs
    if w_bytes != 4:
        v += w_bytes * heads * tq * n                         # cast probs for the w store
    v += 4 * (2 * n * h + 3 * tq * h)                         # q/k/v head views, attn_out, out
    return v


def _pick_tq(n, h, p, heads, in_bytes, w_bytes, budget_bytes):
    """Largest query tile (divisor of n, multiple of 8 or full n) fitting the VMEM budget."""
    cands = [n] + [t for t in (1024, 512, 256, 128, 64, 32, 16, 8) if t < n and n % t == 0]
    for tq in cands:
        if _step_vmem_bytes(tq, n, h, p, heads, in_bytes, w_bytes) <= budget_bytes:
            return tq
    return cands[-1]


def structure_aware_attention(nodes, bias, paths, params, head_num, *,
                              matmul_dtype=jnp.float32, weights_dtype=jnp.float32):
    """nodes (B,N,H), bias (B,1,1,N), paths (B,N,N,P) ->
       (normed nodes (B,N,H) f32, attention weights (B,heads,N,N) weights_dtype)."""
    B, N, H = nodes.shape
    P = paths.shape[-1]
    assert H % head_num == 0
    cd = np.dtype(matmul_dtype)
    wd = np.dtype(weights_dtype)

    bias3 = bias.reshape(B, 1, N).astype(jnp.float32)

    # ---- K / V hoisted out of the per-q-tile grid (one fused GEMM per batch) ----
    wkv = jnp.concatenate([params["wk"], params["wv"]], axis=1)              # (H, 2H)
    bkv = jnp.concatenate([params["bk"], params["bv"]], axis=0)              # (2H,)
    kv = jnp.dot(nodes, wkv, preferred_element_type=jnp.float32) + bkv
    k = kv[..., :H].astype(cd)
    v = kv[..., H:].astype(cd)

    # ---- fold path-LayerNorm affine into the struct projections ----
    #   (x_hat * g + b) @ W + c  ==  x_hat @ (diag(g) W) + (b @ W + c)
    wsk = params["pn_g"][:, None] * params["wsk"]                            # (P, D)
    bsk = params["pn_b"] @ params["wsk"] + params["bsk"]                     # (D,)
    wsv = params["pn_g"][:, None] * params["wsv"]                            # (P, D)
    bsv = params["pn_b"] @ params["wsv"] + params["bsv"]                     # (D,)

    # TODO(synk): if P << 128 the lane axis of the paths block is mostly padding; consider
    # repacking the path features (or producing/consuming paths in bf16 upstream).
    paths_c = paths.astype(cd)

    def row(x):
        return x.reshape(1, -1).astype(jnp.float32)

    weights = (
        params["wq"].astype(cd), row(params["bq"]),
        wsk.T.astype(cd), row(bsk),              # wsk^T (D, P): used as q @ wsk^T
        wsv.astype(cd), row(bsv),
        params["wo"].astype(cd), row(params["bo"]),
        row(params["ln_g"]), row(params["ln_b"]),
    )

    # ---- generation-aware tile / VMEM sizing ----
    cap = _vmem_capacity_bytes()
    TQ = _pick_tq(N, H, P, head_num, cd.itemsize, wd.itemsize, budget_bytes=int(0.6 * cap))
    n_q = N // TQ

    # Put the larger parallel axis first so v7x's two TensorCores split evenly
    # (on v5e/v6e the order only affects K/V block reuse, which `paths` traffic dwarfs).
    swap = n_q > B
    grid = (n_q, B) if swap else (B, n_q)

    def _bq(g0, g1):
        return (g1, g0) if swap else (g0, g1)

    def map_tile(g0, g1):
        b, qi = _bq(g0, g1)
        return (b, qi, 0)

    def map_batch(g0, g1):
        b, _ = _bq(g0, g1)
        return (b, 0, 0)

    def map_paths(g0, g1):
        b, qi = _bq(g0, g1)
        return (b, qi, 0, 0)

    def map_w(g0, g1):
        b, qi = _bq(g0, g1)
        return (b, 0, qi, 0)

    def map_weight(g0, g1):
        return (0, 0)

    in_specs = [
        pl.BlockSpec((1, TQ, H), map_tile),        # nodes query-tile rows (f32, residual)
        pl.BlockSpec((1, N, H), map_batch),        # precomputed K
        pl.BlockSpec((1, N, H), map_batch),        # precomputed V
        pl.BlockSpec((1, 1, N), map_batch),        # additive key bias
        pl.BlockSpec((1, TQ, N, P), map_paths),    # paths rows for this query tile
    ] + [pl.BlockSpec(w.shape, map_weight) for w in weights]

    out_specs = (
        pl.BlockSpec((1, TQ, H), map_tile),
        pl.BlockSpec((1, head_num, TQ, N), map_w),
    )
    out_shape = (
        jax.ShapeDtypeStruct((B, N, H), jnp.float32),
        # TODO(synk): make the attention-weight output optional; it is the dominant HBM write.
        jax.ShapeDtypeStruct((B, head_num, N, N), wd),
    )

    return pl.pallas_call(
        functools.partial(_saa_kernel, head_num, cd),
        grid=grid,
        in_specs=in_specs,
        out_specs=out_specs,
        out_shape=out_shape,
        compiler_params=pltpu.CompilerParams(
            dimension_semantics=("parallel", "parallel"),
            vmem_limit_bytes=int(0.75 * cap)),
    )(nodes, k, v, bias3, paths_c, *weights)


def reference(nodes, bias, paths, p, head_num):
    """Pure-JAX reference mirroring the PyTorch forward (dropout = identity)."""
    B, N, H = nodes.shape
    D = H // head_num

    def split(x):
        return x.reshape(B, N, head_num, D).transpose(0, 2, 1, 3)

    q = split(nodes @ p["wq"] + p["bq"]) * D ** (-0.5)
    k = split(nodes @ p["wk"] + p["bk"])
    v = split(nodes @ p["wv"] + p["bv"])

    mu = paths.mean(-1, keepdims=True)
    var = ((paths - mu) ** 2).mean(-1, keepdims=True)
    pn = (paths - mu) / jnp.sqrt(var + LN_EPS) * p["pn_g"] + p["pn_b"]
    sk = pn @ p["wsk"] + p["bsk"]
    sv = pn @ p["wsv"] + p["bsv"]

    w = jnp.einsum("bhid,bhjd->bhij", q, k)
    sw = jnp.einsum("bhid,bijd->bhij", q, sk)
    probs = jax.nn.softmax(w + sw + bias, axis=-1)

    out = jnp.einsum("bhij,bhjd->bhid", probs, v) + jnp.einsum("bhij,bijd->bhid", probs, sv)
    out = out.transpose(0, 2, 1, 3).reshape(B, N, H)
    out = jnp.maximum(out @ p["wo"] + p["bo"], 0.0)

    res = nodes + out
    mu2 = res.mean(-1, keepdims=True)
    var2 = ((res - mu2) ** 2).mean(-1, keepdims=True)
    y = (res - mu2) / jnp.sqrt(var2 + LN_EPS) * p["ln_g"] + p["ln_b"]
    return y, probs


if __name__ == "__main__":
    B, N, H, P, head_num = 2, 8, 32, 16, 4

    key = jax.random.PRNGKey(0)
    ks = jax.random.split(key, 16)

    def w_init(k, shape, scale=0.1):
        return (scale * jax.random.normal(k, shape)).astype(jnp.float32)

    params = {
        "wq": w_init(ks[0], (H, H)), "bq": w_init(ks[1], (H,)),
        "wk": w_init(ks[2], (H, H)), "bk": w_init(ks[3], (H,)),
        "wv": w_init(ks[4], (H, H)), "bv": w_init(ks[5], (H,)),
        "wsk": w_init(ks[6], (P, H // head_num)), "bsk": w_init(ks[7], (H // head_num,)),
        "wsv": w_init(ks[8], (P, H // head_num)), "bsv": w_init(ks[9], (H // head_num,)),
        "wo": w_init(ks[10], (H, H)), "bo": w_init(ks[11], (H,)),
        "pn_g": jnp.ones((P,), jnp.float32), "pn_b": jnp.zeros((P,), jnp.float32),
        "ln_g": jnp.ones((H,), jnp.float32), "ln_b": jnp.zeros((H,), jnp.float32),
    }

    nodes = jax.random.normal(ks[12], (B, N, H), jnp.float32)
    paths = jax.random.normal(ks[13], (B, N, N, P), jnp.float32)
    lengths = jnp.array([N, 5], jnp.int32)
    mask = jnp.arange(N)[None, :] < lengths[:, None]             # (B, N) bool
    bias = jnp.where(mask, 0.0, -1e9).astype(jnp.float32).reshape(B, 1, 1, N)

    ref_nodes, ref_w = reference(nodes, bias, paths, params, head_num)

    # Exact (f32) kernel.
    out_nodes, attn_w = structure_aware_attention(nodes, bias, paths, params, head_num)
    out_nodes = jax.block_until_ready(out_nodes)
    attn_w = jax.block_until_ready(attn_w)
    np.testing.assert_allclose(np.asarray(out_nodes), np.asarray(ref_nodes), rtol=2e-3, atol=2e-3)
    np.testing.assert_allclose(np.asarray(attn_w), np.asarray(ref_w), rtol=2e-3, atol=2e-3)

    # bf16-MXU variant (recommended on v6e/v7x): bf16 matmul operands and bf16 stored attention
    # weights; softmax / LayerNorm statistics stay in f32.
    out_bf, w_bf = structure_aware_attention(nodes, bias, paths, params, head_num,
                                             matmul_dtype=jnp.bfloat16,
                                             weights_dtype=jnp.bfloat16)
    out_bf = jax.block_until_ready(out_bf)
    w_bf = jax.block_until_ready(w_bf)
    np.testing.assert_allclose(np.asarray(out_bf), np.asarray(ref_nodes), rtol=3e-2, atol=3e-2)
    np.testing.assert_allclose(np.asarray(w_bf.astype(jnp.float32)), np.asarray(ref_w),
                               rtol=3e-2, atol=3e-2)

    print("KERNEL_OK")
</pallas_src>

<mosaic_0001>
module attributes {stable_mosaic.version = 11 : i64} {
  func.func @_saa_kernel(%arg0: i32, %arg1: i32, %arg2: memref<1x8x32xf32, #tpu.memory_space<vmem>>, %arg3: memref<1x8x32xf32, #tpu.memory_space<vmem>>, %arg4: memref<1x8x32xf32, #tpu.memory_space<vmem>>, %arg5: memref<1x1x8xf32, #tpu.memory_space<vmem>>, %arg6: memref<1x8x8x16xf32, #tpu.memory_space<vmem>>, %arg7: memref<32x32xf32, #tpu.memory_space<vmem>>, %arg8: memref<1x32xf32, #tpu.memory_space<vmem>>, %arg9: memref<8x16xf32, #tpu.memory_space<vmem>>, %arg10: memref<1x8xf32, #tpu.memory_space<vmem>>, %arg11: memref<16x8xf32, #tpu.memory_space<vmem>>, %arg12: memref<1x8xf32, #tpu.memory_space<vmem>>, %arg13: memref<32x32xf32, #tpu.memory_space<vmem>>, %arg14: memref<1x32xf32, #tpu.memory_space<vmem>>, %arg15: memref<1x32xf32, #tpu.memory_space<vmem>>, %arg16: memref<1x32xf32, #tpu.memory_space<vmem>>, %arg17: memref<1x8x32xf32, #tpu.memory_space<vmem>>, %arg18: memref<1x4x8x8xf32, #tpu.memory_space<vmem>>) attributes {dimension_semantics = [#tpu.dimension_semantics<parallel>, #tpu.dimension_semantics<parallel>], iteration_bounds = array<i64: 2, 1>, scalar_prefetch = 0 : i64, scratch_operands = 0 : i64, tpu.core_type = #tpu.core_type<tc>, window_params = [{transform_indices = @transform_0, window_bounds = array<i64: 1, 8, 32>}, {transform_indices = @transform_1, window_bounds = array<i64: 1, 8, 32>}, {transform_indices = @transform_2, window_bounds = array<i64: 1, 8, 32>}, {transform_indices = @transform_3, window_bounds = array<i64: 1, 1, 8>}, {transform_indices = @transform_4, window_bounds = array<i64: 1, 8, 8, 16>}, {pipeline_mode = #tpu.pipeline_mode<synchronous>, transform_indices = @transform_5, window_bounds = array<i64: 32, 32>}, {pipeline_mode = #tpu.pipeline_mode<synchronous>, transform_indices = @transform_6, window_bounds = array<i64: 1, 32>}, {pipeline_mode = #tpu.pipeline_mode<synchronous>, transform_indices = @transform_7, window_bounds = array<i64: 8, 16>}, {pipeline_mode = #tpu.pipeline_mode<synchronous>, transform_indices = @transform_8, window_bounds = array<i64: 1, 8>}, {pipeline_mode = #tpu.pipeline_mode<synchronous>, transform_indices = @transform_9, window_bounds = array<i64: 16, 8>}, {pipeline_mode = #tpu.pipeline_mode<synchronous>, transform_indices = @transform_10, window_bounds = array<i64: 1, 8>}, {pipeline_mode = #tpu.pipeline_mode<synchronous>, transform_indices = @transform_11, window_bounds = array<i64: 32, 32>}, {pipeline_mode = #tpu.pipeline_mode<synchronous>, transform_indices = @transform_12, window_bounds = array<i64: 1, 32>}, {pipeline_mode = #tpu.pipeline_mode<synchronous>, transform_indices = @transform_13, window_bounds = array<i64: 1, 32>}, {pipeline_mode = #tpu.pipeline_mode<synchronous>, transform_indices = @transform_14, window_bounds = array<i64: 1, 32>}, {transform_indices = @transform_15, window_bounds = array<i64: 1, 8, 32>}, {transform_indices = @transform_16, window_bounds = array<i64: 1, 4, 8, 8>}]} {
    %c0 = arith.constant 0 : index
    %c0_0 = arith.constant 0 : index
    %c0_1 = arith.constant 0 : index
    %0 = vector.load %arg2[%c0, %c0_0, %c0_1] : memref<1x8x32xf32, #tpu.memory_space<vmem>>, vector<1x8x32xf32>
    %1 = vector.shape_cast %0 : vector<1x8x32xf32> to vector<8x32xf32>
    %c0_2 = arith.constant 0 : index
    %c0_3 = arith.constant 0 : index
    %c0_4 = arith.constant 0 : index
    %2 = vector.load %arg3[%c0_2, %c0_3, %c0_4] : memref<1x8x32xf32, #tpu.memory_space<vmem>>, vector<1x8x32xf32>
    %3 = vector.shape_cast %2 : vector<1x8x32xf32> to vector<8x32xf32>
    %c0_5 = arith.constant 0 : index
    %c0_6 = arith.constant 0 : index
    %c0_7 = arith.constant 0 : index
    %4 = vector.load %arg4[%c0_5, %c0_6, %c0_7] : memref<1x8x32xf32, #tpu.memory_space<vmem>>, vector<1x8x32xf32>
    %5 = vector.shape_cast %4 : vector<1x8x32xf32> to vector<8x32xf32>
    %c0_8 = arith.constant 0 : index
    %c0_9 = arith.constant 0 : index
    %c0_10 = arith.constant 0 : index
    %6 = vector.load %arg5[%c0_8, %c0_9, %c0_10] : memref<1x1x8xf32, #tpu.memory_space<vmem>>, vector<1x1x8xf32>
    %7 = vector.shape_cast %6 : vector<1x1x8xf32> to vector<8xf32>
    %c0_11 = arith.constant 0 : index
    %c0_12 = arith.constant 0 : index
    %c0_13 = arith.constant 0 : index
    %c0_14 = arith.constant 0 : index
    %8 = vector.load %arg6[%c0_11, %c0_12, %c0_13, %c0_14] : memref<1x8x8x16xf32, #tpu.memory_space<vmem>>, vector<1x8x8x16xf32>
    %9 = vector.shape_cast %8 : vector<1x8x8x16xf32> to vector<8x8x16xf32>
    %c0_15 = arith.constant 0 : index
    %c0_16 = arith.constant 0 : index
    %10 = vector.load %arg7[%c0_15, %c0_16] : memref<32x32xf32, #tpu.memory_space<vmem>>, vector<32x32xf32>
    %cst = arith.constant dense<0.000000e+00> : vector<8x32xf32>
    %11 = tpu.matmul %1, %10, %cst {dimension_numbers = #tpu.dot_dimension_numbers<[1], [0], [0], [1], [0, 0, 1, 1], [], []>} : vector<8x32xf32>, vector<32x32xf32>, vector<8x32xf32> -> vector<8x32xf32>
    %c0_17 = arith.constant 0 : index
    %c0_18 = arith.constant 0 : index
    %12 = vector.load %arg8[%c0_17, %c0_18] : memref<1x32xf32, #tpu.memory_space<vmem>>, vector<1x32xf32>
    %13 = vector.broadcast %12 : vector<1x32xf32> to vector<8x32xf32>
    %14 = arith.addf %11, %13 : vector<8x32xf32>
    %cst_19 = arith.constant 0.353553385 : f32
    %15 = vector.broadcast %cst_19 : f32 to vector<8x32xf32>
    %16 = arith.mulf %14, %15 : vector<8x32xf32>
    %17 = vector.shape_cast %16 : vector<8x32xf32> to vector<8x4x8xf32>
    %18 = vector.shape_cast %3 : vector<8x32xf32> to vector<8x4x8xf32>
    %19 = vector.shape_cast %5 : vector<8x32xf32> to vector<8x4x8xf32>
    %cst_20 = arith.constant dense<0.000000e+00> : vector<8x8xf32>
    %20 = vector.multi_reduction <add>, %9, %cst_20 [2] : vector<8x8x16xf32> to vector<8x8xf32>
    %21 = vector.shape_cast %20 : vector<8x8xf32> to vector<8x8x1xf32>
    %cst_21 = arith.constant 1.600000e+01 : f32
    %22 = vector.broadcast %cst_21 : f32 to vector<8x8x1xf32>
    %23 = arith.divf %21, %22 : vector<8x8x1xf32>
    %24 = vector.broadcast %23 : vector<8x8x1xf32> to vector<8x8x16xf32>
    %25 = arith.subf %9, %24 : vector<8x8x16xf32>
    %26 = arith.mulf %25, %25 : vector<8x8x16xf32>
    %cst_22 = arith.constant dense<0.000000e+00> : vector<8x8xf32>
    %27 = vector.multi_reduction <add>, %26, %cst_22 [2] : vector<8x8x16xf32> to vector<8x8xf32>
    %28 = vector.shape_cast %27 : vector<8x8xf32> to vector<8x8x1xf32>
    %cst_23 = arith.constant 1.600000e+01 : f32
    %29 = vector.broadcast %cst_23 : f32 to vector<8x8x1xf32>
    %30 = arith.divf %28, %29 : vector<8x8x1xf32>
    %31 = vector.broadcast %23 : vector<8x8x1xf32> to vector<8x8x16xf32>
    %32 = arith.subf %9, %31 : vector<8x8x16xf32>
    %cst_24 = arith.constant 9.99999974E-6 : f32
    %33 = vector.broadcast %cst_24 : f32 to vector<8x8x1xf32>
    %34 = arith.addf %30, %33 : vector<8x8x1xf32>
    %35 = math.rsqrt %34 : vector<8x8x1xf32>
    %36 = vector.broadcast %35 : vector<8x8x1xf32> to vector<8x8x16xf32>
    %37 = arith.mulf %32, %36 : vector<8x8x16xf32>
    "tpu.trace_start"() <{level = 10 : i32, message = "ihd,jhd->hij"}> : () -> ()
    %cst_25 = arith.constant dense<0.000000e+00> : vector<4x8x8xf32>
    %38 = tpu.matmul %17, %18, %cst_25 {dimension_numbers = #tpu.dot_dimension_numbers<[2], [2], [0], [0], [0, 1, 0, 0, 1, 0], [1], [1]>} : vector<8x4x8xf32>, vector<8x4x8xf32>, vector<4x8x8xf32> -> vector<4x8x8xf32>
    "tpu.trace_stop"() : () -> ()
    %c0_26 = arith.constant 0 : index
    %c0_27 = arith.constant 0 : index
    %39 = vector.load %arg9[%c0_26, %c0_27] : memref<8x16xf32, #tpu.memory_space<vmem>>, vector<8x16xf32>
    "tpu.trace_start"() <{level = 10 : i32, message = "ihd,dp->ihp"}> : () -> ()
    %cst_28 = arith.constant dense<0.000000e+00> : vector<8x4x16xf32>
    %40 = tpu.matmul %17, %39, %cst_28 {dimension_numbers = #tpu.dot_dimension_numbers<[2], [0], [0, 1], [1], [0, 0, 0, 1, 1, 1], [], []>} : vector<8x4x8xf32>, vector<8x16xf32>, vector<8x4x16xf32> -> vector<8x4x16xf32>
    "tpu.trace_stop"() : () -> ()
    "tpu.trace_start"() <{level = 10 : i32, message = "ihp,ijp->hij"}> : () -> ()
    %cst_29 = arith.constant dense<0.000000e+00> : vector<8x8x4xf32>
    %41 = tpu.matmul %37, %40, %cst_29 {dimension_numbers = #tpu.dot_dimension_numbers<[2], [2], [1], [1], [0, 0, 0, 1, 1, 1], [0], [0]>} : vector<8x8x16xf32>, vector<8x4x16xf32>, vector<8x8x4xf32> -> vector<8x8x4xf32>
    %42 = tpu.transpose %41, [2, 0, 1] : vector<8x8x4xf32> -> vector<4x8x8xf32>
    "tpu.trace_stop"() : () -> ()
    %43 = arith.addf %38, %42 : vector<4x8x8xf32>
    %c0_30 = arith.constant 0 : index
    %c0_31 = arith.constant 0 : index
    %44 = vector.load %arg10[%c0_30, %c0_31] : memref<1x8xf32, #tpu.memory_space<vmem>>, vector<1x8xf32>
    %45 = vector.shape_cast %44 : vector<1x8xf32> to vector<8xf32>
    %46 = vector.shape_cast %45 : vector<8xf32> to vector<1x1x8xf32>
    %47 = vector.broadcast %46 : vector<1x1x8xf32> to vector<8x4x8xf32>
    %48 = arith.mulf %17, %47 : vector<8x4x8xf32>
    %cst_32 = arith.constant dense<0.000000e+00> : vector<8x4xf32>
    %49 = vector.multi_reduction <add>, %48, %cst_32 [2] : vector<8x4x8xf32> to vector<8x4xf32>
    %50 = tpu.transpose %49, [1, 0] : vector<8x4xf32> -> vector<4x8xf32>
    %51 = vector.shape_cast %50 : vector<4x8xf32> to vector<4x8x1xf32>
    %52 = vector.broadcast %51 : vector<4x8x1xf32> to vector<4x8x8xf32>
    %53 = arith.addf %43, %52 : vector<4x8x8xf32>
    %54 = vector.shape_cast %7 : vector<8xf32> to vector<1x1x8xf32>
    %55 = vector.broadcast %54 : vector<1x1x8xf32> to vector<4x8x8xf32>
    %56 = arith.addf %53, %55 : vector<4x8x8xf32>
    %cst_33 = arith.constant dense<0xFF800000> : vector<4x8xf32>
    %57 = vector.multi_reduction <maximumf>, %56, %cst_33 [2] : vector<4x8x8xf32> to vector<4x8xf32>
    %58 = vector.shape_cast %57 : vector<4x8xf32> to vector<4x8x1xf32>
    %59 = vector.broadcast %58 : vector<4x8x1xf32> to vector<4x8x8xf32>
    %60 = arith.subf %56, %59 : vector<4x8x8xf32>
    %61 = math.exp %60 : vector<4x8x8xf32>
    %cst_34 = arith.constant dense<0.000000e+00> : vector<4x8xf32>
    %62 = vector.multi_reduction <add>, %61, %cst_34 [2] : vector<4x8x8xf32> to vector<4x8xf32>
    %63 = vector.shape_cast %62 : vector<4x8xf32> to vector<4x8x1xf32>
    %64 = vector.broadcast %63 : vector<4x8x1xf32> to vector<4x8x8xf32>
    %65 = arith.divf %61, %64 : vector<4x8x8xf32>
    %c0_35 = arith.constant 0 : index
    %c0_36 = arith.constant 0 : index
    %c0_37 = arith.constant 0 : index
    %c0_38 = arith.constant 0 : index
    %66 = vector.load %arg18[%c0_35, %c0_36, %c0_37, %c0_38] : memref<1x4x8x8xf32, #tpu.memory_space<vmem>>, vector<1x4x8x8xf32>
    %67 = vector.shape_cast %66 : vector<1x4x8x8xf32> to vector<4x8x8xf32>
    %68 = vector.shape_cast %65 : vector<4x8x8xf32> to vector<1x4x8x8xf32>
    tpu.vector_store %arg18[%c0_35, %c0_36, %c0_37, %c0_38], %68 {strides = array<i32>} : memref<1x4x8x8xf32, #tpu.memory_space<vmem>>, vector<1x4x8x8xf32>,
    "tpu.trace_start"() <{level = 10 : i32, message = "hij,jhd->ihd"}> : () -> ()
    %cst_39 = arith.constant dense<0.000000e+00> : vector<4x8x8xf32>
    %69 = tpu.matmul %19, %65, %cst_39 {dimension_numbers = #tpu.dot_dimension_numbers<[0], [2], [2], [1], [0, 1, 0, 2, 1, 1], [1], [0]>} : vector<8x4x8xf32>, vector<4x8x8xf32>, vector<4x8x8xf32> -> vector<4x8x8xf32>
    %70 = tpu.transpose %69, [2, 0, 1] : vector<4x8x8xf32> -> vector<8x4x8xf32>
    "tpu.trace_stop"() : () -> ()
    "tpu.trace_start"() <{level = 10 : i32, message = "hij,ijp->ihp"}> : () -> ()
    %cst_40 = arith.constant dense<0.000000e+00> : vector<8x4x16xf32>
    %71 = tpu.matmul %65, %37, %cst_40 {dimension_numbers = #tpu.dot_dimension_numbers<[2], [1], [0], [2], [0, 1, 0, 0, 1, 2], [1], [0]>} : vector<4x8x8xf32>, vector<8x8x16xf32>, vector<8x4x16xf32> -> vector<8x4x16xf32>
    "tpu.trace_stop"() : () -> ()
    %cst_41 = arith.constant dense<0.000000e+00> : vector<4x8xf32>
    %72 = vector.multi_reduction <add>, %65, %cst_41 [2] : vector<4x8x8xf32> to vector<4x8xf32>
    %c0_42 = arith.constant 0 : index
    %c0_43 = arith.constant 0 : index
    %73 = vector.load %arg11[%c0_42, %c0_43] : memref<16x8xf32, #tpu.memory_space<vmem>>, vector<16x8xf32>
    "tpu.trace_start"() <{level = 10 : i32, message = "ihp,pd->ihd"}> : () -> ()
    %cst_44 = arith.constant dense<0.000000e+00> : vector<8x4x8xf32>
    %74 = tpu.matmul %71, %73, %cst_44 {dimension_numbers = #tpu.dot_dimension_numbers<[2], [0], [0, 1], [1], [0, 0, 0, 1, 1, 1], [], []>} : vector<8x4x16xf32>, vector<16x8xf32>, vector<8x4x8xf32> -> vector<8x4x8xf32>
    "tpu.trace_stop"() : () -> ()
    %75 = tpu.transpose %72, [1, 0] : vector<4x8xf32> -> vector<8x4xf32>
    %76 = vector.shape_cast %75 : vector<8x4xf32> to vector<8x4x1xf32>
    %c0_45 = arith.constant 0 : index
    %c0_46 = arith.constant 0 : index
    %77 = vector.load %arg12[%c0_45, %c0_46] : memref<1x8xf32, #tpu.memory_space<vmem>>, vector<1x8xf32>
    %78 = vector.shape_cast %77 : vector<1x8xf32> to vector<8xf32>
    %79 = vector.shape_cast %78 : vector<8xf32> to vector<1x1x8xf32>
    %80 = vector.broadcast %76 : vector<8x4x1xf32> to vector<8x4x8xf32>
    %81 = vector.broadcast %79 : vector<1x1x8xf32> to vector<8x4x8xf32>
    %82 = arith.mulf %80, %81 : vector<8x4x8xf32>
    %83 = arith.addf %74, %82 : vector<8x4x8xf32>
    %84 = arith.addf %70, %83 : vector<8x4x8xf32>
    %85 = vector.shape_cast %84 : vector<8x4x8xf32> to vector<8x32xf32>
    %c0_47 = arith.constant 0 : index
    %c0_48 = arith.constant 0 : index
    %86 = vector.load %arg13[%c0_47, %c0_48] : memref<32x32xf32, #tpu.memory_space<vmem>>, vector<32x32xf32>
    %cst_49 = arith.constant dense<0.000000e+00> : vector<8x32xf32>
    %87 = tpu.matmul %85, %86, %cst_49 {dimension_numbers = #tpu.dot_dimension_numbers<[1], [0], [0], [1], [0, 0, 1, 1], [], []>} : vector<8x32xf32>, vector<32x32xf32>, vector<8x32xf32> -> vector<8x32xf32>
    %c0_50 = arith.constant 0 : index
    %c0_51 = arith.constant 0 : index
    %88 = vector.load %arg14[%c0_50, %c0_51] : memref<1x32xf32, #tpu.memory_space<vmem>>, vector<1x32xf32>
    %89 = vector.broadcast %88 : vector<1x32xf32> to vector<8x32xf32>
    %90 = arith.addf %87, %89 : vector<8x32xf32>
    %cst_52 = arith.constant 0.000000e+00 : f32
    %91 = vector.broadcast %cst_52 : f32 to vector<8x32xf32>
    %92 = arith.maximumf %90, %91 : vector<8x32xf32>
    %93 = arith.addf %1, %92 : vector<8x32xf32>
    %cst_53 = arith.constant dense<0.000000e+00> : vector<8xf32>
    %94 = vector.multi_reduction <add>, %93, %cst_53 [1] : vector<8x32xf32> to vector<8xf32>
    %95 = vector.shape_cast %94 : vector<8xf32> to vector<8x1xf32>
    %cst_54 = arith.constant 3.200000e+01 : f32
    %96 = vector.broadcast %cst_54 : f32 to vector<8x1xf32>
    %97 = arith.divf %95, %96 : vector<8x1xf32>
    %98 = vector.broadcast %97 : vector<8x1xf32> to vector<8x32xf32>
    %99 = arith.subf %93, %98 : vector<8x32xf32>
    %100 = arith.mulf %99, %99 : vector<8x32xf32>
    %cst_55 = arith.constant dense<0.000000e+00> : vector<8xf32>
    %101 = vector.multi_reduction <add>, %100, %cst_55 [1] : vector<8x32xf32> to vector<8xf32>
    %102 = vector.shape_cast %101 : vector<8xf32> to vector<8x1xf32>
    %cst_56 = arith.constant 3.200000e+01 : f32
    %103 = vector.broadcast %cst_56 : f32 to vector<8x1xf32>
    %104 = arith.divf %102, %103 : vector<8x1xf32>
    %105 = vector.broadcast %97 : vector<8x1xf32> to vector<8x32xf32>
    %106 = arith.subf %93, %105 : vector<8x32xf32>
    %cst_57 = arith.constant 9.99999974E-6 : f32
    %107 = vector.broadcast %cst_57 : f32 to vector<8x1xf32>
    %108 = arith.addf %104, %107 : vector<8x1xf32>
    %109 = math.rsqrt %108 : vector<8x1xf32>
    %110 = vector.broadcast %109 : vector<8x1xf32> to vector<8x32xf32>
    %111 = arith.mulf %106, %110 : vector<8x32xf32>
    %c0_58 = arith.constant 0 : index
    %c0_59 = arith.constant 0 : index
    %112 = vector.load %arg15[%c0_58, %c0_59] : memref<1x32xf32, #tpu.memory_space<vmem>>, vector<1x32xf32>
    %113 = vector.broadcast %112 : vector<1x32xf32> to vector<8x32xf32>
    %114 = arith.mulf %111, %113 : vector<8x32xf32>
    %c0_60 = arith.constant 0 : index
    %c0_61 = arith.constant 0 : index
    %115 = vector.load %arg16[%c0_60, %c0_61] : memref<1x32xf32, #tpu.memory_space<vmem>>, vector<1x32xf32>
    %116 = vector.broadcast %115 : vector<1x32xf32> to vector<8x32xf32>
    %117 = arith.addf %114, %116 : vector<8x32xf32>
    %c0_62 = arith.constant 0 : index
    %c0_63 = arith.constant 0 : index
    %c0_64 = arith.constant 0 : index
    %118 = vector.load %arg17[%c0_62, %c0_63, %c0_64] : memref<1x8x32xf32, #tpu.memory_space<vmem>>, vector<1x8x32xf32>
    %119 = vector.shape_cast %118 : vector<1x8x32xf32> to vector<8x32xf32>
    %120 = vector.shape_cast %117 : vector<8x32xf32> to vector<1x8x32xf32>
    tpu.vector_store %arg17[%c0_62, %c0_63, %c0_64], %120 {strides = array<i32>} : memref<1x8x32xf32, #tpu.memory_space<vmem>>, vector<1x8x32xf32>,
    return
  }
  func.func @transform_0(%arg0: i32, %arg1: i32) -> (i32, i32, i32) {
    %c0_i32 = arith.constant 0 : i32
    %c0_i32_0 = arith.constant 0 : i32
    return %arg0, %arg1, %c0_i32 : i32, i32, i32
  }
  func.func @transform_1(%arg0: i32, %arg1: i32) -> (i32, i32, i32) {
    %c0_i32 = arith.constant 0 : i32
    %c0_i32_0 = arith.constant 0 : i32
    %c0_i32_1 = arith.constant 0 : i32
    return %arg0, %c0_i32, %c0_i32_0 : i32, i32, i32
  }
  func.func @transform_2(%arg0: i32, %arg1: i32) -> (i32, i32, i32) {
    %c0_i32 = arith.constant 0 : i32
    %c0_i32_0 = arith.constant 0 : i32
    %c0_i32_1 = arith.constant 0 : i32
    return %arg0, %c0_i32, %c0_i32_0 : i32, i32, i32
  }
  func.func @transform_3(%arg0: i32, %arg1: i32) -> (i32, i32, i32) {
    %c0_i32 = arith.constant 0 : i32
    %c0_i32_0 = arith.constant 0 : i32
    %c0_i32_1 = arith.constant 0 : i32
    return %arg0, %c0_i32, %c0_i32_0 : i32, i32, i32
  }
  func.func @transform_4(%arg0: i32, %arg1: i32) -> (i32, i32, i32, i32) {
    %c0_i32 = arith.constant 0 : i32
    %c0_i32_0 = arith.constant 0 : i32
    %c0_i32_1 = arith.constant 0 : i32
    return %arg0, %arg1, %c0_i32, %c0_i32_0 : i32, i32, i32, i32
  }
  func.func @transform_5(%arg0: i32, %arg1: i32) -> (i32, i32) {
    %c0_i32 = arith.constant 0 : i32
    %c0_i32_0 = arith.constant 0 : i32
    %c0_i32_1 = arith.constant 0 : i32
    return %c0_i32, %c0_i32_0 : i32, i32
  }
  func.func @transform_6(%arg0: i32, %arg1: i32) -> (i32, i32) {
    %c0_i32 = arith.constant 0 : i32
    %c0_i32_0 = arith.constant 0 : i32
    %c0_i32_1 = arith.constant 0 : i32
    return %c0_i32, %c0_i32_0 : i32, i32
  }
  func.func @transform_7(%arg0: i32, %arg1: i32) -> (i32, i32) {
    %c0_i32 = arith.constant 0 : i32
    %c0_i32_0 = arith.constant 0 : i32
    %c0_i32_1 = arith.constant 0 : i32
    return %c0_i32, %c0_i32_0 : i32, i32
  }
  func.func @transform_8(%arg0: i32, %arg1: i32) -> (i32, i32) {
    %c0_i32 = arith.constant 0 : i32
    %c0_i32_0 = arith.constant 0 : i32
    %c0_i32_1 = arith.constant 0 : i32
    return %c0_i32, %c0_i32_0 : i32, i32
  }
  func.func @transform_9(%arg0: i32, %arg1: i32) -> (i32, i32) {
    %c0_i32 = arith.constant 0 : i32
    %c0_i32_0 = arith.constant 0 : i32
    %c0_i32_1 = arith.constant 0 : i32
    return %c0_i32, %c0_i32_0 : i32, i32
  }
  func.func @transform_10(%arg0: i32, %arg1: i32) -> (i32, i32) {
    %c0_i32 = arith.constant 0 : i32
    %c0_i32_0 = arith.constant 0 : i32
    %c0_i32_1 = arith.constant 0 : i32
    return %c0_i32, %c0_i32_0 : i32, i32
  }
  func.func @transform_11(%arg0: i32, %arg1: i32) -> (i32, i32) {
    %c0_i32 = arith.constant 0 : i32
    %c0_i32_0 = arith.constant 0 : i32
    %c0_i32_1 = arith.constant 0 : i32
    return %c0_i32, %c0_i32_0 : i32, i32
  }
  func.func @transform_12(%arg0: i32, %arg1: i32) -> (i32, i32) {
    %c0_i32 = arith.constant 0 : i32
    %c0_i32_0 = arith.constant 0 : i32
    %c0_i32_1 = arith.constant 0 : i32
    return %c0_i32, %c0_i32_0 : i32, i32
  }
  func.func @transform_13(%arg0: i32, %arg1: i32) -> (i32, i32) {
    %c0_i32 = arith.constant 0 : i32
    %c0_i32_0 = arith.constant 0 : i32
    %c0_i32_1 = arith.constant 0 : i32
    return %c0_i32, %c0_i32_0 : i32, i32
  }
  func.func @transform_14(%arg0: i32, %arg1: i32) -> (i32, i32) {
    %c0_i32 = arith.constant 0 : i32
    %c0_i32_0 = arith.constant 0 : i32
    %c0_i32_1 = arith.constant 0 : i32
    return %c0_i32, %c0_i32_0 : i32, i32
  }
  func.func @transform_15(%arg0: i32, %arg1: i32) -> (i32, i32, i32) {
    %c0_i32 = arith.constant 0 : i32
    %c0_i32_0 = arith.constant 0 : i32
    return %arg0, %arg1, %c0_i32 : i32, i32, i32
  }
  func.func @transform_16(%arg0: i32, %arg1: i32) -> (i32, i32, i32, i32) {
    %c0_i32 = arith.constant 0 : i32
    %c0_i32_0 = arith.constant 0 : i32
    %c0_i32_1 = arith.constant 0 : i32
    return %arg0, %c0_i32, %arg1, %c0_i32_0 : i32, i32, i32, i32
  }
}

</mosaic_0001>

<llo_original>
// kernel: tpu_custom_call.1
$region0: #{tpu_custom_call.1}
  #allocation0 [shape = 'u32[]', space=smem, size = 0x4, offset = 0x4, fixed_abs, tag = 'smem constant byte address 0x4 - core index']
  #allocation1 [shape = 'u32[144,128]{1,0:T(1,128)}', space=vmem, size = 0x12000, scoped, tag = 'internal scratch']
  %s0 = inlined_call_operand.hbm [shape: f32[2,8,32], index: 0, kind: input, shape index: {}]
  %s1 = inlined_call_operand.hbm [shape: f32[2,8,32], index: 1, kind: input, shape index: {}]
  %s2 = inlined_call_operand.hbm [shape: f32[2,8,32], index: 2, kind: input, shape index: {}]
  %s3 = inlined_call_operand.hbm [shape: f32[2,1,8], index: 3, kind: input, shape index: {}]
  %s4 = inlined_call_operand.hbm [shape: f32[2,8,8,16], index: 4, kind: input, shape index: {}]
  %s5 = inlined_call_operand.vmem [shape: f32[32,32], index: 5, kind: input, shape index: {}]
  %s6 = inlined_call_operand.vmem [shape: f32[1,32], index: 6, kind: input, shape index: {}]
  %s7 = inlined_call_operand.hbm [shape: f32[8,16], index: 7, kind: input, shape index: {}]
  %s8 = inlined_call_operand.hbm [shape: f32[1,8], index: 8, kind: input, shape index: {}]
  %s9 = inlined_call_operand.vmem [shape: f32[16,8], index: 9, kind: input, shape index: {}]
  %s10 = inlined_call_operand.hbm [shape: f32[1,8], index: 10, kind: input, shape index: {}]
  %s11 = inlined_call_operand.vmem [shape: f32[32,32], index: 11, kind: input, shape index: {}]
  %s12 = inlined_call_operand.vmem [shape: f32[1,32], index: 12, kind: input, shape index: {}]
  %s13 = inlined_call_operand.vmem [shape: f32[1,32], index: 13, kind: input, shape index: {}]
  %s14 = inlined_call_operand.vmem [shape: f32[1,32], index: 14, kind: input, shape index: {}]
  %s15 = inlined_call_operand.hbm [shape: f32[2,8,32], index: 15, kind: output, shape index: {0}]
  %s16 = inlined_call_operand.hbm [shape: f32[2,4,8,8], index: 16, kind: output, shape index: {1}]
  %17 = xla_tuple %s15, %s16
  %s18 = sld [smem:[#allocation0]]
  $region133: #{tpu_custom_call.1} parent=0
    _
  %s20 = ssub.s32 1, %s18
  %s21 = scalar_select 0, %s20, %s18
  $region1: #{tpu_custom_call.1} parent=0
    #allocation2 [shape = 'u8[8192]{0}', space=vmem, size = 0x2000, scoped, tag = 'input window, operand 0']
    #allocation3 [shape = 's32[2]{0}', space=sflag, size = 0x8, scoped, tag = 'scoped memory for tpu_custom_call.1']
    #allocation4 [shape = 's32[2]{0}', space=sflag, size = 0x8, scoped, tag = 'scoped memory for tpu_custom_call.1']
    #allocation5 [shape = 'u8[8192]{0}', space=vmem, size = 0x2000, scoped, tag = 'input window, operand 1']
    #allocation6 [shape = 's32[2]{0}', space=sflag, size = 0x8, scoped, tag = 'scoped memory for tpu_custom_call.1']
    #allocation7 [shape = 'u8[8192]{0}', space=vmem, size = 0x2000, scoped, tag = 'input window, operand 2']
    #allocation8 [shape = 'u8[1024]{0}', space=vmem, size = 0x400, scoped, tag = 'input window, operand 3']
    #allocation9 [shape = 's32[2]{0}', space=sflag, size = 0x8, scoped, tag = 'scoped memory for tpu_custom_call.1']
    #allocation10 [shape = 'u8[65536]{0}', space=vmem, size = 0x10000, scoped, tag = 'input window, operand 4']
    #allocation11 [shape = 'u8[4096]{0}', space=vmem, size = 0x1000, scoped, tag = 'input window, operand 7, single buffered']
    #allocation12 [shape = 's32[1]{0}', space=sflag, size = 0x4, scoped, tag = 'scoped memory for tpu_custom_call.1']
    #allocation13 [shape = 'u8[512]{0}', space=vmem, size = 0x400, scoped, tag = 'input window, operand 8, single buffered']
    #allocation14 [shape = 'u8[512]{0}', space=vmem, size = 0x400, scoped, tag = 'input window, operand 10, single buffered']
    #allocation15 [shape = 's32[1]{0}', space=sflag, size = 0x4, scoped, tag = 'scoped memory for tpu_custom_call.1']
    #allocation16 [shape = 'u8[8192]{0}', space=vmem, size = 0x2000, scoped, tag = 'output window, operand 0']
    #allocation17 [shape = 'u8[32768]{0}', space=vmem, size = 0x8000, scoped, tag = 'output window, operand 1']
    #allocation18 [shape = 's32[2]{0}', space=sflag, size = 0x8, scoped, tag = 'scoped memory for tpu_custom_call.1']
    %22 = vsyncpa [#allocation3], 0
    %s23 = scalar_lea.sflag [#allocation3], 1
    %24 = vsyncpa %s23, 0
    %25 = vsyncpa [#allocation6], 0
    %s26 = scalar_lea.sflag [#allocation6], 1
    %27 = vsyncpa %s26, 0
    %28 = vsyncpa [#allocation9], 0
    %s29 = scalar_lea.sflag [#allocation9], 1
    %30 = vsyncpa %s29, 0
    %31 = vsyncpa [#allocation12], 0
    %32 = vsyncpa [#allocation15], 0
    %33 = vsyncpa [#allocation4], 0
    %s34 = scalar_lea.sflag [#allocation4], 1
    %35 = vsyncpa %s34, 0
    %36 = vsyncpa [#allocation18], 0
    %s37 = scalar_lea.sflag [#allocation18], 1
    %38 = vsyncpa %s37, 0
    loop: start=0, step=1, limit=4
    $region2: #{tpu_custom_call.1} parent=1 // loop_pre_header
      _
    $region3: #{tpu_custom_call.1} parent=1 // loop_header
      %s40 = sphi 0, %s44
      %p41 = scmp.ge.s32.totalorder %s40, 4
      %s47 = sphi 0, %s59
      %s48 = sphi 0, %s55
      %s49 = sphi 0, %s47
      %s50 = sphi 0, %s48
      %s51 = sphi 0, %s49
      %s52 = sphi 0, %s50
      %s64 = sphi 0, %s66
      %s67 = sphi 0, %s64
      %s68 = sphi 0, %s67
      %s84 = sphi 0, %s68
      %s90 = sphi 0, %s92
      %s93 = sphi 0, %s90
      %s94 = sphi 0, %s93
      %s110 = sphi 0, %s94
      %s116 = sphi 0, %s118
      %s119 = sphi 0, %s116
      %s120 = sphi 0, %s119
      %s136 = sphi 0, %s120
      %s142 = sphi 0, %s144
      %s145 = sphi 0, %s142
      %s146 = sphi 0, %s145
      %s162 = sphi 0, %s146
      %s170 = sphi 0, %s172
      %s173 = sphi 0, %s170
      %s174 = sphi 0, %s173
      %s190 = sphi 0, %s174
      %s194 = sphi 0, %s194
      %s196 = sphi 0, %s194
      %s197 = sphi 0, %s196
      %s211 = sphi 0, %s197
      %s215 = sphi 0, %s215
      %s217 = sphi 0, %s215
      %s218 = sphi 0, %s217
      %s232 = sphi 0, %s218
      %s236 = sphi 0, %s236
      %s238 = sphi 0, %s236
      %s239 = sphi 0, %s238
      %s253 = sphi 0, %s239
      %s257 = sphi 0, %s257
      %s259 = sphi 0, %s257
      %s260 = sphi 0, %s259
      %s274 = sphi 0, %s260
      %s278 = sphi 0, %s278
      %s280 = sphi 0, %s278
      %s281 = sphi 0, %s280
      %s295 = sphi 0, %s281
      %s299 = sphi 0, %s299
      %s301 = sphi 0, %s299
      %s302 = sphi 0, %s301
      %s316 = sphi 0, %s302
      %s320 = sphi 0, %s320
      %s322 = sphi 0, %s320
      %s323 = sphi 0, %s322
      %s337 = sphi 0, %s323
      %s341 = sphi 0, %s341
      %s343 = sphi 0, %s341
      %s344 = sphi 0, %s343
      %s358 = sphi 0, %s344
      %s362 = sphi 0, %s362
      %s364 = sphi 0, %s362
      %s365 = sphi 0, %s364
      %s379 = sphi 0, %s365
      %s383 = sphi 0, %s383
      %s385 = sphi 0, %s383
      %s386 = sphi 0, %s385
      %s400 = sphi 0, %s386
      %s408 = sphi 0, %s410
      %s411 = sphi 0, %s408
      %s412 = sphi 0, %s411
      %s428 = sphi 0, %s412
      %s436 = sphi 0, %s438
      %s439 = sphi 0, %s436
      %s440 = sphi 0, %s439
      %s456 = sphi 0, %s440
    $region4: #{tpu_custom_call.1} parent=1 // loop_header_branch
      %43 = sbr.rel (%p41) target = $region8
    $region5: #{tpu_custom_call.1} parent=1 // loop_body
      %s45 = ssub.s32 %s40, 1
      %s46 = ssub.s32 %s40, 2
      %s53 = sadd.s32 1, %s48
      %p54 = scmp.ge.s32.totalorder %s53, 1
      %s55 = scalar_select %p54, 0, %s53
      %s56 = sadd.s32 1, %s47
      %s57 = scalar_select %p54, %s56, %s47
      %p58 = scmp.ge.s32.totalorder %s57, 2
      %s59 = scalar_select %p58, 0, %s57
      %s60 = ssub.s32 %s47, %s59
      %s61 = ssub.s32 %s48, %s55
      %s62 = sor.u32 %s60, %s61
      %p63 = scmp.eq.s32.totalorder %s62, 0
      %s65 = sadd.s32 %s64, 1
      %s66 = scalar_select %p63, %s64, %s65
      %p69 = pneg %p63
      %p70 = scmp.eq.s32.totalorder %s40, 1
      %p71 = por %p69, %p70
      %p72 = scmp.ne.s32.totalorder %s64, %s67
      %p73 = scmp.eq.s32.totalorder %s40, 0
      %p74 = por %p72, %p73
      %p75 = scmp.ne.s32.totalorder %s64, %s67
      %p76 = scmp.eq.s32.totalorder %s45, 1
      %p77 = por %p75, %p76
      %p78 = scmp.ne.s32.totalorder %s67, %s68
      %p79 = scmp.eq.s32.totalorder %s45, 0
      %p80 = por %p78, %p79
      %p81 = scmp.ne.s32.totalorder %s67, %s68
      %p82 = scmp.eq.s32.totalorder %s46, 1
      %p83 = por %p81, %p82
      %p85 = scmp.ne.s32.totalorder %s68, %s84
      %p86 = scmp.eq.s32.totalorder %s46, 0
      %p87 = por %p85, %p86
      %s88 = ssub.s32 %s47, %s59
      %p89 = scmp.eq.s32.totalorder %s88, 0
      %s91 = sadd.s32 %s90, 1
      %s92 = scalar_select %p89, %s90, %s91
      %p95 = pneg %p89
      %p96 = scmp.eq.s32.totalorder %s40, 1
      %p97 = por %p95, %p96
      %p98 = scmp.ne.s32.totalorder %s90, %s93
      %p99 = scmp.eq.s32.totalorder %s40, 0
      %p100 = por %p98, %p99
      %p101 = scmp.ne.s32.totalorder %s90, %s93
      %p102 = scmp.eq.s32.totalorder %s45, 1
      %p103 = por %p101, %p102
      %p104 = scmp.ne.s32.totalorder %s93, %s94
      %p105 = scmp.eq.s32.totalorder %s45, 0
      %p106 = por %p104, %p105
      %p107 = scmp.ne.s32.totalorder %s93, %s94
      %p108 = scmp.eq.s32.totalorder %s46, 1
      %p109 = por %p107, %p108
      %p111 = scmp.ne.s32.totalorder %s94, %s110
      %p112 = scmp.eq.s32.totalorder %s46, 0
      %p113 = por %p111, %p112
      %s114 = ssub.s32 %s47, %s59
      %p115 = scmp.eq.s32.totalorder %s114, 0
      %s117 = sadd.s32 %s116, 1
      %s118 = scalar_select %p115, %s116, %s117
      %p121 = pneg %p115
      %p122 = scmp.eq.s32.totalorder %s40, 1
      %p123 = por %p121, %p122
      %p124 = scmp.ne.s32.totalorder %s116, %s119
      %p125 = scmp.eq.s32.totalorder %s40, 0
      %p126 = por %p124, %p125
      %p127 = scmp.ne.s32.totalorder %s116, %s119
      %p128 = scmp.eq.s32.totalorder %s45, 1
      %p129 = por %p127, %p128
      %p130 = scmp.ne.s32.totalorder %s119, %s120
      %p131 = scmp.eq.s32.totalorder %s45, 0
      %p132 = por %p130, %p131
      %p133 = scmp.ne.s32.totalorder %s119, %s120
      %p134 = scmp.eq.s32.totalorder %s46, 1
      %p135 = por %p133, %p134
      %p137 = scmp.ne.s32.totalorder %s120, %s136
      %p138 = scmp.eq.s32.totalorder %s46, 0
      %p139 = por %p137, %p138
      %s140 = ssub.s32 %s47, %s59
      %p141 = scmp.eq.s32.totalorder %s140, 0
      %s143 = sadd.s32 %s142, 1
      %s144 = scalar_select %p141, %s142, %s143
      %p147 = pneg %p141
      %p148 = scmp.eq.s32.totalorder %s40, 1
      %p149 = por %p147, %p148
      %p150 = scmp.ne.s32.totalorder %s142, %s145
      %p151 = scmp.eq.s32.totalorder %s40, 0
      %p152 = por %p150, %p151
      %p153 = scmp.ne.s32.totalorder %s142, %s145
      %p154 = scmp.eq.s32.totalorder %s45, 1
      %p155 = por %p153, %p154
      %p156 = scmp.ne.s32.totalorder %s145, %s146
      %p157 = scmp.eq.s32.totalorder %s45, 0
      %p158 = por %p156, %p157
      %p159 = scmp.ne.s32.totalorder %s145, %s146
      %p160 = scmp.eq.s32.totalorder %s46, 1
      %p161 = por %p159, %p160
      %p163 = scmp.ne.s32.totalorder %s146, %s162
      %p164 = scmp.eq.s32.totalorder %s46, 0
      %p165 = por %p163, %p164
      %s166 = ssub.s32 %s47, %s59
      %s167 = ssub.s32 %s48, %s55
      %s168 = sor.u32 %s166, %s167
      %p169 = scmp.eq.s32.totalorder %s168, 0
      %s171 = sadd.s32 %s170, 1
      %s172 = scalar_select %p169, %s170, %s171
      %p175 = pneg %p169
      %p176 = scmp.eq.s32.totalorder %s40, 1
      %p177 = por %p175, %p176
      %p178 = scmp.ne.s32.totalorder %s170, %s173
      %p179 = scmp.eq.s32.totalorder %s40, 0
      %p180 = por %p178, %p179
      %p181 = scmp.ne.s32.totalorder %s170, %s173
      %p182 = scmp.eq.s32.totalorder %s45, 1
      %p183 = por %p181, %p182
      %p184 = scmp.ne.s32.totalorder %s173, %s174
      %p185 = scmp.eq.s32.totalorder %s45, 0
      %p186 = por %p184, %p185
      %p187 = scmp.ne.s32.totalorder %s173, %s174
      %p188 = scmp.eq.s32.totalorder %s46, 1
      %p189 = por %p187, %p188
      %p191 = scmp.ne.s32.totalorder %s174, %s190
      %p192 = scmp.eq.s32.totalorder %s46, 0
      %p193 = por %p191, %p192
      %s195 = sadd.s32 %s194, 1
      %p198 = scmp.eq.s32.totalorder %s40, 1
      %p199 = scmp.ne.s32.totalorder %s194, %s196
      %p200 = scmp.eq.s32.totalorder %s40, 0
      %p201 = por %p199, %p200
      %p202 = scmp.ne.s32.totalorder %s194, %s196
      %p203 = scmp.eq.s32.totalorder %s45, 1
      %p204 = por %p202, %p203
      %p205 = scmp.ne.s32.totalorder %s196, %s197
      %p206 = scmp.eq.s32.totalorder %s45, 0
      %p207 = por %p205, %p206
      %p208 = scmp.ne.s32.totalorder %s196, %s197
      %p209 = scmp.eq.s32.totalorder %s46, 1
      %p210 = por %p208, %p209
      %p212 = scmp.ne.s32.totalorder %s197, %s211
      %p213 = scmp.eq.s32.totalorder %s46, 0
      %p214 = por %p212, %p213
      %s216 = sadd.s32 %s215, 1
      %p219 = scmp.eq.s32.totalorder %s40, 1
      %p220 = scmp.ne.s32.totalorder %s215, %s217
      %p221 = scmp.eq.s32.totalorder %s40, 0
      %p222 = por %p220, %p221
      %p223 = scmp.ne.s32.totalorder %s215, %s217
      %p224 = scmp.eq.s32.totalorder %s45, 1
      %p225 = por %p223, %p224
      %p226 = scmp.ne.s32.totalorder %s217, %s218
      %p227 = scmp.eq.s32.totalorder %s45, 0
      %p228 = por %p226, %p227
      %p229 = scmp.ne.s32.totalorder %s217, %s218
      %p230 = scmp.eq.s32.totalorder %s46, 1
      %p231 = por %p229, %p230
      %p233 = scmp.ne.s32.totalorder %s218, %s232
      %p234 = scmp.eq.s32.totalorder %s46, 0
      %p235 = por %p233, %p234
      %s237 = sadd.s32 %s236, 1
      %p240 = scmp.eq.s32.totalorder %s40, 1
      %p241 = scmp.ne.s32.totalorder %s236, %s238
      %p242 = scmp.eq.s32.totalorder %s40, 0
      %p243 = por %p241, %p242
      %p244 = scmp.ne.s32.totalorder %s236, %s238
      %p245 = scmp.eq.s32.totalorder %s45, 1
      %p246 = por %p244, %p245
      %p247 = scmp.ne.s32.totalorder %s238, %s239
      %p248 = scmp.eq.s32.totalorder %s45, 0
      %p249 = por %p247, %p248
      %p250 = scmp.ne.s32.totalorder %s238, %s239
      %p251 = scmp.eq.s32.totalorder %s46, 1
      %p252 = por %p250, %p251
      %p254 = scmp.ne.s32.totalorder %s239, %s253
      %p255 = scmp.eq.s32.totalorder %s46, 0
      %p256 = por %p254, %p255
      %s258 = sadd.s32 %s257, 1
      %p261 = scmp.eq.s32.totalorder %s40, 1
      %p262 = scmp.ne.s32.totalorder %s257, %s259
      %p263 = scmp.eq.s32.totalorder %s40, 0
      %p264 = por %p262, %p263
      %p265 = scmp.ne.s32.totalorder %s257, %s259
      %p266 = scmp.eq.s32.totalorder %s45, 1
      %p267 = por %p265, %p266
      %p268 = scmp.ne.s32.totalorder %s259, %s260
      %p269 = scmp.eq.s32.totalorder %s45, 0
      %p270 = por %p268, %p269
      %p271 = scmp.ne.s32.totalorder %s259, %s260
      %p272 = scmp.eq.s32.totalorder %s46, 1
      %p273 = por %p271, %p272
      %p275 = scmp.ne.s32.totalorder %s260, %s274
      %p276 = scmp.eq.s32.totalorder %s46, 0
      %p277 = por %p275, %p276
      %s279 = sadd.s32 %s278, 1
      %p282 = scmp.eq.s32.totalorder %s40, 1
      %p283 = scmp.ne.s32.totalorder %s278, %s280
      %p284 = scmp.eq.s32.totalorder %s40, 0
      %p285 = por %p283, %p284
      %p286 = scmp.ne.s32.totalorder %s278, %s280
      %p287 = scmp.eq.s32.totalorder %s45, 1
      %p288 = por %p286, %p287
      %p289 = scmp.ne.s32.totalorder %s280, %s281
      %p290 = scmp.eq.s32.totalorder %s45, 0
      %p291 = por %p289, %p290
      %p292 = scmp.ne.s32.totalorder %s280, %s281
      %p293 = scmp.eq.s32.totalorder %s46, 1
      %p294 = por %p292, %p293
      %p296 = scmp.ne.s32.totalorder %s281, %s295
      %p297 = scmp.eq.s32.totalorder %s46, 0
      %p298 = por %p296, %p297
      %s300 = sadd.s32 %s299, 1
      %p303 = scmp.eq.s32.totalorder %s40, 1
      %p304 = scmp.ne.s32.totalorder %s299, %s301
      %p305 = scmp.eq.s32.totalorder %s40, 0
      %p306 = por %p304, %p305
      %p307 = scmp.ne.s32.totalorder %s299, %s301
      %p308 = scmp.eq.s32.totalorder %s45, 1
      %p309 = por %p307, %p308
      %p310 = scmp.ne.s32.totalorder %s301, %s302
      %p311 = scmp.eq.s32.totalorder %s45, 0
      %p312 = por %p310, %p311
      %p313 = scmp.ne.s32.totalorder %s301, %s302
      %p314 = scmp.eq.s32.totalorder %s46, 1
      %p315 = por %p313, %p314
      %p317 = scmp.ne.s32.totalorder %s302, %s316
      %p318 = scmp.eq.s32.totalorder %s46, 0
      %p319 = por %p317, %p318
      %s321 = sadd.s32 %s320, 1
      %p324 = scmp.eq.s32.totalorder %s40, 1
      %p325 = scmp.ne.s32.totalorder %s320, %s322
      %p326 = scmp.eq.s32.totalorder %s40, 0
      %p327 = por %p325, %p326
      %p328 = scmp.ne.s32.totalorder %s320, %s322
      %p329 = scmp.eq.s32.totalorder %s45, 1
      %p330 = por %p328, %p329
      %p331 = scmp.ne.s32.totalorder %s322, %s323
      %p332 = scmp.eq.s32.totalorder %s45, 0
      %p333 = por %p331, %p332
      %p334 = scmp.ne.s32.totalorder %s322, %s323
      %p335 = scmp.eq.s32.totalorder %s46, 1
      %p336 = por %p334, %p335
      %p338 = scmp.ne.s32.totalorder %s323, %s337
      %p339 = scmp.eq.s32.totalorder %s46, 0
      %p340 = por %p338, %p339
      %s342 = sadd.s32 %s341, 1
      %p345 = scmp.eq.s32.totalorder %s40, 1
      %p346 = scmp.ne.s32.totalorder %s341, %s343
      %p347 = scmp.eq.s32.totalorder %s40, 0
      %p348 = por %p346, %p347
      %p349 = scmp.ne.s32.totalorder %s341, %s343
      %p350 = scmp.eq.s32.totalorder %s45, 1
      %p351 = por %p349, %p350
      %p352 = scmp.ne.s32.totalorder %s343, %s344
      %p353 = scmp.eq.s32.totalorder %s45, 0
      %p354 = por %p352, %p353
      %p355 = scmp.ne.s32.totalorder %s343, %s344
      %p356 = scmp.eq.s32.totalorder %s46, 1
      %p357 = por %p355, %p356
      %p359 = scmp.ne.s32.totalorder %s344, %s358
      %p360 = scmp.eq.s32.totalorder %s46, 0
      %p361 = por %p359, %p360
      %s363 = sadd.s32 %s362, 1
      %p366 = scmp.eq.s32.totalorder %s40, 1
      %p367 = scmp.ne.s32.totalorder %s362, %s364
      %p368 = scmp.eq.s32.totalorder %s40, 0
      %p369 = por %p367, %p368
      %p370 = scmp.ne.s32.totalorder %s362, %s364
      %p371 = scmp.eq.s32.totalorder %s45, 1
      %p372 = por %p370, %p371
      %p373 = scmp.ne.s32.totalorder %s364, %s365
      %p374 = scmp.eq.s32.totalorder %s45, 0
      %p375 = por %p373, %p374
      %p376 = scmp.ne.s32.totalorder %s364, %s365
      %p377 = scmp.eq.s32.totalorder %s46, 1
      %p378 = por %p376, %p377
      %p380 = scmp.ne.s32.totalorder %s365, %s379
      %p381 = scmp.eq.s32.totalorder %s46, 0
      %p382 = por %p380, %p381
      %s384 = sadd.s32 %s383, 1
      %p387 = scmp.eq.s32.totalorder %s40, 1
      %p388 = scmp.ne.s32.totalorder %s383, %s385
      %p389 = scmp.eq.s32.totalorder %s40, 0
      %p390 = por %p388, %p389
      %p391 = scmp.ne.s32.totalorder %s383, %s385
      %p392 = scmp.eq.s32.totalorder %s45, 1
      %p393 = por %p391, %p392
      %p394 = scmp.ne.s32.totalorder %s385, %s386
      %p395 = scmp.eq.s32.totalorder %s45, 0
      %p396 = por %p394, %p395
      %p397 = scmp.ne.s32.totalorder %s385, %s386
      %p398 = scmp.eq.s32.totalorder %s46, 1
      %p399 = por %p397, %p398
      %p401 = scmp.ne.s32.totalorder %s386, %s400
      %p402 = scmp.eq.s32.totalorder %s46, 0
      %p403 = por %p401, %p402
      %s404 = ssub.s32 %s47, %s59
      %s405 = ssub.s32 %s48, %s55
      %s406 = sor.u32 %s404, %s405
      %p407 = scmp.eq.s32.totalorder %s406, 0
      %s409 = sadd.s32 %s408, 1
      %s410 = scalar_select %p407, %s408, %s409
      %p413 = pneg %p407
      %p414 = scmp.eq.s32.totalorder %s40, 1
      %p415 = por %p413, %p414
      %p416 = scmp.ne.s32.totalorder %s408, %s411
      %p417 = scmp.eq.s32.totalorder %s40, 0
      %p418 = por %p416, %p417
      %p419 = scmp.ne.s32.totalorder %s408, %s411
      %p420 = scmp.eq.s32.totalorder %s45, 1
      %p421 = por %p419, %p420
      %p422 = scmp.ne.s32.totalorder %s411, %s412
      %p423 = scmp.eq.s32.totalorder %s45, 0
      %p424 = por %p422, %p423
      %p425 = scmp.ne.s32.totalorder %s411, %s412
      %p426 = scmp.eq.s32.totalorder %s46, 1
      %p427 = por %p425, %p426
      %p429 = scmp.ne.s32.totalorder %s412, %s428
      %p430 = scmp.eq.s32.totalorder %s46, 0
      %p431 = por %p429, %p430
      %s432 = ssub.s32 %s47, %s59
      %s433 = ssub.s32 %s48, %s55
      %s434 = sor.u32 %s432, %s433
      %p435 = scmp.eq.s32.totalorder %s434, 0
      %s437 = sadd.s32 %s436, 1
      %s438 = scalar_select %p435, %s436, %s437
      %p441 = pneg %p435
      %p442 = scmp.eq.s32.totalorder %s40, 1
      %p443 = por %p441, %p442
      %p444 = scmp.ne.s32.totalorder %s436, %s439
      %p445 = scmp.eq.s32.totalorder %s40, 0
      %p446 = por %p444, %p445
      %p447 = scmp.ne.s32.totalorder %s436, %s439
      %p448 = scmp.eq.s32.totalorder %s45, 1
      %p449 = por %p447, %p448
      %p450 = scmp.ne.s32.totalorder %s439, %s440
      %p451 = scmp.eq.s32.totalorder %s45, 0
      %p452 = por %p450, %p451
      %p453 = scmp.ne.s32.totalorder %s439, %s440
      %p454 = scmp.eq.s32.totalorder %s46, 1
      %p455 = por %p453, %p454
      %p457 = scmp.ne.s32.totalorder %s440, %s456
      %p458 = scmp.eq.s32.totalorder %s46, 0
      %p459 = por %p457, %p458
      %p460 = scmp.le.s32.totalorder 1, %s40
      %p461 = scmp.lt.s32.totalorder %s40, 3
      %p462 = pnand %p460, %p461
      %p463 = pneg %p462
      // Predicated region
      $region9: #{tpu_custom_call.1} parent=5 // pred_check
        _
      $region10: #{tpu_custom_call.1} parent=5 // pred_check_branch
        %465 = sbr.rel (%p462) target = $region12
      $region11: #{tpu_custom_call.1} parent=5 // pred_region
        %s466 = ssub.s32 %s40, 1
        // Predicated region
        $region13: #{tpu_custom_call.1} parent=11 // pred_check
          %p467 = pneg %p207
        $region14: #{tpu_custom_call.1} parent=11 // pred_check_branch
          %469 = sbr.rel (%p467) target = $region16
        $region15: #{tpu_custom_call.1} parent=11 // pred_region
          _
        $region16: #{tpu_custom_call.1} parent=11 // pred_fallthru
          _
        // Predicated region
        $region17: #{tpu_custom_call.1} parent=11 // pred_check
          %p470 = pneg %p228
        $region18: #{tpu_custom_call.1} parent=11 // pred_check_branch
          %472 = sbr.rel (%p470) target = $region20
        $region19: #{tpu_custom_call.1} parent=11 // pred_region
          _
        $region20: #{tpu_custom_call.1} parent=11 // pred_fallthru
          _
        // Predicated region
        $region21: #{tpu_custom_call.1} parent=11 // pred_check
          %p473 = pneg %p249
        $region22: #{tpu_custom_call.1} parent=11 // pred_check_branch
          %475 = sbr.rel (%p473) target = $region24
        $region23: #{tpu_custom_call.1} parent=11 // pred_region
          %s477 = ssub.s32 128, 128
          %478 = vsyncadd [#allocation12], %s477
          %s480 = sshll.u32 [#allocation11], 4
          %s481 = int_to_ptr.vmem [resolvable:$true] %s480
          %483 = dma.hbm_to_vmem [thread:$0]  %s7, 128, %s481, [#allocation12]
        $region24: #{tpu_custom_call.1} parent=11 // pred_fallthru
          _
        // Predicated region
        $region25: #{tpu_custom_call.1} parent=11 // pred_check
          %p484 = pneg %p270
        $region26: #{tpu_custom_call.1} parent=11 // pred_check_branch
          %486 = sbr.rel (%p484) target = $region28
        $region27: #{tpu_custom_call.1} parent=11 // pred_region
          %s488 = ssub.s32 16, 16
          %489 = vsyncadd [#allocation12], %s488
          %s491 = sshll.u32 [#allocation13], 4
          %s492 = int_to_ptr.vmem [resolvable:$true] %s491
          %494 = dma.hbm_to_vmem [thread:$0]  %s8, 16, %s492, [#allocation12]
        $region28: #{tpu_custom_call.1} parent=11 // pred_fallthru
          _
        // Predicated region
        $region29: #{tpu_custom_call.1} parent=11 // pred_check
          %p495 = pneg %p291
        $region30: #{tpu_custom_call.1} parent=11 // pred_check_branch
          %497 = sbr.rel (%p495) target = $region32
        $region31: #{tpu_custom_call.1} parent=11 // pred_region
          _
        $region32: #{tpu_custom_call.1} parent=11 // pred_fallthru
          _
        // Predicated region
        $region33: #{tpu_custom_call.1} parent=11 // pred_check
          %p498 = pneg %p312
        $region34: #{tpu_custom_call.1} parent=11 // pred_check_branch
          %500 = sbr.rel (%p498) target = $region36
        $region35: #{tpu_custom_call.1} parent=11 // pred_region
          %s502 = ssub.s32 16, 16
          %503 = vsyncadd [#allocation15], %s502
          %s505 = sshll.u32 [#allocation14], 4
          %s506 = int_to_ptr.vmem [resolvable:$true] %s505
          %508 = dma.hbm_to_vmem [thread:$0]  %s10, 16, %s506, [#allocation15]
        $region36: #{tpu_custom_call.1} parent=11 // pred_fallthru
          _
        // Predicated region
        $region37: #{tpu_custom_call.1} parent=11 // pred_check
          %p509 = pneg %p333
        $region38: #{tpu_custom_call.1} parent=11 // pred_check_branch
          %511 = sbr.rel (%p509) target = $region40
        $region39: #{tpu_custom_call.1} parent=11 // pred_region
          _
        $region40: #{tpu_custom_call.1} parent=11 // pred_fallthru
          _
        // Predicated region
        $region41: #{tpu_custom_call.1} parent=11 // pred_check
          %p512 = pneg %p354
        $region42: #{tpu_custom_call.1} parent=11 // pred_check_branch
          %514 = sbr.rel (%p512) target = $region44
        $region43: #{tpu_custom_call.1} parent=11 // pred_region
          _
        $region44: #{tpu_custom_call.1} parent=11 // pred_fallthru
          _
        // Predicated region
        $region45: #{tpu_custom_call.1} parent=11 // pred_check
          %p515 = pneg %p375
        $region46: #{tpu_custom_call.1} parent=11 // pred_check_branch
          %517 = sbr.rel (%p515) target = $region48
        $region47: #{tpu_custom_call.1} parent=11 // pred_region
          _
        $region48: #{tpu_custom_call.1} parent=11 // pred_fallthru
          _
        // Predicated region
        $region49: #{tpu_custom_call.1} parent=11 // pred_check
          %p518 = pneg %p396
        $region50: #{tpu_custom_call.1} parent=11 // pred_check_branch
          %520 = sbr.rel (%p518) target = $region52
        $region51: #{tpu_custom_call.1} parent=11 // pred_region
          _
        $region52: #{tpu_custom_call.1} parent=11 // pred_fallthru
          _
      $region12: #{tpu_custom_call.1} parent=5 // pred_fallthru
        _
      %p521 = scmp.lt.s32.totalorder %s40, 2
      // Predicated region
      $region53: #{tpu_custom_call.1} parent=5 // pred_check
        %p522 = pneg %p521
      $region54: #{tpu_custom_call.1} parent=5 // pred_check_branch
        %524 = sbr.rel (%p522) target = $region56
      $region55: #{tpu_custom_call.1} parent=5 // pred_region
        // Predicated region
        $region57: #{tpu_custom_call.1} parent=55 // pred_check
          %p525 = pneg %p74
        $region58: #{tpu_custom_call.1} parent=55 // pred_check_branch
          %527 = sbr.rel (%p525) target = $region60
        $region59: #{tpu_custom_call.1} parent=55 // pred_region
          %s528 = sand.u32 %s64, 1
          %s529 = scalar_lea.sflag [#allocation3], %s528
          %s530 = sand.u32 %s64, 1
          %s531 = smul.addr %s530, 8
          %s532 = scalar_lea.vmem [#allocation2], %s531
          %s534 = ssub.s32 128, 128
          %535 = vsyncadd %s529, %s534
          %s536 = sadd.s32 %s48, %s47
          %s537 = smul.addr %s536, 128
          %s538 = scalar_lea.hbm %s0, %s537
          %s540 = sshll.u32 %s532, 4
          %s541 = int_to_ptr.vmem [resolvable:$true] %s540
          %543 = dma.hbm_to_vmem [thread:$0]  %s538, 128, %s541, %s529
        $region60: #{tpu_custom_call.1} parent=55 // pred_fallthru
          _
        // Predicated region
        $region61: #{tpu_custom_call.1} parent=55 // pred_check
          %p544 = pneg %p100
        $region62: #{tpu_custom_call.1} parent=55 // pred_check_branch
          %546 = sbr.rel (%p544) target = $region64
        $region63: #{tpu_custom_call.1} parent=55 // pred_region
          %s547 = sand.u32 %s40, 1
          %s548 = scalar_lea.sflag [#allocation6], %s547
          %s549 = sand.u32 %s90, 1
          %s550 = smul.addr %s549, 8
          %s551 = scalar_lea.vmem [#allocation5], %s550
          %s553 = ssub.s32 128, 128
          %554 = vsyncadd %s548, %s553
          %s555 = smul.addr %s47, 128
          %s556 = scalar_lea.hbm %s1, %s555
          %s558 = sshll.u32 %s551, 4
          %s559 = int_to_ptr.vmem [resolvable:$true] %s558
          %561 = dma.hbm_to_vmem [thread:$0]  %s556, 128, %s559, %s548
        $region64: #{tpu_custom_call.1} parent=55 // pred_fallthru
          _
        // Predicated region
        $region65: #{tpu_custom_call.1} parent=55 // pred_check
          %p562 = pneg %p126
        $region66: #{tpu_custom_call.1} parent=55 // pred_check_branch
          %564 = sbr.rel (%p562) target = $region68
        $region67: #{tpu_custom_call.1} parent=55 // pred_region
          %s565 = sand.u32 %s40, 1
          %s566 = scalar_lea.sflag [#allocation6], %s565
          %s567 = sand.u32 %s116, 1
          %s568 = smul.addr %s567, 8
          %s569 = scalar_lea.vmem [#allocation7], %s568
          %s571 = ssub.s32 128, 128
          %572 = vsyncadd %s566, %s571
          %s573 = smul.addr %s47, 128
          %s574 = scalar_lea.hbm %s2, %s573
          %s576 = sshll.u32 %s569, 4
          %s577 = int_to_ptr.vmem [resolvable:$true] %s576
          %579 = dma.hbm_to_vmem [thread:$0]  %s574, 128, %s577, %s566
        $region68: #{tpu_custom_call.1} parent=55 // pred_fallthru
          _
        // Predicated region
        $region69: #{tpu_custom_call.1} parent=55 // pred_check
          %p580 = pneg %p152
        $region70: #{tpu_custom_call.1} parent=55 // pred_check_branch
          %582 = sbr.rel (%p580) target = $region72
        $region71: #{tpu_custom_call.1} parent=55 // pred_region
          %s583 = sand.u32 %s40, 1
          %s584 = scalar_lea.sflag [#allocation9], %s583
          %s585 = sand.u32 %s142, 1
          %s586 = scalar_lea.vmem [#allocation8], %s585
          %s588 = ssub.s32 16, 16
          %589 = vsyncadd %s584, %s588
          %s590 = smul.addr %s47, 16
          %s591 = scalar_lea.hbm %s3, %s590
          %s593 = sshll.u32 %s586, 4
          %s594 = int_to_ptr.vmem [resolvable:$true] %s593
          %596 = dma.hbm_to_vmem [thread:$0]  %s591, 16, %s594, %s584
        $region72: #{tpu_custom_call.1} parent=55 // pred_fallthru
          _
        // Predicated region
        $region73: #{tpu_custom_call.1} parent=55 // pred_check
          %p597 = pneg %p180
        $region74: #{tpu_custom_call.1} parent=55 // pred_check_branch
          %599 = sbr.rel (%p597) target = $region76
        $region75: #{tpu_custom_call.1} parent=55 // pred_region
          %s600 = sand.u32 %s40, 1
          %s601 = scalar_lea.sflag [#allocation9], %s600
          %s602 = sand.u32 %s170, 1
          %s603 = smul.addr %s602, 64
          %s604 = scalar_lea.vmem [#allocation10], %s603
          %s605 = smul.u32 8, %s48
          %s607 = ssub.s32 1024, 1024
          %608 = vsyncadd %s601, %s607
          %s609 = smul.addr %s47, 8
          %s610 = sadd.s32 %s605, %s609
          %s611 = smul.addr %s610, 128
          %s612 = scalar_lea.hbm %s4, %s611
          %s613 = sshll.u32 %s604, 4
          %s614 = int_to_ptr.vmem [resolvable:$true] %s613
          %619 = dma.hbm_to_vmem [thread:$0]  %s612, 1024, %s614, %s601, 128, 128, 8
        $region76: #{tpu_custom_call.1} parent=55 // pred_fallthru
          _
      $region56: #{tpu_custom_call.1} parent=5 // pred_fallthru
        _
      %p620 = scmp.le.s32.totalorder 1, %s40
      %p621 = scmp.lt.s32.totalorder %s40, 3
      %p622 = pnand %p620, %p621
      %p623 = pneg %p622
      // Predicated region
      $region77: #{tpu_custom_call.1} parent=5 // pred_check
        _
      $region78: #{tpu_custom_call.1} parent=5 // pred_check_branch
        %625 = sbr.rel (%p622) target = $region80
      $region79: #{tpu_custom_call.1} parent=5 // pred_region
        %s626 = ssub.s32 %s40, 1
        %s627 = sand.u32 %s67, 1
        %s628 = scalar_lea.sflag [#allocation3], %s627
        %s629 = sand.u32 %s67, 1
        %s630 = smul.addr %s629, 8
        %s631 = scalar_lea.vmem [#allocation2], %s630
        // Predicated region
        $region81: #{tpu_custom_call.1} parent=79 // pred_check
          %p632 = pneg %p80
        $region82: #{tpu_custom_call.1} parent=79 // pred_check_branch
          %634 = sbr.rel (%p632) target = $region84
        $region83: #{tpu_custom_call.1} parent=79 // pred_region
          %635 = dma.done %s628, 128
        $region84: #{tpu_custom_call.1} parent=79 // pred_fallthru
          _
        %s636 = sand.u32 %s45, 1
        %s637 = scalar_lea.sflag [#allocation6], %s636
        %s638 = sand.u32 %s93, 1
        %s639 = smul.addr %s638, 8
        %s640 = scalar_lea.vmem [#allocation5], %s639
        // Predicated region
        $region85: #{tpu_custom_call.1} parent=79 // pred_check
          %p641 = pneg %p106
        $region86: #{tpu_custom_call.1} parent=79 // pred_check_branch
          %643 = sbr.rel (%p641) target = $region88
        $region87: #{tpu_custom_call.1} parent=79 // pred_region
          %644 = dma.done %s637, 128
        $region88: #{tpu_custom_call.1} parent=79 // pred_fallthru
          _
        %s645 = sand.u32 %s45, 1
        %s646 = scalar_lea.sflag [#allocation6], %s645
        %s647 = sand.u32 %s119, 1
        %s648 = smul.addr %s647, 8
        %s649 = scalar_lea.vmem [#allocation7], %s648
        // Predicated region
        $region89: #{tpu_custom_call.1} parent=79 // pred_check
          %p650 = pneg %p132
        $region90: #{tpu_custom_call.1} parent=79 // pred_check_branch
          %652 = sbr.rel (%p650) target = $region92
        $region91: #{tpu_custom_call.1} parent=79 // pred_region
          %653 = dma.done %s646, 128
        $region92: #{tpu_custom_call.1} parent=79 // pred_fallthru
          _
        %s654 = sand.u32 %s45, 1
        %s655 = scalar_lea.sflag [#allocation9], %s654
        %s656 = sand.u32 %s145, 1
        %s657 = scalar_lea.vmem [#allocation8], %s656
        // Predicated region
        $region93: #{tpu_custom_call.1} parent=79 // pred_check
          %p658 = pneg %p158
        $region94: #{tpu_custom_call.1} parent=79 // pred_check_branch
          %660 = sbr.rel (%p658) target = $region96
        $region95: #{tpu_custom_call.1} parent=79 // pred_region
          %661 = dma.done %s655, 16
        $region96: #{tpu_custom_call.1} parent=79 // pred_fallthru
          _
        %s662 = sand.u32 %s45, 1
        %s663 = scalar_lea.sflag [#allocation9], %s662
        %s664 = sand.u32 %s173, 1
        %s665 = smul.addr %s664, 64
        %s666 = scalar_lea.vmem [#allocation10], %s665
        // Predicated region
        $region97: #{tpu_custom_call.1} parent=79 // pred_check
          %p667 = pneg %p186
        $region98: #{tpu_custom_call.1} parent=79 // pred_check_branch
          %669 = sbr.rel (%p667) target = $region100
        $region99: #{tpu_custom_call.1} parent=79 // pred_region
          %670 = dma.done %s663, 1024
        $region100: #{tpu_custom_call.1} parent=79 // pred_fallthru
          _
        // Predicated region
        $region101: #{tpu_custom_call.1} parent=79 // pred_check
          %p671 = pneg %p249
        $region102: #{tpu_custom_call.1} parent=79 // pred_check_branch
          %673 = sbr.rel (%p671) target = $region104
        $region103: #{tpu_custom_call.1} parent=79 // pred_region
          %674 = dma.done [#allocation12], 128
        $region104: #{tpu_custom_call.1} parent=79 // pred_fallthru
          _
        // Predicated region
        $region105: #{tpu_custom_call.1} parent=79 // pred_check
          %p675 = pneg %p270
        $region106: #{tpu_custom_call.1} parent=79 // pred_check_branch
          %677 = sbr.rel (%p675) target = $region108
        $region107: #{tpu_custom_call.1} parent=79 // pred_region
          %678 = dma.done [#allocation12], 16
        $region108: #{tpu_custom_call.1} parent=79 // pred_fallthru
          _
        // Predicated region
        $region109: #{tpu_custom_call.1} parent=79 // pred_check
          %p679 = pneg %p312
        $region110: #{tpu_custom_call.1} parent=79 // pred_check_branch
          %681 = sbr.rel (%p679) target = $region112
        $region111: #{tpu_custom_call.1} parent=79 // pred_region
          %682 = dma.done [#allocation15], 16
        $region112: #{tpu_custom_call.1} parent=79 // pred_fallthru
          _
        %s683 = sand.u32 %s67, 1
        %s684 = scalar_lea.sflag [#allocation3], %s683
        %s685 = sand.u32 %s67, 1
        %s686 = smul.addr %s685, 8
        %s687 = scalar_lea.vmem [#allocation2], %s686
        %p688 = pneg %p80
        %p689 = pneg %p77
        %s690 = sand.u32 %s45, 1
        %s691 = scalar_lea.sflag [#allocation6], %s690
        %s692 = sand.u32 %s93, 1
        %s693 = smul.addr %s692, 8
        %s694 = scalar_lea.vmem [#allocation5], %s693
        %p695 = pneg %p106
        %p696 = pneg %p103
        %s697 = sand.u32 %s45, 1
        %s698 = scalar_lea.sflag [#allocation6], %s697
        %s699 = sand.u32 %s119, 1
        %s700 = smul.addr %s699, 8
        %s701 = scalar_lea.vmem [#allocation7], %s700
        %p702 = pneg %p132
        %p703 = pneg %p129
        %s704 = sand.u32 %s45, 1
        %s705 = scalar_lea.sflag [#allocation9], %s704
        %s706 = sand.u32 %s145, 1
        %s707 = scalar_lea.vmem [#allocation8], %s706
        %p708 = pneg %p158
        %p709 = pneg %p155
        %s710 = sand.u32 %s45, 1
        %s711 = scalar_lea.sflag [#allocation9], %s710
        %s712 = sand.u32 %s173, 1
        %s713 = smul.addr %s712, 64
        %s714 = scalar_lea.vmem [#allocation10], %s713
        %p715 = pneg %p186
        %p716 = pneg %p183
        %p717 = pneg %p207
        %p718 = pneg %p204
        %p719 = pneg %p228
        %p720 = pneg %p225
        %p721 = pneg %p249
        %p722 = pneg %p246
        %p723 = pneg %p270
        %p724 = pneg %p267
        %p725 = pneg %p291
        %p726 = pneg %p288
        %p727 = pneg %p312
        %p728 = pneg %p309
        %p729 = pneg %p333
        %p730 = pneg %p330
        %p731 = pneg %p354
        %p732 = pneg %p351
        %p733 = pneg %p375
        %p734 = pneg %p372
        %p735 = pneg %p396
        %p736 = pneg %p393
        %p737 = pneg %p424
        %p738 = pneg %p421
        %s739 = sand.u32 %s411, 1
        %s740 = scalar_lea.sflag [#allocation4], %s739
        %s741 = sand.u32 %s411, 1
        %s742 = smul.addr %s741, 8
        %s743 = scalar_lea.vmem [#allocation16], %s742
        %p744 = pneg %p452
        %p745 = pneg %p449
        %s746 = sand.u32 %s439, 1
        %s747 = scalar_lea.sflag [#allocation18], %s746
        %s748 = sand.u32 %s439, 1
        %s749 = smul.addr %s748, 32
        %s750 = scalar_lea.vmem [#allocation17], %s749
        %s751 = smul.u32 8, %s50
        %v752 = vld [vmem:[%s631] sm:$0xff]
        %v753 = vld [vmem:[%s640] sm:$0xff]
        %v754 = vld [vmem:[%s649] sm:$0xff]
        %v755 = vld [vmem:[%s657] sm:$0x1]
        %v756 = vld [vmem:[%s666] sm:$0xff]
        %v757 = vld [vmem:[%s666 + $0x8] sm:$0xff]
        %v758 = vld [vmem:[%s666 + $0x10] sm:$0xff]
        %v759 = vld [vmem:[%s666 + $0x18] sm:$0xff]
        %v760 = vld [vmem:[%s666 + $0x20] sm:$0xff]
        %v761 = vld [vmem:[%s666 + $0x28] sm:$0xff]
        %v762 = vld [vmem:[%s666 + $0x30] sm:$0xff]
        %v763 = vld [vmem:[%s666 + $0x38] sm:$0xff]
        %v764 = vld [vmem:[%s5] sm:$0xff]
        %v765 = vld [vmem:[%s5 + $0x8] sm:$0xff]
        %v766 = vld [vmem:[%s5 + $0x10] sm:$0xff]
        %v767 = vld [vmem:[%s5 + $0x18] sm:$0xff]
        %v768 = vld [vmem:[%s6] sm:$0x1]
        %v770 = vlaneseq
        %v771 = vshrl.u32 %v770, 7
        %v772 = vsub.s32 0, %v771
        %v773 = vrot.slane %v768, %v772
        %vm775 = vcmask 261120
        %v777 = vsel %vm775, %v752, 0
        %779 = vmatprep.subr.mxu0 0.0
        %780 = vmatpush1.msra.mxu0 %v764
        %781 = vmatprep.subr.mxu0 0.0
        %782 = vmatpush1.msra.mxu0 %v765
        %783 = vmatprep.subr.mxu0 0.0
        %784 = vmatpush1.msra.mxu0 %v766
        %785 = vmatprep.subr.mxu0 0.0
        %786 = vmatpush1.msra.mxu0 %v767
        %787 = vmatprep.subr.mxu0 0.0
        %788 = vmatpush1.msra.mxu0 0.0
        %789 = vmatprep.subr.mxu0 0.0
        %790 = vmatpush1.msra.mxu0 0.0
        %791 = vmatprep.subr.mxu0 0.0
        %792 = vmatpush1.msra.mxu0 0.0
        %793 = vmatprep.subr.mxu0 0.0
        %794 = vmatpush1.msra.mxu0 0.0
        %795 = vmatprep.subr.mxu0 0.0
        %796 = vmatpush1.msra.mxu0 0.0
        %797 = vmatprep.subr.mxu0 0.0
        %798 = vmatpush1.msra.mxu0 0.0
        %799 = vmatprep.subr.mxu0 0.0
        %800 = vmatpush1.msra.mxu0 0.0
        %801 = vmatprep.subr.mxu0 0.0
        %802 = vmatpush1.msra.mxu0 0.0
        %803 = vmatprep.subr.mxu0 0.0
        %804 = vmatpush1.msra.mxu0 0.0
        %805 = vmatprep.subr.mxu0 0.0
        %806 = vmatpush1.msra.mxu0 0.0
        %807 = vmatprep.subr.mxu0 0.0
        %808 = vmatpush1.msra.mxu0 0.0
        %809 = vmatprep.subr.mxu0 0.0
        %810 = vmatpush1.msra.mxu0 0.0
        %811 = vmatprep.subr.mxu0 0.0
        %812 = vmatpush1.msra.mxu0 0.0
        %813 = vmatprep.subr.mxu0 0.0
        %814 = vmatpush1.msra.mxu0 0.0
        %815 = vmatprep.subr.mxu0 0.0
        %816 = vmatpush1.msra.mxu0 0.0
        %817 = vmatprep.subr.mxu0 0.0
        %818 = vmatpush1.msra.mxu0 0.0
        %819 = vmatprep.subr.mxu0 0.0
        %820 = vmatpush1.msra.mxu0 0.0
        %821 = vmatprep.subr.mxu0 0.0
        %822 = vmatpush1.msra.mxu0 0.0
        %823 = vmatprep.subr.mxu0 0.0
        %824 = vmatpush1.msra.mxu0 0.0
        %825 = vmatprep.subr.mxu0 0.0
        %826 = vmatpush1.msra.mxu0 0.0
        %827 = vmatprep.subr.mxu0 0.0
        %828 = vmatpush1.msra.mxu0 0.0
        %829 = vmatprep.subr.mxu0 0.0
        %830 = vmatpush1.msra.mxu0 0.0
        %831 = vmatprep.subr.mxu0 0.0
        %832 = vmatpush1.msra.mxu0 0.0
        %833 = vmatprep.subr.mxu0 0.0
        %834 = vmatpush1.msra.mxu0 0.0
        %835 = vmatprep.subr.mxu0 0.0
        %836 = vmatpush1.msra.mxu0 0.0
        %837 = vmatprep.subr.mxu0 0.0
        %838 = vmatpush1.msra.mxu0 0.0
        %839 = vmatprep.subr.mxu0 0.0
        %840 = vmatpush1.msra.mxu0 0.0
        %841 = vmatprep.subr.mxu0 0.0
        %842 = vmatpush1.msra.mxu0 0.0
        %843 = vmatprep.mubr.f32.mxu0 0.0
        %844 = vmatmul.mubr.f32.gmra.mrb[0].mxu0 %v777
        %v845 = vpop.f32.mrb[0].mxu0
        %v846 = vadd.f32 %v773, %v845
        %v847 = vpop.f32.mrb[0].mxu0
        %848 = vdwg.mxu0
        %v849 = vmul.f32 %v846, 0.35355338
        %851 = vrot.lane.b32.xlu0 %v849, 120
        %v852 = vpop.permute.xlu0 %851
        %854 = vrot.lane.b32.xlu0 %v849, 112
        %v855 = vpop.permute.xlu0 %854
        %857 = vrot.lane.b32.xlu0 %v849, 104
        %v858 = vpop.permute.xlu0 %857
        %v860 = vcombine.low %v849, %v855
        %v861 = vcombine.high %v849, %v855
        %v863 = vunpack.c.l.s4 1983009808
        %v864 = vunpack.c.0.s8 %v863
        %v865 = vlaneseq
        %v866 = vshrl.u32 %v865, 7
        %v867 = vsub.s32 %v864, %v866
        %v868 = vrot.slane %v860, %v867
        %v870 = vunpack.c.l.s4 1983009808
        %v871 = vunpack.c.0.s8 %v870
        %v872 = vlaneseq
        %v873 = vshrl.u32 %v872, 7
        %v874 = vsub.s32 %v871, %v873
        %v875 = vrot.slane %v861, %v874
        %v876 = vcombine.low %v852, %v858
        %v877 = vcombine.high %v852, %v858
        %v879 = vunpack.c.l.s4 1983009808
        %v880 = vunpack.c.0.s8 %v879
        %v881 = vlaneseq
        %v882 = vshrl.u32 %v881, 7
        %v883 = vsub.s32 %v880, %v882
        %v884 = vrot.slane %v876, %v883
        %v886 = vunpack.c.l.s4 1983009808
        %v887 = vunpack.c.0.s8 %v886
        %v888 = vlaneseq
        %v889 = vshrl.u32 %v888, 7
        %v890 = vsub.s32 %v887, %v889
        %v891 = vrot.slane %v877, %v890
        %v892 = vcombine.low %v868, %v884
        %v893 = vcombine.high %v868, %v884
        %v895 = vunpack.c.l.s4 1934713408
        %v896 = vunpack.c.0.s8 %v895
        %v897 = vlaneseq
        %v898 = vshrl.u32 %v897, 7
        %v899 = vsub.s32 %v896, %v898
        %v900 = vrot.slane %v892, %v899
        %v902 = vunpack.c.l.s4 1934713408
        %v903 = vunpack.c.0.s8 %v902
        %v904 = vlaneseq
        %v905 = vshrl.u32 %v904, 7
        %v906 = vsub.s32 %v903, %v905
        %v907 = vrot.slane %v893, %v906
        %v908 = vcombine.low %v875, %v891
        %v909 = vcombine.high %v875, %v891
        %v911 = vunpack.c.l.s4 1934713408
        %v912 = vunpack.c.0.s8 %v911
        %v913 = vlaneseq
        %v914 = vshrl.u32 %v913, 7
        %v915 = vsub.s32 %v912, %v914
        %v916 = vrot.slane %v908, %v915
        %v918 = vunpack.c.l.s4 1934713408
        %v919 = vunpack.c.0.s8 %v918
        %v920 = vlaneseq
        %v921 = vshrl.u32 %v920, 7
        %v922 = vsub.s32 %v919, %v921
        %v923 = vrot.slane %v909, %v922
        %v924 = vcombine.high %v900, 0.0
        %v925 = vcombine.high %v907, 0.0
        %v926 = vcombine.high %v916, 0.0
        %v927 = vcombine.high %v923, 0.0
        %929 = vrot.lane.b32.xlu0 %v753, 120
        %v930 = vpop.permute.xlu0 %929
        %932 = vrot.lane.b32.xlu0 %v753, 112
        %v933 = vpop.permute.xlu0 %932
        %935 = vrot.lane.b32.xlu0 %v753, 104
        %v936 = vpop.permute.xlu0 %935
        %v938 = vcombine.low %v753, %v933
        %v939 = vcombine.high %v753, %v933
        %v941 = vunpack.c.l.s4 1983009808
        %v942 = vunpack.c.0.s8 %v941
        %v943 = vlaneseq
        %v944 = vshrl.u32 %v943, 7
        %v945 = vsub.s32 %v942, %v944
        %v946 = vrot.slane %v938, %v945
        %v948 = vunpack.c.l.s4 1983009808
        %v949 = vunpack.c.0.s8 %v948
        %v950 = vlaneseq
        %v951 = vshrl.u32 %v950, 7
        %v952 = vsub.s32 %v949, %v951
        %v953 = vrot.slane %v939, %v952
        %v954 = vcombine.low %v930, %v936
        %v955 = vcombine.high %v930, %v936
        %v957 = vunpack.c.l.s4 1983009808
        %v958 = vunpack.c.0.s8 %v957
        %v959 = vlaneseq
        %v960 = vshrl.u32 %v959, 7
        %v961 = vsub.s32 %v958, %v960
        %v962 = vrot.slane %v954, %v961
        %v964 = vunpack.c.l.s4 1983009808
        %v965 = vunpack.c.0.s8 %v964
        %v966 = vlaneseq
        %v967 = vshrl.u32 %v966, 7
        %v968 = vsub.s32 %v965, %v967
        %v969 = vrot.slane %v955, %v968
        %v970 = vcombine.low %v946, %v962
        %v971 = vcombine.high %v946, %v962
        %v973 = vunpack.c.l.s4 1934713408
        %v974 = vunpack.c.0.s8 %v973
        %v975 = vlaneseq
        %v976 = vshrl.u32 %v975, 7
        %v977 = vsub.s32 %v974, %v976
        %v978 = vrot.slane %v970, %v977
        %v980 = vunpack.c.l.s4 1934713408
        %v981 = vunpack.c.0.s8 %v980
        %v982 = vlaneseq
        %v983 = vshrl.u32 %v982, 7
        %v984 = vsub.s32 %v981, %v983
        %v985 = vrot.slane %v971, %v984
        %v986 = vcombine.low %v953, %v969
        %v987 = vcombine.high %v953, %v969
        %v989 = vunpack.c.l.s4 1934713408
        %v990 = vunpack.c.0.s8 %v989
        %v991 = vlaneseq
        %v992 = vshrl.u32 %v991, 7
        %v993 = vsub.s32 %v990, %v992
        %v994 = vrot.slane %v986, %v993
        %v996 = vunpack.c.l.s4 1934713408
        %v997 = vunpack.c.0.s8 %v996
        %v998 = vlaneseq
        %v999 = vshrl.u32 %v998, 7
        %v1000 = vsub.s32 %v997, %v999
        %v1001 = vrot.slane %v987, %v1000
        %v1002 = vcombine.high %v978, 0.0
        %v1003 = vcombine.high %v985, 0.0
        %v1004 = vcombine.high %v994, 0.0
        %v1005 = vcombine.high %v1001, 0.0
        %1007 = vrot.lane.b32.xlu0 %v754, 120
        %v1008 = vpop.permute.xlu0 %1007
        %1010 = vrot.lane.b32.xlu0 %v754, 112
        %v1011 = vpop.permute.xlu0 %1010
        %1013 = vrot.lane.b32.xlu0 %v754, 104
        %v1014 = vpop.permute.xlu0 %1013
        %v1016 = vcombine.low %v754, %v1011
        %v1017 = vcombine.high %v754, %v1011
        %v1019 = vunpack.c.l.s4 1983009808
        %v1020 = vunpack.c.0.s8 %v1019
        %v1021 = vlaneseq
        %v1022 = vshrl.u32 %v1021, 7
        %v1023 = vsub.s32 %v1020, %v1022
        %v1024 = vrot.slane %v1016, %v1023
        %v1026 = vunpack.c.l.s4 1983009808
        %v1027 = vunpack.c.0.s8 %v1026
        %v1028 = vlaneseq
        %v1029 = vshrl.u32 %v1028, 7
        %v1030 = vsub.s32 %v1027, %v1029
        %v1031 = vrot.slane %v1017, %v1030
        %v1032 = vcombine.low %v1008, %v1014
        %v1033 = vcombine.high %v1008, %v1014
        %v1035 = vunpack.c.l.s4 1983009808
        %v1036 = vunpack.c.0.s8 %v1035
        %v1037 = vlaneseq
        %v1038 = vshrl.u32 %v1037, 7
        %v1039 = vsub.s32 %v1036, %v1038
        %v1040 = vrot.slane %v1032, %v1039
        %v1042 = vunpack.c.l.s4 1983009808
        %v1043 = vunpack.c.0.s8 %v1042
        %v1044 = vlaneseq
        %v1045 = vshrl.u32 %v1044, 7
        %v1046 = vsub.s32 %v1043, %v1045
        %v1047 = vrot.slane %v1033, %v1046
        %v1048 = vcombine.low %v1024, %v1040
        %v1049 = vcombine.high %v1024, %v1040
        %v1051 = vunpack.c.l.s4 1934713408
        %v1052 = vunpack.c.0.s8 %v1051
        %v1053 = vlaneseq
        %v1054 = vshrl.u32 %v1053, 7
        %v1055 = vsub.s32 %v1052, %v1054
        %v1056 = vrot.slane %v1048, %v1055
        %v1058 = vunpack.c.l.s4 1934713408
        %v1059 = vunpack.c.0.s8 %v1058
        %v1060 = vlaneseq
        %v1061 = vshrl.u32 %v1060, 7
        %v1062 = vsub.s32 %v1059, %v1061
        %v1063 = vrot.slane %v1049, %v1062
        %v1064 = vcombine.low %v1031, %v1047
        %v1065 = vcombine.high %v1031, %v1047
        %v1067 = vunpack.c.l.s4 1934713408
        %v1068 = vunpack.c.0.s8 %v1067
        %v1069 = vlaneseq
        %v1070 = vshrl.u32 %v1069, 7
        %v1071 = vsub.s32 %v1068, %v1070
        %v1072 = vrot.slane %v1064, %v1071
        %v1074 = vunpack.c.l.s4 1934713408
        %v1075 = vunpack.c.0.s8 %v1074
        %v1076 = vlaneseq
        %v1077 = vshrl.u32 %v1076, 7
        %v1078 = vsub.s32 %v1075, %v1077
        %v1079 = vrot.slane %v1065, %v1078
        %v1080 = vcombine.high %v1056, 0.0
        %v1081 = vcombine.high %v1063, 0.0
        %v1082 = vcombine.high %v1072, 0.0
        %v1083 = vcombine.high %v1079, 0.0
        %vm1084 = vcmask 130048
        %v1085 = vsel %vm1084, %v756, 0.0
        %1086 = vadd.xlane.f32.xlu0 %v1085
        %v1087 = vpop.xlane.xlu0 %1086
        %v1088 = vsel %vm1084, %v757, 0.0
        %1089 = vadd.xlane.f32.xlu0 %v1088
        %v1090 = vpop.xlane.xlu0 %1089
        %v1091 = vsel %vm1084, %v758, 0.0
        %1092 = vadd.xlane.f32.xlu0 %v1091
        %v1093 = vpop.xlane.xlu0 %1092
        %v1094 = vsel %vm1084, %v759, 0.0
        %1095 = vadd.xlane.f32.xlu0 %v1094
        %v1096 = vpop.xlane.xlu0 %1095
        %v1097 = vsel %vm1084, %v760, 0.0
        %1098 = vadd.xlane.f32.xlu0 %v1097
        %v1099 = vpop.xlane.xlu0 %1098
        %v1100 = vsel %vm1084, %v761, 0.0
        %1101 = vadd.xlane.f32.xlu0 %v1100
        %v1102 = vpop.xlane.xlu0 %1101
        %v1103 = vsel %vm1084, %v762, 0.0
        %1104 = vadd.xlane.f32.xlu0 %v1103
        %v1105 = vpop.xlane.xlu0 %1104
        %v1106 = vsel %vm1084, %v763, 0.0
        %1107 = vadd.xlane.f32.xlu0 %v1106
        %v1108 = vpop.xlane.xlu0 %1107
        %v1109 = vrcp.pop 16.0
        %v1110 = vmul.f32 %v1087, %v1109
        %v1111 = vmul.f32 %v1090, %v1109
        %v1112 = vmul.f32 %v1093, %v1109
        %v1113 = vmul.f32 %v1096, %v1109
        %v1114 = vmul.f32 %v1099, %v1109
        %v1115 = vmul.f32 %v1102, %v1109
        %v1116 = vmul.f32 %v1105, %v1109
        %v1117 = vmul.f32 %v1108, %v1109
        %v1118 = vsub.f32 %v756, %v1110
        %v1119 = vsub.f32 %v757, %v1111
        %v1120 = vsub.f32 %v758, %v1112
        %v1121 = vsub.f32 %v759, %v1113
        %v1122 = vsub.f32 %v760, %v1114
        %v1123 = vsub.f32 %v761, %v1115
        %v1124 = vsub.f32 %v762, %v1116
        %v1125 = vsub.f32 %v763, %v1117
        %v1126 = vmul.f32 %v1118, %v1118
        %v1127 = vmul.f32 %v1119, %v1119
        %v1128 = vmul.f32 %v1120, %v1120
        %v1129 = vmul.f32 %v1121, %v1121
        %v1130 = vmul.f32 %v1122, %v1122
        %v1131 = vmul.f32 %v1123, %v1123
        %v1132 = vmul.f32 %v1124, %v1124
        %v1133 = vmul.f32 %v1125, %v1125
        %v1134 = vsel %vm1084, %v1126, 0.0
        %1135 = vadd.xlane.f32.xlu0 %v1134
        %v1136 = vpop.xlane.xlu0 %1135
        %v1137 = vsel %vm1084, %v1127, 0.0
        %1138 = vadd.xlane.f32.xlu0 %v1137
        %v1139 = vpop.xlane.xlu0 %1138
        %v1140 = vsel %vm1084, %v1128, 0.0
        %1141 = vadd.xlane.f32.xlu0 %v1140
        %v1142 = vpop.xlane.xlu0 %1141
        %v1143 = vsel %vm1084, %v1129, 0.0
        %1144 = vadd.xlane.f32.xlu0 %v1143
        %v1145 = vpop.xlane.xlu0 %1144
        %v1146 = vsel %vm1084, %v1130, 0.0
        %1147 = vadd.xlane.f32.xlu0 %v1146
        %v1148 = vpop.xlane.xlu0 %1147
        %v1149 = vsel %vm1084, %v1131, 0.0
        %1150 = vadd.xlane.f32.xlu0 %v1149
        %v1151 = vpop.xlane.xlu0 %1150
        %v1152 = vsel %vm1084, %v1132, 0.0
        %1153 = vadd.xlane.f32.xlu0 %v1152
        %v1154 = vpop.xlane.xlu0 %1153
        %v1155 = vsel %vm1084, %v1133, 0.0
        %1156 = vadd.xlane.f32.xlu0 %v1155
        %v1157 = vpop.xlane.xlu0 %1156
        %v1158 = vmul.f32 %v1136, %v1109
        %v1159 = vmul.f32 %v1139, %v1109
        %v1160 = vmul.f32 %v1142, %v1109
        %v1161 = vmul.f32 %v1145, %v1109
        %v1162 = vmul.f32 %v1148, %v1109
        %v1163 = vmul.f32 %v1151, %v1109
        %v1164 = vmul.f32 %v1154, %v1109
        %v1165 = vmul.f32 %v1157, %v1109
        %v1166 = vadd.f32 %v1158, 1e-05
        %v1167 = vadd.f32 %v1159, 1e-05
        %v1168 = vadd.f32 %v1160, 1e-05
        %v1169 = vadd.f32 %v1161, 1e-05
        %v1170 = vadd.f32 %v1162, 1e-05
        %v1171 = vadd.f32 %v1163, 1e-05
        %v1172 = vadd.f32 %v1164, 1e-05
        %v1173 = vadd.f32 %v1165, 1e-05
        %v1174 = vrsqrt.pop %v1166
        %v1175 = vrsqrt.pop %v1167
        %v1176 = vrsqrt.pop %v1168
        %v1177 = vrsqrt.pop %v1169
        %v1178 = vrsqrt.pop %v1170
        %v1179 = vrsqrt.pop %v1171
        %v1180 = vrsqrt.pop %v1172
        %v1181 = vrsqrt.pop %v1173
        %v1182 = vmul.f32 %v1118, %v1174
        %v1183 = vmul.f32 %v1119, %v1175
        %v1184 = vmul.f32 %v1120, %v1176
        %v1185 = vmul.f32 %v1121, %v1177
        %v1186 = vmul.f32 %v1122, %v1178
        %v1187 = vmul.f32 %v1123, %v1179
        %v1188 = vmul.f32 %v1124, %v1180
        %v1189 = vmul.f32 %v1125, %v1181
        %v1190 = vld [vmem:[#allocation11] sm:$0xff]
        %v1199 = vcombine.low %v900, %v924
        %v1200 = vcombine.low %v907, %v925
        %v1201 = vcombine.low %v916, %v926
        %v1202 = vcombine.low %v923, %v927
        %vm1203 = vcmask 64512
        %v1204 = vsel %vm1203, %v1199, 0
        %v1206 = vsel %vm1203, %v1200, 0
        %v1208 = vsel %vm1203, %v1201, 0
        %v1210 = vsel %vm1203, %v1202, 0
        %1212 = vmatprep.subr.mxu0 0.0
        %1213 = vmatpush1.msra.mxu0 %v1190
        %1214 = vmatprep.subr.mxu0 0.0
        %1215 = vmatpush1.msra.mxu0 0.0
        %1216 = vmatprep.subr.mxu0 0.0
        %1217 = vmatpush1.msra.mxu0 0.0
        %1218 = vmatprep.subr.mxu0 0.0
        %1219 = vmatpush1.msra.mxu0 0.0
        %1220 = vmatprep.subr.mxu0 0.0
        %1221 = vmatpush1.msra.mxu0 0.0
        %1222 = vmatprep.subr.mxu0 0.0
        %1223 = vmatpush1.msra.mxu0 0.0
        %1224 = vmatprep.subr.mxu0 0.0
        %1225 = vmatpush1.msra.mxu0 0.0
        %1226 = vmatprep.subr.mxu0 0.0
        %1227 = vmatpush1.msra.mxu0 0.0
        %1228 = vmatprep.subr.mxu0 0.0
        %1229 = vmatpush1.msra.mxu0 0.0
        %1230 = vmatprep.subr.mxu0 0.0
        %1231 = vmatpush1.msra.mxu0 0.0
        %1232 = vmatprep.subr.mxu0 0.0
        %1233 = vmatpush1.msra.mxu0 0.0
        %1234 = vmatprep.subr.mxu0 0.0
        %1235 = vmatpush1.msra.mxu0 0.0
        %1236 = vmatprep.subr.mxu0 0.0
        %1237 = vmatpush1.msra.mxu0 0.0
        %1238 = vmatprep.subr.mxu0 0.0
        %1239 = vmatpush1.msra.mxu0 0.0
        %1240 = vmatprep.subr.mxu0 0.0
        %1241 = vmatpush1.msra.mxu0 0.0
        %1242 = vmatprep.subr.mxu0 0.0
        %1243 = vmatpush1.msra.mxu0 0.0
        %1244 = vmatprep.subr.mxu0 0.0
        %1245 = vmatpush1.msra.mxu0 0.0
        %1246 = vmatprep.subr.mxu0 0.0
        %1247 = vmatpush1.msra.mxu0 0.0
        %1248 = vmatprep.subr.mxu0 0.0
        %1249 = vmatpush1.msra.mxu0 0.0
        %1250 = vmatprep.subr.mxu0 0.0
        %1251 = vmatpush1.msra.mxu0 0.0
        %1252 = vmatprep.subr.mxu0 0.0
        %1253 = vmatpush1.msra.mxu0 0.0
        %1254 = vmatprep.subr.mxu0 0.0
        %1255 = vmatpush1.msra.mxu0 0.0
        %1256 = vmatprep.subr.mxu0 0.0
        %1257 = vmatpush1.msra.mxu0 0.0
        %1258 = vmatprep.subr.mxu0 0.0
        %1259 = vmatpush1.msra.mxu0 0.0
        %1260 = vmatprep.subr.mxu0 0.0
        %1261 = vmatpush1.msra.mxu0 0.0
        %1262 = vmatprep.subr.mxu0 0.0
        %1263 = vmatpush1.msra.mxu0 0.0
        %1264 = vmatprep.subr.mxu0 0.0
        %1265 = vmatpush1.msra.mxu0 0.0
        %1266 = vmatprep.subr.mxu0 0.0
        %1267 = vmatpush1.msra.mxu0 0.0
        %1268 = vmatprep.subr.mxu0 0.0
        %1269 = vmatpush1.msra.mxu0 0.0
        %1270 = vmatprep.subr.mxu0 0.0
        %1271 = vmatpush1.msra.mxu0 0.0
        %1272 = vmatprep.subr.mxu0 0.0
        %1273 = vmatpush1.msra.mxu0 0.0
        %1274 = vmatprep.subr.mxu0 0.0
        %1275 = vmatpush1.msra.mxu0 0.0
        %1276 = vmatprep.mubr.f32.mxu0 0.0
        %1277 = vmatmul.mubr.f32.gmra.mrb[0].mxu0 %v1204
        %v1278 = vpop.f32.mrb[0].mxu0
        %v1279 = vadd.f32 0.0, %v1278
        %v1280 = vpop.f32.mrb[0].mxu0
        %1281 = vmatprep.mubr.f32.mxu0 0.0
        %1282 = vmatmul.mubr.f32.gmra.mrb[0].mxu0 %v1206
        %v1283 = vpop.f32.mrb[0].mxu0
        %v1284 = vadd.f32 0.0, %v1283
        %v1285 = vpop.f32.mrb[0].mxu0
        %1286 = vmatprep.mubr.f32.mxu0 0.0
        %1287 = vmatmul.mubr.f32.gmra.mrb[0].mxu0 %v1208
        %v1288 = vpop.f32.mrb[0].mxu0
        %v1289 = vadd.f32 0.0, %v1288
        %v1290 = vpop.f32.mrb[0].mxu0
        %1291 = vmatprep.mubr.f32.mxu0 0.0
        %1292 = vmatmul.mubr.f32.gmra.mrb[0].mxu0 %v1210
        %v1293 = vpop.f32.mrb[0].mxu0
        %v1294 = vadd.f32 0.0, %v1293
        %v1295 = vpop.f32.mrb[0].mxu0
        %1296 = vdwg.mxu0
        %v1301 = vcombine.high %v1279, %v1279
        %v1302 = vcombine.high %v1284, %v1284
        %v1303 = vcombine.high %v1289, %v1289
        %v1304 = vcombine.high %v1294, %v1294
        %v1306 = vsel %vm1084, %v1182, 0
        %v1308 = vsel %vm1084, %v1279, 0
        %1310 = vmatprep.subr.mxu0 0.0
        %1311 = vmatpush1.xpose.msra.mxu0 %v1308
        %1312 = vmatprep.subr.mxu0 0.0
        %1313 = vmatpush1.xpose.msra.mxu0 0.0
        %1314 = vmatprep.subr.mxu0 0.0
        %1315 = vmatpush1.xpose.msra.mxu0 0.0
        %1316 = vmatprep.subr.mxu0 0.0
        %1317 = vmatpush1.xpose.msra.mxu0 0.0
        %1318 = vmatprep.subr.mxu0 0.0
        %1319 = vmatpush1.xpose.msra.mxu0 0.0
        %1320 = vmatprep.subr.mxu0 0.0
        %1321 = vmatpush1.xpose.msra.mxu0 0.0
        %1322 = vmatprep.subr.mxu0 0.0
        %1323 = vmatpush1.xpose.msra.mxu0 0.0
        %1324 = vmatprep.subr.mxu0 0.0
        %1325 = vmatpush1.xpose.msra.mxu0 0.0
        %1326 = vmatprep.subr.mxu0 0.0
        %1327 = vmatpush1.xpose.msra.mxu0 0.0
        %1328 = vmatprep.subr.mxu0 0.0
        %1329 = vmatpush1.xpose.msra.mxu0 0.0
        %1330 = vmatprep.subr.mxu0 0.0
        %1331 = vmatpush1.xpose.msra.mxu0 0.0
        %1332 = vmatprep.subr.mxu0 0.0
        %1333 = vmatpush1.xpose.msra.mxu0 0.0
        %1334 = vmatprep.subr.mxu0 0.0
        %1335 = vmatpush1.xpose.msra.mxu0 0.0
        %1336 = vmatprep.subr.mxu0 0.0
        %1337 = vmatpush1.xpose.msra.mxu0 0.0
        %1338 = vmatprep.subr.mxu0 0.0
        %1339 = vmatpush1.xpose.msra.mxu0 0.0
        %1340 = vmatprep.subr.mxu0 0.0
        %1341 = vmatpush1.xpose.msra.mxu0 0.0
        %1342 = vmatprep.subr.mxu0 0.0
        %1343 = vmatpush1.xpose.msra.mxu0 0.0
        %1344 = vmatprep.subr.mxu0 0.0
        %1345 = vmatpush1.xpose.msra.mxu0 0.0
        %1346 = vmatprep.subr.mxu0 0.0
        %1347 = vmatpush1.xpose.msra.mxu0 0.0
        %1348 = vmatprep.subr.mxu0 0.0
        %1349 = vmatpush1.xpose.msra.mxu0 0.0
        %1350 = vmatprep.subr.mxu0 0.0
        %1351 = vmatpush1.xpose.msra.mxu0 0.0
        %1352 = vmatprep.subr.mxu0 0.0
        %1353 = vmatpush1.xpose.msra.mxu0 0.0
        %1354 = vmatprep.subr.mxu0 0.0
        %1355 = vmatpush1.xpose.msra.mxu0 0.0
        %1356 = vmatprep.subr.mxu0 0.0
        %1357 = vmatpush1.xpose.msra.mxu0 0.0
        %1358 = vmatprep.subr.mxu0 0.0
        %1359 = vmatpush1.xpose.msra.mxu0 0.0
        %1360 = vmatprep.subr.mxu0 0.0
        %1361 = vmatpush1.xpose.msra.mxu0 0.0
        %1362 = vmatprep.subr.mxu0 0.0
        %1363 = vmatpush1.xpose.msra.mxu0 0.0
        %1364 = vmatprep.subr.mxu0 0.0
        %1365 = vmatpush1.xpose.msra.mxu0 0.0
        %1366 = vmatprep.subr.mxu0 0.0
        %1367 = vmatpush1.xpose.msra.mxu0 0.0
        %1368 = vmatprep.subr.mxu0 0.0
        %1369 = vmatpush1.xpose.msra.mxu0 0.0
        %1370 = vmatprep.subr.mxu0 0.0
        %1371 = vmatpush1.xpose.msra.mxu0 0.0
        %1372 = vmatprep.subr.mxu0 0.0
        %1373 = vmatpush1.xpose.msra.mxu0 0.0
        %1374 = vmatprep.mubr.f32.mxu0 0.0
        %1375 = vmatmul.mubr.f32.gmra.mrb[0].mxu0 %v1306
        %v1376 = vpop.f32.mrb[0].mxu0
        %v1377 = vadd.f32 0.0, %v1376
        %v1378 = vpop.f32.mrb[0].mxu0
        %1379 = vdwg.mxu0
        %v1381 = vsel %vm1084, %v1183, 0
        %v1383 = vsel %vm1084, %v1301, 0
        %1385 = vmatprep.subr.mxu0 0.0
        %1386 = vmatpush1.xpose.msra.mxu0 %v1383
        %1387 = vmatprep.subr.mxu0 0.0
        %1388 = vmatpush1.xpose.msra.mxu0 0.0
        %1389 = vmatprep.subr.mxu0 0.0
        %1390 = vmatpush1.xpose.msra.mxu0 0.0
        %1391 = vmatprep.subr.mxu0 0.0
        %1392 = vmatpush1.xpose.msra.mxu0 0.0
        %1393 = vmatprep.subr.mxu0 0.0
        %1394 = vmatpush1.xpose.msra.mxu0 0.0
        %1395 = vmatprep.subr.mxu0 0.0
        %1396 = vmatpush1.xpose.msra.mxu0 0.0
        %1397 = vmatprep.subr.mxu0 0.0
        %1398 = vmatpush1.xpose.msra.mxu0 0.0
        %1399 = vmatprep.subr.mxu0 0.0
        %1400 = vmatpush1.xpose.msra.mxu0 0.0
        %1401 = vmatprep.subr.mxu0 0.0
        %1402 = vmatpush1.xpose.msra.mxu0 0.0
        %1403 = vmatprep.subr.mxu0 0.0
        %1404 = vmatpush1.xpose.msra.mxu0 0.0
        %1405 = vmatprep.subr.mxu0 0.0
        %1406 = vmatpush1.xpose.msra.mxu0 0.0
        %1407 = vmatprep.subr.mxu0 0.0
        %1408 = vmatpush1.xpose.msra.mxu0 0.0
        %1409 = vmatprep.subr.mxu0 0.0
        %1410 = vmatpush1.xpose.msra.mxu0 0.0
        %1411 = vmatprep.subr.mxu0 0.0
        %1412 = vmatpush1.xpose.msra.mxu0 0.0
        %1413 = vmatprep.subr.mxu0 0.0
        %1414 = vmatpush1.xpose.msra.mxu0 0.0
        %1415 = vmatprep.subr.mxu0 0.0
        %1416 = vmatpush1.xpose.msra.mxu0 0.0
        %1417 = vmatprep.subr.mxu0 0.0
        %1418 = vmatpush1.xpose.msra.mxu0 0.0
        %1419 = vmatprep.subr.mxu0 0.0
        %1420 = vmatpush1.xpose.msra.mxu0 0.0
        %1421 = vmatprep.subr.mxu0 0.0
        %1422 = vmatpush1.xpose.msra.mxu0 0.0
        %1423 = vmatprep.subr.mxu0 0.0
        %1424 = vmatpush1.xpose.msra.mxu0 0.0
        %1425 = vmatprep.subr.mxu0 0.0
        %1426 = vmatpush1.xpose.msra.mxu0 0.0
        %1427 = vmatprep.subr.mxu0 0.0
        %1428 = vmatpush1.xpose.msra.mxu0 0.0
        %1429 = vmatprep.subr.mxu0 0.0
        %1430 = vmatpush1.xpose.msra.mxu0 0.0
        %1431 = vmatprep.subr.mxu0 0.0
        %1432 = vmatpush1.xpose.msra.mxu0 0.0
        %1433 = vmatprep.subr.mxu0 0.0
        %1434 = vmatpush1.xpose.msra.mxu0 0.0
        %1435 = vmatprep.subr.mxu0 0.0
        %1436 = vmatpush1.xpose.msra.mxu0 0.0
        %1437 = vmatprep.subr.mxu0 0.0
        %1438 = vmatpush1.xpose.msra.mxu0 0.0
        %1439 = vmatprep.subr.mxu0 0.0
        %1440 = vmatpush1.xpose.msra.mxu0 0.0
        %1441 = vmatprep.subr.mxu0 0.0
        %1442 = vmatpush1.xpose.msra.mxu0 0.0
        %1443 = vmatprep.subr.mxu0 0.0
        %1444 = vmatpush1.xpose.msra.mxu0 0.0
        %1445 = vmatprep.subr.mxu0 0.0
        %1446 = vmatpush1.xpose.msra.mxu0 0.0
        %1447 = vmatprep.subr.mxu0 0.0
        %1448 = vmatpush1.xpose.msra.mxu0 0.0
        %1449 = vmatprep.mubr.f32.mxu0 0.0
        %1450 = vmatmul.mubr.f32.gmra.mrb[0].mxu0 %v1381
        %v1451 = vpop.f32.mrb[0].mxu0
        %v1452 = vadd.f32 0.0, %v1451
        %v1453 = vpop.f32.mrb[0].mxu0
        %1454 = vdwg.mxu0
        %v1456 = vsel %vm1084, %v1184, 0
        %v1458 = vsel %vm1084, %v1284, 0
        %1460 = vmatprep.subr.mxu0 0.0
        %1461 = vmatpush1.xpose.msra.mxu0 %v1458
        %1462 = vmatprep.subr.mxu0 0.0
        %1463 = vmatpush1.xpose.msra.mxu0 0.0
        %1464 = vmatprep.subr.mxu0 0.0
        %1465 = vmatpush1.xpose.msra.mxu0 0.0
        %1466 = vmatprep.subr.mxu0 0.0
        %1467 = vmatpush1.xpose.msra.mxu0 0.0
        %1468 = vmatprep.subr.mxu0 0.0
        %1469 = vmatpush1.xpose.msra.mxu0 0.0
        %1470 = vmatprep.subr.mxu0 0.0
        %1471 = vmatpush1.xpose.msra.mxu0 0.0
        %1472 = vmatprep.subr.mxu0 0.0
        %1473 = vmatpush1.xpose.msra.mxu0 0.0
        %1474 = vmatprep.subr.mxu0 0.0
        %1475 = vmatpush1.xpose.msra.mxu0 0.0
        %1476 = vmatprep.subr.mxu0 0.0
        %1477 = vmatpush1.xpose.msra.mxu0 0.0
        %1478 = vmatprep.subr.mxu0 0.0
        %1479 = vmatpush1.xpose.msra.mxu0 0.0
        %1480 = vmatprep.subr.mxu0 0.0
        %1481 = vmatpush1.xpose.msra.mxu0 0.0
        %1482 = vmatprep.subr.mxu0 0.0
        %1483 = vmatpush1.xpose.msra.mxu0 0.0
        %1484 = vmatprep.subr.mxu0 0.0
        %1485 = vmatpush1.xpose.msra.mxu0 0.0
        %1486 = vmatprep.subr.mxu0 0.0
        %1487 = vmatpush1.xpose.msra.mxu0 0.0
        %1488 = vmatprep.subr.mxu0 0.0
        %1489 = vmatpush1.xpose.msra.mxu0 0.0
        %1490 = vmatprep.subr.mxu0 0.0
        %1491 = vmatpush1.xpose.msra.mxu0 0.0
        %1492 = vmatprep.subr.mxu0 0.0
        %1493 = vmatpush1.xpose.msra.mxu0 0.0
        %1494 = vmatprep.subr.mxu0 0.0
        %1495 = vmatpush1.xpose.msra.mxu0 0.0
        %1496 = vmatprep.subr.mxu0 0.0
        %1497 = vmatpush1.xpose.msra.mxu0 0.0
        %1498 = vmatprep.subr.mxu0 0.0
        %1499 = vmatpush1.xpose.msra.mxu0 0.0
        %1500 = vmatprep.subr.mxu0 0.0
        %1501 = vmatpush1.xpose.msra.mxu0 0.0
        %1502 = vmatprep.subr.mxu0 0.0
        %1503 = vmatpush1.xpose.msra.mxu0 0.0
        %1504 = vmatprep.subr.mxu0 0.0
        %1505 = vmatpush1.xpose.msra.mxu0 0.0
        %1506 = vmatprep.subr.mxu0 0.0
        %1507 = vmatpush1.xpose.msra.mxu0 0.0
        %1508 = vmatprep.subr.mxu0 0.0
        %1509 = vmatpush1.xpose.msra.mxu0 0.0
        %1510 = vmatprep.subr.mxu0 0.0
        %1511 = vmatpush1.xpose.msra.mxu0 0.0
        %1512 = vmatprep.subr.mxu0 0.0
        %1513 = vmatpush1.xpose.msra.mxu0 0.0
        %1514 = vmatprep.subr.mxu0 0.0
        %1515 = vmatpush1.xpose.msra.mxu0 0.0
        %1516 = vmatprep.subr.mxu0 0.0
        %1517 = vmatpush1.xpose.msra.mxu0 0.0
        %1518 = vmatprep.subr.mxu0 0.0
        %1519 = vmatpush1.xpose.msra.mxu0 0.0
        %1520 = vmatprep.subr.mxu0 0.0
        %1521 = vmatpush1.xpose.msra.mxu0 0.0
        %1522 = vmatprep.subr.mxu0 0.0
        %1523 = vmatpush1.xpose.msra.mxu0 0.0
        %1524 = vmatprep.mubr.f32.mxu0 0.0
        %1525 = vmatmul.mubr.f32.gmra.mrb[0].mxu0 %v1456
        %v1526 = vpop.f32.mrb[0].mxu0
        %v1527 = vadd.f32 0.0, %v1526
        %v1528 = vpop.f32.mrb[0].mxu0
        %1529 = vdwg.mxu0
        %v1531 = vsel %vm1084, %v1185, 0
        %v1533 = vsel %vm1084, %v1302, 0
        %1535 = vmatprep.subr.mxu0 0.0
        %1536 = vmatpush1.xpose.msra.mxu0 %v1533
        %1537 = vmatprep.subr.mxu0 0.0
        %1538 = vmatpush1.xpose.msra.mxu0 0.0
        %1539 = vmatprep.subr.mxu0 0.0
        %1540 = vmatpush1.xpose.msra.mxu0 0.0
        %1541 = vmatprep.subr.mxu0 0.0
        %1542 = vmatpush1.xpose.msra.mxu0 0.0
        %1543 = vmatprep.subr.mxu0 0.0
        %1544 = vmatpush1.xpose.msra.mxu0 0.0
        %1545 = vmatprep.subr.mxu0 0.0
        %1546 = vmatpush1.xpose.msra.mxu0 0.0
        %1547 = vmatprep.subr.mxu0 0.0
        %1548 = vmatpush1.xpose.msra.mxu0 0.0
        %1549 = vmatprep.subr.mxu0 0.0
        %1550 = vmatpush1.xpose.msra.mxu0 0.0
        %1551 = vmatprep.subr.mxu0 0.0
        %1552 = vmatpush1.xpose.msra.mxu0 0.0
        %1553 = vmatprep.subr.mxu0 0.0
        %1554 = vmatpush1.xpose.msra.mxu0 0.0
        %1555 = vmatprep.subr.mxu0 0.0
        %1556 = vmatpush1.xpose.msra.mxu0 0.0
        %1557 = vmatprep.subr.mxu0 0.0
        %1558 = vmatpush1.xpose.msra.mxu0 0.0
        %1559 = vmatprep.subr.mxu0 0.0
        %1560 = vmatpush1.xpose.msra.mxu0 0.0
        %1561 = vmatprep.subr.mxu0 0.0
        %1562 = vmatpush1.xpose.msra.mxu0 0.0
        %1563 = vmatprep.subr.mxu0 0.0
        %1564 = vmatpush1.xpose.msra.mxu0 0.0
        %1565 = vmatprep.subr.mxu0 0.0
        %1566 = vmatpush1.xpose.msra.mxu0 0.0
        %1567 = vmatprep.subr.mxu0 0.0
        %1568 = vmatpush1.xpose.msra.mxu0 0.0
        %1569 = vmatprep.subr.mxu0 0.0
        %1570 = vmatpush1.xpose.msra.mxu0 0.0
        %1571 = vmatprep.subr.mxu0 0.0
        %1572 = vmatpush1.xpose.msra.mxu0 0.0
        %1573 = vmatprep.subr.mxu0 0.0
        %1574 = vmatpush1.xpose.msra.mxu0 0.0
        %1575 = vmatprep.subr.mxu0 0.0
        %1576 = vmatpush1.xpose.msra.mxu0 0.0
        %1577 = vmatprep.subr.mxu0 0.0
        %1578 = vmatpush1.xpose.msra.mxu0 0.0
        %1579 = vmatprep.subr.mxu0 0.0
        %1580 = vmatpush1.xpose.msra.mxu0 0.0
        %1581 = vmatprep.subr.mxu0 0.0
        %1582 = vmatpush1.xpose.msra.mxu0 0.0
        %1583 = vmatprep.subr.mxu0 0.0
        %1584 = vmatpush1.xpose.msra.mxu0 0.0
        %1585 = vmatprep.subr.mxu0 0.0
        %1586 = vmatpush1.xpose.msra.mxu0 0.0
        %1587 = vmatprep.subr.mxu0 0.0
        %1588 = vmatpush1.xpose.msra.mxu0 0.0
        %1589 = vmatprep.subr.mxu0 0.0
        %1590 = vmatpush1.xpose.msra.mxu0 0.0
        %1591 = vmatprep.subr.mxu0 0.0
        %1592 = vmatpush1.xpose.msra.mxu0 0.0
        %1593 = vmatprep.subr.mxu0 0.0
        %1594 = vmatpush1.xpose.msra.mxu0 0.0
        %1595 = vmatprep.subr.mxu0 0.0
        %1596 = vmatpush1.xpose.msra.mxu0 0.0
        %1597 = vmatprep.subr.mxu0 0.0
        %1598 = vmatpush1.xpose.msra.mxu0 0.0
        %1599 = vmatprep.mubr.f32.mxu0 0.0
        %1600 = vmatmul.mubr.f32.gmra.mrb[0].mxu0 %v1531
        %v1601 = vpop.f32.mrb[0].mxu0
        %v1602 = vadd.f32 0.0, %v1601
        %v1603 = vpop.f32.mrb[0].mxu0
        %1604 = vdwg.mxu0
        %v1606 = vsel %vm1084, %v1186, 0
        %v1608 = vsel %vm1084, %v1289, 0
        %1610 = vmatprep.subr.mxu0 0.0
        %1611 = vmatpush1.xpose.msra.mxu0 %v1608
        %1612 = vmatprep.subr.mxu0 0.0
        %1613 = vmatpush1.xpose.msra.mxu0 0.0
        %1614 = vmatprep.subr.mxu0 0.0
        %1615 = vmatpush1.xpose.msra.mxu0 0.0
        %1616 = vmatprep.subr.mxu0 0.0
        %1617 = vmatpush1.xpose.msra.mxu0 0.0
        %1618 = vmatprep.subr.mxu0 0.0
        %1619 = vmatpush1.xpose.msra.mxu0 0.0
        %1620 = vmatprep.subr.mxu0 0.0
        %1621 = vmatpush1.xpose.msra.mxu0 0.0
        %1622 = vmatprep.subr.mxu0 0.0
        %1623 = vmatpush1.xpose.msra.mxu0 0.0
        %1624 = vmatprep.subr.mxu0 0.0
        %1625 = vmatpush1.xpose.msra.mxu0 0.0
        %1626 = vmatprep.subr.mxu0 0.0
        %1627 = vmatpush1.xpose.msra.mxu0 0.0
        %1628 = vmatprep.subr.mxu0 0.0
        %1629 = vmatpush1.xpose.msra.mxu0 0.0
        %1630 = vmatprep.subr.mxu0 0.0
        %1631 = vmatpush1.xpose.msra.mxu0 0.0
        %1632 = vmatprep.subr.mxu0 0.0
        %1633 = vmatpush1.xpose.msra.mxu0 0.0
        %1634 = vmatprep.subr.mxu0 0.0
        %1635 = vmatpush1.xpose.msra.mxu0 0.0
        %1636 = vmatprep.subr.mxu0 0.0
        %1637 = vmatpush1.xpose.msra.mxu0 0.0
        %1638 = vmatprep.subr.mxu0 0.0
        %1639 = vmatpush1.xpose.msra.mxu0 0.0
        %1640 = vmatprep.subr.mxu0 0.0
        %1641 = vmatpush1.xpose.msra.mxu0 0.0
        %1642 = vmatprep.subr.mxu0 0.0
        %1643 = vmatpush1.xpose.msra.mxu0 0.0
        %1644 = vmatprep.subr.mxu0 0.0
        %1645 = vmatpush1.xpose.msra.mxu0 0.0
        %1646 = vmatprep.subr.mxu0 0.0
        %1647 = vmatpush1.xpose.msra.mxu0 0.0
        %1648 = vmatprep.subr.mxu0 0.0
        %1649 = vmatpush1.xpose.msra.mxu0 0.0
        %1650 = vmatprep.subr.mxu0 0.0
        %1651 = vmatpush1.xpose.msra.mxu0 0.0
        %1652 = vmatprep.subr.mxu0 0.0
        %1653 = vmatpush1.xpose.msra.mxu0 0.0
        %1654 = vmatprep.subr.mxu0 0.0
        %1655 = vmatpush1.xpose.msra.mxu0 0.0
        %1656 = vmatprep.subr.mxu0 0.0
        %1657 = vmatpush1.xpose.msra.mxu0 0.0
        %1658 = vmatprep.subr.mxu0 0.0
        %1659 = vmatpush1.xpose.msra.mxu0 0.0
        %1660 = vmatprep.subr.mxu0 0.0
        %1661 = vmatpush1.xpose.msra.mxu0 0.0
        %1662 = vmatprep.subr.mxu0 0.0
        %1663 = vmatpush1.xpose.msra.mxu0 0.0
        %1664 = vmatprep.subr.mxu0 0.0
        %1665 = vmatpush1.xpose.msra.mxu0 0.0
        %1666 = vmatprep.subr.mxu0 0.0
        %1667 = vmatpush1.xpose.msra.mxu0 0.0
        %1668 = vmatprep.subr.mxu0 0.0
        %1669 = vmatpush1.xpose.msra.mxu0 0.0
        %1670 = vmatprep.subr.mxu0 0.0
        %1671 = vmatpush1.xpose.msra.mxu0 0.0
        %1672 = vmatprep.subr.mxu0 0.0
        %1673 = vmatpush1.xpose.msra.mxu0 0.0
        %1674 = vmatprep.mubr.f32.mxu0 0.0
        %1675 = vmatmul.mubr.f32.gmra.mrb[0].mxu0 %v1606
        %v1676 = vpop.f32.mrb[0].mxu0
        %v1677 = vadd.f32 0.0, %v1676
        %v1678 = vpop.f32.mrb[0].mxu0
        %1679 = vdwg.mxu0
        %v1681 = vsel %vm1084, %v1187, 0
        %v1683 = vsel %vm1084, %v1303, 0
        %1685 = vmatprep.subr.mxu0 0.0
        %1686 = vmatpush1.xpose.msra.mxu0 %v1683
        %1687 = vmatprep.subr.mxu0 0.0
        %1688 = vmatpush1.xpose.msra.mxu0 0.0
        %1689 = vmatprep.subr.mxu0 0.0
        %1690 = vmatpush1.xpose.msra.mxu0 0.0
        %1691 = vmatprep.subr.mxu0 0.0
        %1692 = vmatpush1.xpose.msra.mxu0 0.0
        %1693 = vmatprep.subr.mxu0 0.0
        %1694 = vmatpush1.xpose.msra.mxu0 0.0
        %1695 = vmatprep.subr.mxu0 0.0
        %1696 = vmatpush1.xpose.msra.mxu0 0.0
        %1697 = vmatprep.subr.mxu0 0.0
        %1698 = vmatpush1.xpose.msra.mxu0 0.0
        %1699 = vmatprep.subr.mxu0 0.0
        %1700 = vmatpush1.xpose.msra.mxu0 0.0
        %1701 = vmatprep.subr.mxu0 0.0
        %1702 = vmatpush1.xpose.msra.mxu0 0.0
        %1703 = vmatprep.subr.mxu0 0.0
        %1704 = vmatpush1.xpose.msra.mxu0 0.0
        %1705 = vmatprep.subr.mxu0 0.0
        %1706 = vmatpush1.xpose.msra.mxu0 0.0
        %1707 = vmatprep.subr.mxu0 0.0
        %1708 = vmatpush1.xpose.msra.mxu0 0.0
        %1709 = vmatprep.subr.mxu0 0.0
        %1710 = vmatpush1.xpose.msra.mxu0 0.0
        %1711 = vmatprep.subr.mxu0 0.0
        %1712 = vmatpush1.xpose.msra.mxu0 0.0
        %1713 = vmatprep.subr.mxu0 0.0
        %1714 = vmatpush1.xpose.msra.mxu0 0.0
        %1715 = vmatprep.subr.mxu0 0.0
        %1716 = vmatpush1.xpose.msra.mxu0 0.0
        %1717 = vmatprep.subr.mxu0 0.0
        %1718 = vmatpush1.xpose.msra.mxu0 0.0
        %1719 = vmatprep.subr.mxu0 0.0
        %1720 = vmatpush1.xpose.msra.mxu0 0.0
        %1721 = vmatprep.subr.mxu0 0.0
        %1722 = vmatpush1.xpose.msra.mxu0 0.0
        %1723 = vmatprep.subr.mxu0 0.0
        %1724 = vmatpush1.xpose.msra.mxu0 0.0
        %1725 = vmatprep.subr.mxu0 0.0
        %1726 = vmatpush1.xpose.msra.mxu0 0.0
        %1727 = vmatprep.subr.mxu0 0.0
        %1728 = vmatpush1.xpose.msra.mxu0 0.0
        %1729 = vmatprep.subr.mxu0 0.0
        %1730 = vmatpush1.xpose.msra.mxu0 0.0
        %1731 = vmatprep.subr.mxu0 0.0
        %1732 = vmatpush1.xpose.msra.mxu0 0.0
        %1733 = vmatprep.subr.mxu0 0.0
        %1734 = vmatpush1.xpose.msra.mxu0 0.0
        %1735 = vmatprep.subr.mxu0 0.0
        %1736 = vmatpush1.xpose.msra.mxu0 0.0
        %1737 = vmatprep.subr.mxu0 0.0
        %1738 = vmatpush1.xpose.msra.mxu0 0.0
        %1739 = vmatprep.subr.mxu0 0.0
        %1740 = vmatpush1.xpose.msra.mxu0 0.0
        %1741 = vmatprep.subr.mxu0 0.0
        %1742 = vmatpush1.xpose.msra.mxu0 0.0
        %1743 = vmatprep.subr.mxu0 0.0
        %1744 = vmatpush1.xpose.msra.mxu0 0.0
        %1745 = vmatprep.subr.mxu0 0.0
        %1746 = vmatpush1.xpose.msra.mxu0 0.0
        %1747 = vmatprep.subr.mxu0 0.0
        %1748 = vmatpush1.xpose.msra.mxu0 0.0
        %1749 = vmatprep.mubr.f32.mxu0 0.0
        %1750 = vmatmul.mubr.f32.gmra.mrb[0].mxu0 %v1681
        %v1751 = vpop.f32.mrb[0].mxu0
        %v1752 = vadd.f32 0.0, %v1751
        %v1753 = vpop.f32.mrb[0].mxu0
        %1754 = vdwg.mxu0
        %v1756 = vsel %vm1084, %v1188, 0
        %v1758 = vsel %vm1084, %v1294, 0
        %1760 = vmatprep.subr.mxu0 0.0
        %1761 = vmatpush1.xpose.msra.mxu0 %v1758
        %1762 = vmatprep.subr.mxu0 0.0
        %1763 = vmatpush1.xpose.msra.mxu0 0.0
        %1764 = vmatprep.subr.mxu0 0.0
        %1765 = vmatpush1.xpose.msra.mxu0 0.0
        %1766 = vmatprep.subr.mxu0 0.0
        %1767 = vmatpush1.xpose.msra.mxu0 0.0
        %1768 = vmatprep.subr.mxu0 0.0
        %1769 = vmatpush1.xpose.msra.mxu0 0.0
        %1770 = vmatprep.subr.mxu0 0.0
        %1771 = vmatpush1.xpose.msra.mxu0 0.0
        %1772 = vmatprep.subr.mxu0 0.0
        %1773 = vmatpush1.xpose.msra.mxu0 0.0
        %1774 = vmatprep.subr.mxu0 0.0
        %1775 = vmatpush1.xpose.msra.mxu0 0.0
        %1776 = vmatprep.subr.mxu0 0.0
        %1777 = vmatpush1.xpose.msra.mxu0 0.0
        %1778 = vmatprep.subr.mxu0 0.0
        %1779 = vmatpush1.xpose.msra.mxu0 0.0
        %1780 = vmatprep.subr.mxu0 0.0
        %1781 = vmatpush1.xpose.msra.mxu0 0.0
        %1782 = vmatprep.subr.mxu0 0.0
        %1783 = vmatpush1.xpose.msra.mxu0 0.0
        %1784 = vmatprep.subr.mxu0 0.0
        %1785 = vmatpush1.xpose.msra.mxu0 0.0
        %1786 = vmatprep.subr.mxu0 0.0
        %1787 = vmatpush1.xpose.msra.mxu0 0.0
        %1788 = vmatprep.subr.mxu0 0.0
        %1789 = vmatpush1.xpose.msra.mxu0 0.0
        %1790 = vmatprep.subr.mxu0 0.0
        %1791 = vmatpush1.xpose.msra.mxu0 0.0
        %1792 = vmatprep.subr.mxu0 0.0
        %1793 = vmatpush1.xpose.msra.mxu0 0.0
        %1794 = vmatprep.subr.mxu0 0.0
        %1795 = vmatpush1.xpose.msra.mxu0 0.0
        %1796 = vmatprep.subr.mxu0 0.0
        %1797 = vmatpush1.xpose.msra.mxu0 0.0
        %1798 = vmatprep.subr.mxu0 0.0
        %1799 = vmatpush1.xpose.msra.mxu0 0.0
        %1800 = vmatprep.subr.mxu0 0.0
        %1801 = vmatpush1.xpose.msra.mxu0 0.0
        %1802 = vmatprep.subr.mxu0 0.0
        %1803 = vmatpush1.xpose.msra.mxu0 0.0
        %1804 = vmatprep.subr.mxu0 0.0
        %1805 = vmatpush1.xpose.msra.mxu0 0.0
        %1806 = vmatprep.subr.mxu0 0.0
        %1807 = vmatpush1.xpose.msra.mxu0 0.0
        %1808 = vmatprep.subr.mxu0 0.0
        %1809 = vmatpush1.xpose.msra.mxu0 0.0
        %1810 = vmatprep.subr.mxu0 0.0
        %1811 = vmatpush1.xpose.msra.mxu0 0.0
        %1812 = vmatprep.subr.mxu0 0.0
        %1813 = vmatpush1.xpose.msra.mxu0 0.0
        %1814 = vmatprep.subr.mxu0 0.0
        %1815 = vmatpush1.xpose.msra.mxu0 0.0
        %1816 = vmatprep.subr.mxu0 0.0
        %1817 = vmatpush1.xpose.msra.mxu0 0.0
        %1818 = vmatprep.subr.mxu0 0.0
        %1819 = vmatpush1.xpose.msra.mxu0 0.0
        %1820 = vmatprep.subr.mxu0 0.0
        %1821 = vmatpush1.xpose.msra.mxu0 0.0
        %1822 = vmatprep.subr.mxu0 0.0
        %1823 = vmatpush1.xpose.msra.mxu0 0.0
        %1824 = vmatprep.mubr.f32.mxu0 0.0
        %1825 = vmatmul.mubr.f32.gmra.mrb[0].mxu0 %v1756
        %v1826 = vpop.f32.mrb[0].mxu0
        %v1827 = vadd.f32 0.0, %v1826
        %v1828 = vpop.f32.mrb[0].mxu0
        %1829 = vdwg.mxu0
        %v1831 = vsel %vm1084, %v1189, 0
        %v1833 = vsel %vm1084, %v1304, 0
        %1835 = vmatprep.subr.mxu0 0.0
        %1836 = vmatpush1.xpose.msra.mxu0 %v1833
        %1837 = vmatprep.subr.mxu0 0.0
        %1838 = vmatpush1.xpose.msra.mxu0 0.0
        %1839 = vmatprep.subr.mxu0 0.0
        %1840 = vmatpush1.xpose.msra.mxu0 0.0
        %1841 = vmatprep.subr.mxu0 0.0
        %1842 = vmatpush1.xpose.msra.mxu0 0.0
        %1843 = vmatprep.subr.mxu0 0.0
        %1844 = vmatpush1.xpose.msra.mxu0 0.0
        %1845 = vmatprep.subr.mxu0 0.0
        %1846 = vmatpush1.xpose.msra.mxu0 0.0
        %1847 = vmatprep.subr.mxu0 0.0
        %1848 = vmatpush1.xpose.msra.mxu0 0.0
        %1849 = vmatprep.subr.mxu0 0.0
        %1850 = vmatpush1.xpose.msra.mxu0 0.0
        %1851 = vmatprep.subr.mxu0 0.0
        %1852 = vmatpush1.xpose.msra.mxu0 0.0
        %1853 = vmatprep.subr.mxu0 0.0
        %1854 = vmatpush1.xpose.msra.mxu0 0.0
        %1855 = vmatprep.subr.mxu0 0.0
        %1856 = vmatpush1.xpose.msra.mxu0 0.0
        %1857 = vmatprep.subr.mxu0 0.0
        %1858 = vmatpush1.xpose.msra.mxu0 0.0
        %1859 = vmatprep.subr.mxu0 0.0
        %1860 = vmatpush1.xpose.msra.mxu0 0.0
        %1861 = vmatprep.subr.mxu0 0.0
        %1862 = vmatpush1.xpose.msra.mxu0 0.0
        %1863 = vmatprep.subr.mxu0 0.0
        %1864 = vmatpush1.xpose.msra.mxu0 0.0
        %1865 = vmatprep.subr.mxu0 0.0
        %1866 = vmatpush1.xpose.msra.mxu0 0.0
        %1867 = vmatprep.subr.mxu0 0.0
        %1868 = vmatpush1.xpose.msra.mxu0 0.0
        %1869 = vmatprep.subr.mxu0 0.0
        %1870 = vmatpush1.xpose.msra.mxu0 0.0
        %1871 = vmatprep.subr.mxu0 0.0
        %1872 = vmatpush1.xpose.msra.mxu0 0.0
        %1873 = vmatprep.subr.mxu0 0.0
        %1874 = vmatpush1.xpose.msra.mxu0 0.0
        %1875 = vmatprep.subr.mxu0 0.0
        %1876 = vmatpush1.xpose.msra.mxu0 0.0
        %1877 = vmatprep.subr.mxu0 0.0
        %1878 = vmatpush1.xpose.msra.mxu0 0.0
        %1879 = vmatprep.subr.mxu0 0.0
        %1880 = vmatpush1.xpose.msra.mxu0 0.0
        %1881 = vmatprep.subr.mxu0 0.0
        %1882 = vmatpush1.xpose.msra.mxu0 0.0
        %1883 = vmatprep.subr.mxu0 0.0
        %1884 = vmatpush1.xpose.msra.mxu0 0.0
        %1885 = vmatprep.subr.mxu0 0.0
        %1886 = vmatpush1.xpose.msra.mxu0 0.0
        %1887 = vmatprep.subr.mxu0 0.0
        %1888 = vmatpush1.xpose.msra.mxu0 0.0
        %1889 = vmatprep.subr.mxu0 0.0
        %1890 = vmatpush1.xpose.msra.mxu0 0.0
        %1891 = vmatprep.subr.mxu0 0.0
        %1892 = vmatpush1.xpose.msra.mxu0 0.0
        %1893 = vmatprep.subr.mxu0 0.0
        %1894 = vmatpush1.xpose.msra.mxu0 0.0
        %1895 = vmatprep.subr.mxu0 0.0
        %1896 = vmatpush1.xpose.msra.mxu0 0.0
        %1897 = vmatprep.subr.mxu0 0.0
        %1898 = vmatpush1.xpose.msra.mxu0 0.0
        %1899 = vmatprep.mubr.f32.mxu0 0.0
        %1900 = vmatmul.mubr.f32.gmra.mrb[0].mxu0 %v1831
        %v1901 = vpop.f32.mrb[0].mxu0
        %v1902 = vadd.f32 0.0, %v1901
        %v1903 = vpop.f32.mrb[0].mxu0
        %1904 = vdwg.mxu0
        %1905 = vxpose.xlu0.b32.start [1/16] %v1377, 128
        %1906 = vxpose.xlu0.b32.cont [2/16] 0.0, 128
        %1907 = vxpose.xlu0.b32.cont [3/16] 0.0, 128
        %1908 = vxpose.xlu0.b32.cont [4/16] 0.0, 128
        %1909 = vxpose.xlu0.b32.cont [5/16] 0.0, 128
        %1910 = vxpose.xlu0.b32.cont [6/16] 0.0, 128
        %1911 = vxpose.xlu0.b32.cont [7/16] 0.0, 128
        %1912 = vxpose.xlu0.b32.cont [8/16] 0.0, 128
        %1913 = vxpose.xlu0.b32.cont [9/16] 0.0, 128
        %1914 = vxpose.xlu0.b32.cont [10/16] 0.0, 128
        %1915 = vxpose.xlu0.b32.cont [11/16] 0.0, 128
        %1916 = vxpose.xlu0.b32.cont [12/16] 0.0, 128
        %1917 = vxpose.xlu0.b32.cont [13/16] 0.0, 128
        %1918 = vxpose.xlu0.b32.cont [14/16] 0.0, 128
        %1919 = vxpose.xlu0.b32.cont [15/16] 0.0, 128
        %1920 = vxpose.xlu0.b32.end [16/16] 0.0, 128
        %v1921 = vpop.trf.xlu0
        %v1922 = vpop.trf.xlu0
        %v1923 = vpop.trf.xlu0
        %v1924 = vpop.trf.xlu0
        %v1925 = vpop.trf.xlu0
        %v1926 = vpop.trf.xlu0
        %v1927 = vpop.trf.xlu0
        %v1928 = vpop.trf.xlu0
        %v1929 = vpop.trf.xlu0
        %v1930 = vpop.trf.xlu0
        %v1931 = vpop.trf.xlu0
        %v1932 = vpop.trf.xlu0
        %v1933 = vpop.trf.xlu0
        %v1934 = vpop.trf.xlu0
        %v1935 = vpop.trf.xlu0
        %v1936 = vpop.trf.xlu0
        %1937 = vxpose.xlu0.b32.start [1/16] %v1452, 128
        %1938 = vxpose.xlu0.b32.cont [2/16] 0.0, 128
        %1939 = vxpose.xlu0.b32.cont [3/16] 0.0, 128
        %1940 = vxpose.xlu0.b32.cont [4/16] 0.0, 128
        %1941 = vxpose.xlu0.b32.cont [5/16] 0.0, 128
        %1942 = vxpose.xlu0.b32.cont [6/16] 0.0, 128
        %1943 = vxpose.xlu0.b32.cont [7/16] 0.0, 128
        %1944 = vxpose.xlu0.b32.cont [8/16] 0.0, 128
        %1945 = vxpose.xlu0.b32.cont [9/16] 0.0, 128
        %1946 = vxpose.xlu0.b32.cont [10/16] 0.0, 128
        %1947 = vxpose.xlu0.b32.cont [11/16] 0.0, 128
        %1948 = vxpose.xlu0.b32.cont [12/16] 0.0, 128
        %1949 = vxpose.xlu0.b32.cont [13/16] 0.0, 128
        %1950 = vxpose.xlu0.b32.cont [14/16] 0.0, 128
        %1951 = vxpose.xlu0.b32.cont [15/16] 0.0, 128
        %1952 = vxpose.xlu0.b32.end [16/16] 0.0, 128
        %v1953 = vpop.trf.xlu0
        %v1954 = vpop.trf.xlu0
        %v1955 = vpop.trf.xlu0
        %v1956 = vpop.trf.xlu0
        %v1957 = vpop.trf.xlu0
        %v1958 = vpop.trf.xlu0
        %v1959 = vpop.trf.xlu0
        %v1960 = vpop.trf.xlu0
        %v1961 = vpop.trf.xlu0
        %v1962 = vpop.trf.xlu0
        %v1963 = vpop.trf.xlu0
        %v1964 = vpop.trf.xlu0
        %v1965 = vpop.trf.xlu0
        %v1966 = vpop.trf.xlu0
        %v1967 = vpop.trf.xlu0
        %v1968 = vpop.trf.xlu0
        %1969 = vxpose.xlu0.b32.start [1/16] %v1527, 128
        %1970 = vxpose.xlu0.b32.cont [2/16] 0.0, 128
        %1971 = vxpose.xlu0.b32.cont [3/16] 0.0, 128
        %1972 = vxpose.xlu0.b32.cont [4/16] 0.0, 128
        %1973 = vxpose.xlu0.b32.cont [5/16] 0.0, 128
        %1974 = vxpose.xlu0.b32.cont [6/16] 0.0, 128
        %1975 = vxpose.xlu0.b32.cont [7/16] 0.0, 128
        %1976 = vxpose.xlu0.b32.cont [8/16] 0.0, 128
        %1977 = vxpose.xlu0.b32.cont [9/16] 0.0, 128
        %1978 = vxpose.xlu0.b32.cont [10/16] 0.0, 128
        %1979 = vxpose.xlu0.b32.cont [11/16] 0.0, 128
        %1980 = vxpose.xlu0.b32.cont [12/16] 0.0, 128
        %1981 = vxpose.xlu0.b32.cont [13/16] 0.0, 128
        %1982 = vxpose.xlu0.b32.cont [14/16] 0.0, 128
        %1983 = vxpose.xlu0.b32.cont [15/16] 0.0, 128
        %1984 = vxpose.xlu0.b32.end [16/16] 0.0, 128
        %v1985 = vpop.trf.xlu0
        %v1986 = vpop.trf.xlu0
        %v1987 = vpop.trf.xlu0
        %v1988 = vpop.trf.xlu0
        %v1989 = vpop.trf.xlu0
        %v1990 = vpop.trf.xlu0
        %v1991 = vpop.trf.xlu0
        %v1992 = vpop.trf.xlu0
        %v1993 = vpop.trf.xlu0
        %v1994 = vpop.trf.xlu0
        %v1995 = vpop.trf.xlu0
        %v1996 = vpop.trf.xlu0
        %v1997 = vpop.trf.xlu0
        %v1998 = vpop.trf.xlu0
        %v1999 = vpop.trf.xlu0
        %v2000 = vpop.trf.xlu0
        %2001 = vxpose.xlu0.b32.start [1/16] %v1602, 128
        %2002 = vxpose.xlu0.b32.cont [2/16] 0.0, 128
        %2003 = vxpose.xlu0.b32.cont [3/16] 0.0, 128
        %2004 = vxpose.xlu0.b32.cont [4/16] 0.0, 128
        %2005 = vxpose.xlu0.b32.cont [5/16] 0.0, 128
        %2006 = vxpose.xlu0.b32.cont [6/16] 0.0, 128
        %2007 = vxpose.xlu0.b32.cont [7/16] 0.0, 128
        %2008 = vxpose.xlu0.b32.cont [8/16] 0.0, 128
        %2009 = vxpose.xlu0.b32.cont [9/16] 0.0, 128
        %2010 = vxpose.xlu0.b32.cont [10/16] 0.0, 128
        %2011 = vxpose.xlu0.b32.cont [11/16] 0.0, 128
        %2012 = vxpose.xlu0.b32.cont [12/16] 0.0, 128
        %2013 = vxpose.xlu0.b32.cont [13/16] 0.0, 128
        %2014 = vxpose.xlu0.b32.cont [14/16] 0.0, 128
        %2015 = vxpose.xlu0.b32.cont [15/16] 0.0, 128
        %2016 = vxpose.xlu0.b32.end [16/16] 0.0, 128
        %v2017 = vpop.trf.xlu0
        %v2018 = vpop.trf.xlu0
        %v2019 = vpop.trf.xlu0
        %v2020 = vpop.trf.xlu0
        %v2021 = vpop.trf.xlu0
        %v2022 = vpop.trf.xlu0
        %v2023 = vpop.trf.xlu0
        %v2024 = vpop.trf.xlu0
        %v2025 = vpop.trf.xlu0
        %v2026 = vpop.trf.xlu0
        %v2027 = vpop.trf.xlu0
        %v2028 = vpop.trf.xlu0
        %v2029 = vpop.trf.xlu0
        %v2030 = vpop.trf.xlu0
        %v2031 = vpop.trf.xlu0
        %v2032 = vpop.trf.xlu0
        %2033 = vxpose.xlu0.b32.start [1/16] %v1677, 128
        %2034 = vxpose.xlu0.b32.cont [2/16] 0.0, 128
        %2035 = vxpose.xlu0.b32.cont [3/16] 0.0, 128
        %2036 = vxpose.xlu0.b32.cont [4/16] 0.0, 128
        %2037 = vxpose.xlu0.b32.cont [5/16] 0.0, 128
        %2038 = vxpose.xlu0.b32.cont [6/16] 0.0, 128
        %2039 = vxpose.xlu0.b32.cont [7/16] 0.0, 128
        %2040 = vxpose.xlu0.b32.cont [8/16] 0.0, 128
        %2041 = vxpose.xlu0.b32.cont [9/16] 0.0, 128
        %2042 = vxpose.xlu0.b32.cont [10/16] 0.0, 128
        %2043 = vxpose.xlu0.b32.cont [11/16] 0.0, 128
        %2044 = vxpose.xlu0.b32.cont [12/16] 0.0, 128
        %2045 = vxpose.xlu0.b32.cont [13/16] 0.0, 128
        %2046 = vxpose.xlu0.b32.cont [14/16] 0.0, 128
        %2047 = vxpose.xlu0.b32.cont [15/16] 0.0, 128
        %2048 = vxpose.xlu0.b32.end [16/16] 0.0, 128
        %v2049 = vpop.trf.xlu0
        %v2050 = vpop.trf.xlu0
        %v2051 = vpop.trf.xlu0
        %v2052 = vpop.trf.xlu0
        %v2053 = vpop.trf.xlu0
        %v2054 = vpop.trf.xlu0
        %v2055 = vpop.trf.xlu0
        %v2056 = vpop.trf.xlu0
        %v2057 = vpop.trf.xlu0
        %v2058 = vpop.trf.xlu0
        %v2059 = vpop.trf.xlu0
        %v2060 = vpop.trf.xlu0
        %v2061 = vpop.trf.xlu0
        %v2062 = vpop.trf.xlu0
        %v2063 = vpop.trf.xlu0
        %v2064 = vpop.trf.xlu0
        %2065 = vxpose.xlu0.b32.start [1/16] %v1752, 128
        %2066 = vxpose.xlu0.b32.cont [2/16] 0.0, 128
        %2067 = vxpose.xlu0.b32.cont [3/16] 0.0, 128
        %2068 = vxpose.xlu0.b32.cont [4/16] 0.0, 128
        %2069 = vxpose.xlu0.b32.cont [5/16] 0.0, 128
        %2070 = vxpose.xlu0.b32.cont [6/16] 0.0, 128
        %2071 = vxpose.xlu0.b32.cont [7/16] 0.0, 128
        %2072 = vxpose.xlu0.b32.cont [8/16] 0.0, 128
        %2073 = vxpose.xlu0.b32.cont [9/16] 0.0, 128
        %2074 = vxpose.xlu0.b32.cont [10/16] 0.0, 128
        %2075 = vxpose.xlu0.b32.cont [11/16] 0.0, 128
        %2076 = vxpose.xlu0.b32.cont [12/16] 0.0, 128
        %2077 = vxpose.xlu0.b32.cont [13/16] 0.0, 128
        %2078 = vxpose.xlu0.b32.cont [14/16] 0.0, 128
        %2079 = vxpose.xlu0.b32.cont [15/16] 0.0, 128
        %2080 = vxpose.xlu0.b32.end [16/16] 0.0, 128
        %v2081 = vpop.trf.xlu0
        %v2082 = vpop.trf.xlu0
        %v2083 = vpop.trf.xlu0
        %v2084 = vpop.trf.xlu0
        %v2085 = vpop.trf.xlu0
        %v2086 = vpop.trf.xlu0
        %v2087 = vpop.trf.xlu0
        %v2088 = vpop.trf.xlu0
        %v2089 = vpop.trf.xlu0
        %v2090 = vpop.trf.xlu0
        %v2091 = vpop.trf.xlu0
        %v2092 = vpop.trf.xlu0
        %v2093 = vpop.trf.xlu0
        %v2094 = vpop.trf.xlu0
        %v2095 = vpop.trf.xlu0
        %v2096 = vpop.trf.xlu0
        %2097 = vxpose.xlu0.b32.start [1/16] %v1827, 128
        %2098 = vxpose.xlu0.b32.cont [2/16] 0.0, 128
        %2099 = vxpose.xlu0.b32.cont [3/16] 0.0, 128
        %2100 = vxpose.xlu0.b32.cont [4/16] 0.0, 128
        %2101 = vxpose.xlu0.b32.cont [5/16] 0.0, 128
        %2102 = vxpose.xlu0.b32.cont [6/16] 0.0, 128
        %2103 = vxpose.xlu0.b32.cont [7/16] 0.0, 128
        %2104 = vxpose.xlu0.b32.cont [8/16] 0.0, 128
        %2105 = vxpose.xlu0.b32.cont [9/16] 0.0, 128
        %2106 = vxpose.xlu0.b32.cont [10/16] 0.0, 128
        %2107 = vxpose.xlu0.b32.cont [11/16] 0.0, 128
        %2108 = vxpose.xlu0.b32.cont [12/16] 0.0, 128
        %2109 = vxpose.xlu0.b32.cont [13/16] 0.0, 128
        %2110 = vxpose.xlu0.b32.cont [14/16] 0.0, 128
        %2111 = vxpose.xlu0.b32.cont [15/16] 0.0, 128
        %2112 = vxpose.xlu0.b32.end [16/16] 0.0, 128
        %v2113 = vpop.trf.xlu0
        %v2114 = vpop.trf.xlu0
        %v2115 = vpop.trf.xlu0
        %v2116 = vpop.trf.xlu0
        %v2117 = vpop.trf.xlu0
        %v2118 = vpop.trf.xlu0
        %v2119 = vpop.trf.xlu0
        %v2120 = vpop.trf.xlu0
        %v2121 = vpop.trf.xlu0
        %v2122 = vpop.trf.xlu0
        %v2123 = vpop.trf.xlu0
        %v2124 = vpop.trf.xlu0
        %v2125 = vpop.trf.xlu0
        %v2126 = vpop.trf.xlu0
        %v2127 = vpop.trf.xlu0
        %v2128 = vpop.trf.xlu0
        %2129 = vxpose.xlu0.b32.start [1/16] %v1902, 128
        %2130 = vxpose.xlu0.b32.cont [2/16] 0.0, 128
        %2131 = vxpose.xlu0.b32.cont [3/16] 0.0, 128
        %2132 = vxpose.xlu0.b32.cont [4/16] 0.0, 128
        %2133 = vxpose.xlu0.b32.cont [5/16] 0.0, 128
        %2134 = vxpose.xlu0.b32.cont [6/16] 0.0, 128
        %2135 = vxpose.xlu0.b32.cont [7/16] 0.0, 128
        %2136 = vxpose.xlu0.b32.cont [8/16] 0.0, 128
        %2137 = vxpose.xlu0.b32.cont [9/16] 0.0, 128
        %2138 = vxpose.xlu0.b32.cont [10/16] 0.0, 128
        %2139 = vxpose.xlu0.b32.cont [11/16] 0.0, 128
        %2140 = vxpose.xlu0.b32.cont [12/16] 0.0, 128
        %2141 = vxpose.xlu0.b32.cont [13/16] 0.0, 128
        %2142 = vxpose.xlu0.b32.cont [14/16] 0.0, 128
        %2143 = vxpose.xlu0.b32.cont [15/16] 0.0, 128
        %2144 = vxpose.xlu0.b32.end [16/16] 0.0, 128
        %v2145 = vpop.trf.xlu0
        %v2146 = vpop.trf.xlu0
        %v2147 = vpop.trf.xlu0
        %v2148 = vpop.trf.xlu0
        %v2149 = vpop.trf.xlu0
        %v2150 = vpop.trf.xlu0
        %v2151 = vpop.trf.xlu0
        %v2152 = vpop.trf.xlu0
        %v2153 = vpop.trf.xlu0
        %v2154 = vpop.trf.xlu0
        %v2155 = vpop.trf.xlu0
        %v2156 = vpop.trf.xlu0
        %v2157 = vpop.trf.xlu0
        %v2158 = vpop.trf.xlu0
        %v2159 = vpop.trf.xlu0
        %v2160 = vpop.trf.xlu0
        %v2161 = vcombine.low %v1921, %v1985
        %v2163 = vunpack.c.l.s4 1983009808
        %v2164 = vunpack.c.0.s8 %v2163
        %v2165 = vlaneseq
        %v2166 = vshrl.u32 %v2165, 7
        %v2167 = vsub.s32 %v2164, %v2166
        %v2168 = vrot.slane %v2161, %v2167
        %v2169 = vcombine.low %v1953, %v2017
        %v2171 = vunpack.c.l.s4 1983009808
        %v2172 = vunpack.c.0.s8 %v2171
        %v2173 = vlaneseq
        %v2174 = vshrl.u32 %v2173, 7
        %v2175 = vsub.s32 %v2172, %v2174
        %v2176 = vrot.slane %v2169, %v2175
        %v2177 = vcombine.low %v2049, %v2113
        %v2179 = vunpack.c.l.s4 1983009808
        %v2180 = vunpack.c.0.s8 %v2179
        %v2181 = vlaneseq
        %v2182 = vshrl.u32 %v2181, 7
        %v2183 = vsub.s32 %v2180, %v2182
        %v2184 = vrot.slane %v2177, %v2183
        %v2185 = vcombine.low %v2081, %v2145
        %v2187 = vunpack.c.l.s4 1983009808
        %v2188 = vunpack.c.0.s8 %v2187
        %v2189 = vlaneseq
        %v2190 = vshrl.u32 %v2189, 7
        %v2191 = vsub.s32 %v2188, %v2190
        %v2192 = vrot.slane %v2185, %v2191
        %v2193 = vcombine.low %v2168, %v2176
        %v2194 = vcombine.high %v2168, %v2176
        %v2196 = vunpack.c.l.s4 1934713408
        %v2197 = vunpack.c.0.s8 %v2196
        %v2198 = vlaneseq
        %v2199 = vshrl.u32 %v2198, 7
        %v2200 = vsub.s32 %v2197, %v2199
        %v2201 = vrot.slane %v2193, %v2200
        %v2203 = vunpack.c.l.s4 1934713408
        %v2204 = vunpack.c.0.s8 %v2203
        %v2205 = vlaneseq
        %v2206 = vshrl.u32 %v2205, 7
        %v2207 = vsub.s32 %v2204, %v2206
        %v2208 = vrot.slane %v2194, %v2207
        %v2209 = vcombine.low %v2184, %v2192
        %v2210 = vcombine.high %v2184, %v2192
        %v2212 = vunpack.c.l.s4 1934713408
        %v2213 = vunpack.c.0.s8 %v2212
        %v2214 = vlaneseq
        %v2215 = vshrl.u32 %v2214, 7
        %v2216 = vsub.s32 %v2213, %v2215
        %v2217 = vrot.slane %v2209, %v2216
        %v2219 = vunpack.c.l.s4 1934713408
        %v2220 = vunpack.c.0.s8 %v2219
        %v2221 = vlaneseq
        %v2222 = vshrl.u32 %v2221, 7
        %v2223 = vsub.s32 %v2220, %v2222
        %v2224 = vrot.slane %v2210, %v2223
        %v2225 = vcombine.low %v2201, %v2217
        %v2226 = vcombine.high %v2201, %v2217
        %v2227 = vcombine.low %v2208, %v2224
        %v2228 = vcombine.high %v2208, %v2224
        %2229 = vxpose.xlu0.b32.start [1/16] %v978, 128
        %2230 = vxpose.xlu0.b32.cont [2/16] 0.0, 128
        %2231 = vxpose.xlu0.b32.cont [3/16] 0.0, 128
        %2232 = vxpose.xlu0.b32.cont [4/16] 0.0, 128
        %2233 = vxpose.xlu0.b32.cont [5/16] 0.0, 128
        %2234 = vxpose.xlu0.b32.cont [6/16] 0.0, 128
        %2235 = vxpose.xlu0.b32.cont [7/16] 0.0, 128
        %2236 = vxpose.xlu0.b32.cont [8/16] 0.0, 128
        %2237 = vxpose.xlu0.b32.cont [9/16] 0.0, 128
        %2238 = vxpose.xlu0.b32.cont [10/16] 0.0, 128
        %2239 = vxpose.xlu0.b32.cont [11/16] 0.0, 128
        %2240 = vxpose.xlu0.b32.cont [12/16] 0.0, 128
        %2241 = vxpose.xlu0.b32.cont [13/16] 0.0, 128
        %2242 = vxpose.xlu0.b32.cont [14/16] 0.0, 128
        %2243 = vxpose.xlu0.b32.cont [15/16] 0.0, 128
        %2244 = vxpose.xlu0.b32.end [16/16] 0.0, 128
        %v2245 = vpop.trf.xlu0
        %v2246 = vpop.trf.xlu0
        %v2247 = vpop.trf.xlu0
        %v2248 = vpop.trf.xlu0
        %v2249 = vpop.trf.xlu0
        %v2250 = vpop.trf.xlu0
        %v2251 = vpop.trf.xlu0
        %v2252 = vpop.trf.xlu0
        %v2253 = vpop.trf.xlu0
        %v2254 = vpop.trf.xlu0
        %v2255 = vpop.trf.xlu0
        %v2256 = vpop.trf.xlu0
        %v2257 = vpop.trf.xlu0
        %v2258 = vpop.trf.xlu0
        %v2259 = vpop.trf.xlu0
        %v2260 = vpop.trf.xlu0
        %2261 = vxpose.xlu0.b32.start [1/16] %v1002, 128
        %2262 = vxpose.xlu0.b32.cont [2/16] 0.0, 128
        %2263 = vxpose.xlu0.b32.cont [3/16] 0.0, 128
        %2264 = vxpose.xlu0.b32.cont [4/16] 0.0, 128
        %2265 = vxpose.xlu0.b32.cont [5/16] 0.0, 128
        %2266 = vxpose.xlu0.b32.cont [6/16] 0.0, 128
        %2267 = vxpose.xlu0.b32.cont [7/16] 0.0, 128
        %2268 = vxpose.xlu0.b32.cont [8/16] 0.0, 128
        %2269 = vxpose.xlu0.b32.cont [9/16] 0.0, 128
        %2270 = vxpose.xlu0.b32.cont [10/16] 0.0, 128
        %2271 = vxpose.xlu0.b32.cont [11/16] 0.0, 128
        %2272 = vxpose.xlu0.b32.cont [12/16] 0.0, 128
        %2273 = vxpose.xlu0.b32.cont [13/16] 0.0, 128
        %2274 = vxpose.xlu0.b32.cont [14/16] 0.0, 128
        %2275 = vxpose.xlu0.b32.cont [15/16] 0.0, 128
        %2276 = vxpose.xlu0.b32.end [16/16] 0.0, 128
        %v2277 = vpop.trf.xlu0
        %v2278 = vpop.trf.xlu0
        %v2279 = vpop.trf.xlu0
        %v2280 = vpop.trf.xlu0
        %v2281 = vpop.trf.xlu0
        %v2282 = vpop.trf.xlu0
        %v2283 = vpop.trf.xlu0
        %v2284 = vpop.trf.xlu0
        %v2285 = vpop.trf.xlu0
        %v2286 = vpop.trf.xlu0
        %v2287 = vpop.trf.xlu0
        %v2288 = vpop.trf.xlu0
        %v2289 = vpop.trf.xlu0
        %v2290 = vpop.trf.xlu0
        %v2291 = vpop.trf.xlu0
        %v2292 = vpop.trf.xlu0
        %2293 = vxpose.xlu0.b32.start [1/16] %v985, 128
        %2294 = vxpose.xlu0.b32.cont [2/16] 0.0, 128
        %2295 = vxpose.xlu0.b32.cont [3/16] 0.0, 128
        %2296 = vxpose.xlu0.b32.cont [4/16] 0.0, 128
        %2297 = vxpose.xlu0.b32.cont [5/16] 0.0, 128
        %2298 = vxpose.xlu0.b32.cont [6/16] 0.0, 128
        %2299 = vxpose.xlu0.b32.cont [7/16] 0.0, 128
        %2300 = vxpose.xlu0.b32.cont [8/16] 0.0, 128
        %2301 = vxpose.xlu0.b32.cont [9/16] 0.0, 128
        %2302 = vxpose.xlu0.b32.cont [10/16] 0.0, 128
        %2303 = vxpose.xlu0.b32.cont [11/16] 0.0, 128
        %2304 = vxpose.xlu0.b32.cont [12/16] 0.0, 128
        %2305 = vxpose.xlu0.b32.cont [13/16] 0.0, 128
        %2306 = vxpose.xlu0.b32.cont [14/16] 0.0, 128
        %2307 = vxpose.xlu0.b32.cont [15/16] 0.0, 128
        %2308 = vxpose.xlu0.b32.end [16/16] 0.0, 128
        %v2309 = vpop.trf.xlu0
        %v2310 = vpop.trf.xlu0
        %v2311 = vpop.trf.xlu0
        %v2312 = vpop.trf.xlu0
        %v2313 = vpop.trf.xlu0
        %v2314 = vpop.trf.xlu0
        %v2315 = vpop.trf.xlu0
        %v2316 = vpop.trf.xlu0
        %v2317 = vpop.trf.xlu0
        %v2318 = vpop.trf.xlu0
        %v2319 = vpop.trf.xlu0
        %v2320 = vpop.trf.xlu0
        %v2321 = vpop.trf.xlu0
        %v2322 = vpop.trf.xlu0
        %v2323 = vpop.trf.xlu0
        %v2324 = vpop.trf.xlu0
        %2325 = vxpose.xlu0.b32.start [1/16] %v1003, 128
        %2326 = vxpose.xlu0.b32.cont [2/16] 0.0, 128
        %2327 = vxpose.xlu0.b32.cont [3/16] 0.0, 128
        %2328 = vxpose.xlu0.b32.cont [4/16] 0.0, 128
        %2329 = vxpose.xlu0.b32.cont [5/16] 0.0, 128
        %2330 = vxpose.xlu0.b32.cont [6/16] 0.0, 128
        %2331 = vxpose.xlu0.b32.cont [7/16] 0.0, 128
        %2332 = vxpose.xlu0.b32.cont [8/16] 0.0, 128
        %2333 = vxpose.xlu0.b32.cont [9/16] 0.0, 128
        %2334 = vxpose.xlu0.b32.cont [10/16] 0.0, 128
        %2335 = vxpose.xlu0.b32.cont [11/16] 0.0, 128
        %2336 = vxpose.xlu0.b32.cont [12/16] 0.0, 128
        %2337 = vxpose.xlu0.b32.cont [13/16] 0.0, 128
        %2338 = vxpose.xlu0.b32.cont [14/16] 0.0, 128
        %2339 = vxpose.xlu0.b32.cont [15/16] 0.0, 128
        %2340 = vxpose.xlu0.b32.end [16/16] 0.0, 128
        %v2341 = vpop.trf.xlu0
        %v2342 = vpop.trf.xlu0
        %v2343 = vpop.trf.xlu0
        %v2344 = vpop.trf.xlu0
        %v2345 = vpop.trf.xlu0
        %v2346 = vpop.trf.xlu0
        %v2347 = vpop.trf.xlu0
        %v2348 = vpop.trf.xlu0
        %v2349 = vpop.trf.xlu0
        %v2350 = vpop.trf.xlu0
        %v2351 = vpop.trf.xlu0
        %v2352 = vpop.trf.xlu0
        %v2353 = vpop.trf.xlu0
        %v2354 = vpop.trf.xlu0
        %v2355 = vpop.trf.xlu0
        %v2356 = vpop.trf.xlu0
        %2357 = vxpose.xlu0.b32.start [1/16] %v994, 128
        %2358 = vxpose.xlu0.b32.cont [2/16] 0.0, 128
        %2359 = vxpose.xlu0.b32.cont [3/16] 0.0, 128
        %2360 = vxpose.xlu0.b32.cont [4/16] 0.0, 128
        %2361 = vxpose.xlu0.b32.cont [5/16] 0.0, 128
        %2362 = vxpose.xlu0.b32.cont [6/16] 0.0, 128
        %2363 = vxpose.xlu0.b32.cont [7/16] 0.0, 128
        %2364 = vxpose.xlu0.b32.cont [8/16] 0.0, 128
        %2365 = vxpose.xlu0.b32.cont [9/16] 0.0, 128
        %2366 = vxpose.xlu0.b32.cont [10/16] 0.0, 128
        %2367 = vxpose.xlu0.b32.cont [11/16] 0.0, 128
        %2368 = vxpose.xlu0.b32.cont [12/16] 0.0, 128
        %2369 = vxpose.xlu0.b32.cont [13/16] 0.0, 128
        %2370 = vxpose.xlu0.b32.cont [14/16] 0.0, 128
        %2371 = vxpose.xlu0.b32.cont [15/16] 0.0, 128
        %2372 = vxpose.xlu0.b32.end [16/16] 0.0, 128
        %v2373 = vpop.trf.xlu0
        %v2374 = vpop.trf.xlu0
        %v2375 = vpop.trf.xlu0
        %v2376 = vpop.trf.xlu0
        %v2377 = vpop.trf.xlu0
        %v2378 = vpop.trf.xlu0
        %v2379 = vpop.trf.xlu0
        %v2380 = vpop.trf.xlu0
        %v2381 = vpop.trf.xlu0
        %v2382 = vpop.trf.xlu0
        %v2383 = vpop.trf.xlu0
        %v2384 = vpop.trf.xlu0
        %v2385 = vpop.trf.xlu0
        %v2386 = vpop.trf.xlu0
        %v2387 = vpop.trf.xlu0
        %v2388 = vpop.trf.xlu0
        %2389 = vxpose.xlu0.b32.start [1/16] %v1004, 128
        %2390 = vxpose.xlu0.b32.cont [2/16] 0.0, 128
        %2391 = vxpose.xlu0.b32.cont [3/16] 0.0, 128
        %2392 = vxpose.xlu0.b32.cont [4/16] 0.0, 128
        %2393 = vxpose.xlu0.b32.cont [5/16] 0.0, 128
        %2394 = vxpose.xlu0.b32.cont [6/16] 0.0, 128
        %2395 = vxpose.xlu0.b32.cont [7/16] 0.0, 128
        %2396 = vxpose.xlu0.b32.cont [8/16] 0.0, 128
        %2397 = vxpose.xlu0.b32.cont [9/16] 0.0, 128
        %2398 = vxpose.xlu0.b32.cont [10/16] 0.0, 128
        %2399 = vxpose.xlu0.b32.cont [11/16] 0.0, 128
        %2400 = vxpose.xlu0.b32.cont [12/16] 0.0, 128
        %2401 = vxpose.xlu0.b32.cont [13/16] 0.0, 128
        %2402 = vxpose.xlu0.b32.cont [14/16] 0.0, 128
        %2403 = vxpose.xlu0.b32.cont [15/16] 0.0, 128
        %2404 = vxpose.xlu0.b32.end [16/16] 0.0, 128
        %v2405 = vpop.trf.xlu0
        %v2406 = vpop.trf.xlu0
        %v2407 = vpop.trf.xlu0
        %v2408 = vpop.trf.xlu0
        %v2409 = vpop.trf.xlu0
        %v2410 = vpop.trf.xlu0
        %v2411 = vpop.trf.xlu0
        %v2412 = vpop.trf.xlu0
        %v2413 = vpop.trf.xlu0
        %v2414 = vpop.trf.xlu0
        %v2415 = vpop.trf.xlu0
        %v2416 = vpop.trf.xlu0
        %v2417 = vpop.trf.xlu0
        %v2418 = vpop.trf.xlu0
        %v2419 = vpop.trf.xlu0
        %v2420 = vpop.trf.xlu0
        %2421 = vxpose.xlu0.b32.start [1/16] %v1001, 128
        %2422 = vxpose.xlu0.b32.cont [2/16] 0.0, 128
        %2423 = vxpose.xlu0.b32.cont [3/16] 0.0, 128
        %2424 = vxpose.xlu0.b32.cont [4/16] 0.0, 128
        %2425 = vxpose.xlu0.b32.cont [5/16] 0.0, 128
        %2426 = vxpose.xlu0.b32.cont [6/16] 0.0, 128
        %2427 = vxpose.xlu0.b32.cont [7/16] 0.0, 128
        %2428 = vxpose.xlu0.b32.cont [8/16] 0.0, 128
        %2429 = vxpose.xlu0.b32.cont [9/16] 0.0, 128
        %2430 = vxpose.xlu0.b32.cont [10/16] 0.0, 128
        %2431 = vxpose.xlu0.b32.cont [11/16] 0.0, 128
        %2432 = vxpose.xlu0.b32.cont [12/16] 0.0, 128
        %2433 = vxpose.xlu0.b32.cont [13/16] 0.0, 128
        %2434 = vxpose.xlu0.b32.cont [14/16] 0.0, 128
        %2435 = vxpose.xlu0.b32.cont [15/16] 0.0, 128
        %2436 = vxpose.xlu0.b32.end [16/16] 0.0, 128
        %v2437 = vpop.trf.xlu0
        %v2438 = vpop.trf.xlu0
        %v2439 = vpop.trf.xlu0
        %v2440 = vpop.trf.xlu0
        %v2441 = vpop.trf.xlu0
        %v2442 = vpop.trf.xlu0
        %v2443 = vpop.trf.xlu0
        %v2444 = vpop.trf.xlu0
        %v2445 = vpop.trf.xlu0
        %v2446 = vpop.trf.xlu0
        %v2447 = vpop.trf.xlu0
        %v2448 = vpop.trf.xlu0
        %v2449 = vpop.trf.xlu0
        %v2450 = vpop.trf.xlu0
        %v2451 = vpop.trf.xlu0
        %v2452 = vpop.trf.xlu0
        %2453 = vxpose.xlu0.b32.start [1/16] %v1005, 128
        %2454 = vxpose.xlu0.b32.cont [2/16] 0.0, 128
        %2455 = vxpose.xlu0.b32.cont [3/16] 0.0, 128
        %2456 = vxpose.xlu0.b32.cont [4/16] 0.0, 128
        %2457 = vxpose.xlu0.b32.cont [5/16] 0.0, 128
        %2458 = vxpose.xlu0.b32.cont [6/16] 0.0, 128
        %2459 = vxpose.xlu0.b32.cont [7/16] 0.0, 128
        %2460 = vxpose.xlu0.b32.cont [8/16] 0.0, 128
        %2461 = vxpose.xlu0.b32.cont [9/16] 0.0, 128
        %2462 = vxpose.xlu0.b32.cont [10/16] 0.0, 128
        %2463 = vxpose.xlu0.b32.cont [11/16] 0.0, 128
        %2464 = vxpose.xlu0.b32.cont [12/16] 0.0, 128
        %2465 = vxpose.xlu0.b32.cont [13/16] 0.0, 128
        %2466 = vxpose.xlu0.b32.cont [14/16] 0.0, 128
        %2467 = vxpose.xlu0.b32.cont [15/16] 0.0, 128
        %2468 = vxpose.xlu0.b32.end [16/16] 0.0, 128
        %v2469 = vpop.trf.xlu0
        %v2470 = vpop.trf.xlu0
        %v2471 = vpop.trf.xlu0
        %v2472 = vpop.trf.xlu0
        %v2473 = vpop.trf.xlu0
        %v2474 = vpop.trf.xlu0
        %v2475 = vpop.trf.xlu0
        %v2476 = vpop.trf.xlu0
        %v2477 = vpop.trf.xlu0
        %v2478 = vpop.trf.xlu0
        %v2479 = vpop.trf.xlu0
        %v2480 = vpop.trf.xlu0
        %v2481 = vpop.trf.xlu0
        %v2482 = vpop.trf.xlu0
        %v2483 = vpop.trf.xlu0
        %v2484 = vpop.trf.xlu0
        %v2485 = vcombine.low %v2245, %v2309
        %v2486 = vcombine.high %v2245, %v2309
        %v2488 = vunpack.c.l.s4 1983009808
        %v2489 = vunpack.c.0.s8 %v2488
        %v2490 = vlaneseq
        %v2491 = vshrl.u32 %v2490, 7
        %v2492 = vsub.s32 %v2489, %v2491
        %v2493 = vrot.slane %v2485, %v2492
        %v2495 = vunpack.c.l.s4 1983009808
        %v2496 = vunpack.c.0.s8 %v2495
        %v2497 = vlaneseq
        %v2498 = vshrl.u32 %v2497, 7
        %v2499 = vsub.s32 %v2496, %v2498
        %v2500 = vrot.slane %v2486, %v2499
        %v2501 = vcombine.low %v2277, %v2341
        %v2502 = vcombine.high %v2277, %v2341
        %v2504 = vunpack.c.l.s4 1983009808
        %v2505 = vunpack.c.0.s8 %v2504
        %v2506 = vlaneseq
        %v2507 = vshrl.u32 %v2506, 7
        %v2508 = vsub.s32 %v2505, %v2507
        %v2509 = vrot.slane %v2501, %v2508
        %v2511 = vunpack.c.l.s4 1983009808
        %v2512 = vunpack.c.0.s8 %v2511
        %v2513 = vlaneseq
        %v2514 = vshrl.u32 %v2513, 7
        %v2515 = vsub.s32 %v2512, %v2514
        %v2516 = vrot.slane %v2502, %v2515
        %v2517 = vcombine.low %v2373, %v2437
        %v2518 = vcombine.high %v2373, %v2437
        %v2520 = vunpack.c.l.s4 1983009808
        %v2521 = vunpack.c.0.s8 %v2520
        %v2522 = vlaneseq
        %v2523 = vshrl.u32 %v2522, 7
        %v2524 = vsub.s32 %v2521, %v2523
        %v2525 = vrot.slane %v2517, %v2524
        %v2527 = vunpack.c.l.s4 1983009808
        %v2528 = vunpack.c.0.s8 %v2527
        %v2529 = vlaneseq
        %v2530 = vshrl.u32 %v2529, 7
        %v2531 = vsub.s32 %v2528, %v2530
        %v2532 = vrot.slane %v2518, %v2531
        %v2533 = vcombine.low %v2405, %v2469
        %v2534 = vcombine.high %v2405, %v2469
        %v2536 = vunpack.c.l.s4 1983009808
        %v2537 = vunpack.c.0.s8 %v2536
        %v2538 = vlaneseq
        %v2539 = vshrl.u32 %v2538, 7
        %v2540 = vsub.s32 %v2537, %v2539
        %v2541 = vrot.slane %v2533, %v2540
        %v2543 = vunpack.c.l.s4 1983009808
        %v2544 = vunpack.c.0.s8 %v2543
        %v2545 = vlaneseq
        %v2546 = vshrl.u32 %v2545, 7
        %v2547 = vsub.s32 %v2544, %v2546
        %v2548 = vrot.slane %v2534, %v2547
        %v2549 = vcombine.low %v2493, %v2509
        %v2550 = vcombine.high %v2493, %v2509
        %v2552 = vunpack.c.l.s4 1934713408
        %v2553 = vunpack.c.0.s8 %v2552
        %v2554 = vlaneseq
        %v2555 = vshrl.u32 %v2554, 7
        %v2556 = vsub.s32 %v2553, %v2555
        %v2557 = vrot.slane %v2549, %v2556
        %v2559 = vunpack.c.l.s4 1934713408
        %v2560 = vunpack.c.0.s8 %v2559
        %v2561 = vlaneseq
        %v2562 = vshrl.u32 %v2561, 7
        %v2563 = vsub.s32 %v2560, %v2562
        %v2564 = vrot.slane %v2550, %v2563
        %v2565 = vcombine.low %v2500, %v2516
        %v2566 = vcombine.high %v2500, %v2516
        %v2568 = vunpack.c.l.s4 1934713408
        %v2569 = vunpack.c.0.s8 %v2568
        %v2570 = vlaneseq
        %v2571 = vshrl.u32 %v2570, 7
        %v2572 = vsub.s32 %v2569, %v2571
        %v2573 = vrot.slane %v2565, %v2572
        %v2575 = vunpack.c.l.s4 1934713408
        %v2576 = vunpack.c.0.s8 %v2575
        %v2577 = vlaneseq
        %v2578 = vshrl.u32 %v2577, 7
        %v2579 = vsub.s32 %v2576, %v2578
        %v2580 = vrot.slane %v2566, %v2579
        %v2581 = vcombine.low %v2525, %v2541
        %v2582 = vcombine.high %v2525, %v2541
        %v2584 = vunpack.c.l.s4 1934713408
        %v2585 = vunpack.c.0.s8 %v2584
        %v2586 = vlaneseq
        %v2587 = vshrl.u32 %v2586, 7
        %v2588 = vsub.s32 %v2585, %v2587
        %v2589 = vrot.slane %v2581, %v2588
        %v2591 = vunpack.c.l.s4 1934713408
        %v2592 = vunpack.c.0.s8 %v2591
        %v2593 = vlaneseq
        %v2594 = vshrl.u32 %v2593, 7
        %v2595 = vsub.s32 %v2592, %v2594
        %v2596 = vrot.slane %v2582, %v2595
        %v2597 = vcombine.low %v2532, %v2548
        %v2598 = vcombine.high %v2532, %v2548
        %v2600 = vunpack.c.l.s4 1934713408
        %v2601 = vunpack.c.0.s8 %v2600
        %v2602 = vlaneseq
        %v2603 = vshrl.u32 %v2602, 7
        %v2604 = vsub.s32 %v2601, %v2603
        %v2605 = vrot.slane %v2597, %v2604
        %v2607 = vunpack.c.l.s4 1934713408
        %v2608 = vunpack.c.0.s8 %v2607
        %v2609 = vlaneseq
        %v2610 = vshrl.u32 %v2609, 7
        %v2611 = vsub.s32 %v2608, %v2610
        %v2612 = vrot.slane %v2598, %v2611
        %v2613 = vcombine.low %v2557, %v2589
        %v2614 = vcombine.high %v2557, %v2589
        %v2615 = vcombine.low %v2564, %v2596
        %v2616 = vcombine.high %v2564, %v2596
        %v2617 = vcombine.low %v2573, %v2605
        %v2618 = vcombine.high %v2573, %v2605
        %v2619 = vcombine.low %v2580, %v2612
        %v2620 = vcombine.high %v2580, %v2612
        %2621 = vxpose.xlu0.b32.start [1/16] %v2613, 128
        %2622 = vxpose.xlu0.b32.cont [2/16] 0.0, 128
        %2623 = vxpose.xlu0.b32.cont [3/16] 0.0, 128
        %2624 = vxpose.xlu0.b32.cont [4/16] 0.0, 128
        %2625 = vxpose.xlu0.b32.cont [5/16] 0.0, 128
        %2626 = vxpose.xlu0.b32.cont [6/16] 0.0, 128
        %2627 = vxpose.xlu0.b32.cont [7/16] 0.0, 128
        %2628 = vxpose.xlu0.b32.cont [8/16] 0.0, 128
        %2629 = vxpose.xlu0.b32.cont [9/16] 0.0, 128
        %2630 = vxpose.xlu0.b32.cont [10/16] 0.0, 128
        %2631 = vxpose.xlu0.b32.cont [11/16] 0.0, 128
        %2632 = vxpose.xlu0.b32.cont [12/16] 0.0, 128
        %2633 = vxpose.xlu0.b32.cont [13/16] 0.0, 128
        %2634 = vxpose.xlu0.b32.cont [14/16] 0.0, 128
        %2635 = vxpose.xlu0.b32.cont [15/16] 0.0, 128
        %2636 = vxpose.xlu0.b32.end [16/16] 0.0, 128
        %v2637 = vpop.trf.xlu0
        %v2638 = vpop.trf.xlu0
        %v2639 = vpop.trf.xlu0
        %v2640 = vpop.trf.xlu0
        %v2641 = vpop.trf.xlu0
        %v2642 = vpop.trf.xlu0
        %v2643 = vpop.trf.xlu0
        %v2644 = vpop.trf.xlu0
        %v2645 = vpop.trf.xlu0
        %v2646 = vpop.trf.xlu0
        %v2647 = vpop.trf.xlu0
        %v2648 = vpop.trf.xlu0
        %v2649 = vpop.trf.xlu0
        %v2650 = vpop.trf.xlu0
        %v2651 = vpop.trf.xlu0
        %v2652 = vpop.trf.xlu0
        %2653 = vxpose.xlu0.b32.start [1/16] %v2614, 128
        %2654 = vxpose.xlu0.b32.cont [2/16] 0.0, 128
        %2655 = vxpose.xlu0.b32.cont [3/16] 0.0, 128
        %2656 = vxpose.xlu0.b32.cont [4/16] 0.0, 128
        %2657 = vxpose.xlu0.b32.cont [5/16] 0.0, 128
        %2658 = vxpose.xlu0.b32.cont [6/16] 0.0, 128
        %2659 = vxpose.xlu0.b32.cont [7/16] 0.0, 128
        %2660 = vxpose.xlu0.b32.cont [8/16] 0.0, 128
        %2661 = vxpose.xlu0.b32.cont [9/16] 0.0, 128
        %2662 = vxpose.xlu0.b32.cont [10/16] 0.0, 128
        %2663 = vxpose.xlu0.b32.cont [11/16] 0.0, 128
        %2664 = vxpose.xlu0.b32.cont [12/16] 0.0, 128
        %2665 = vxpose.xlu0.b32.cont [13/16] 0.0, 128
        %2666 = vxpose.xlu0.b32.cont [14/16] 0.0, 128
        %2667 = vxpose.xlu0.b32.cont [15/16] 0.0, 128
        %2668 = vxpose.xlu0.b32.end [16/16] 0.0, 128
        %v2669 = vpop.trf.xlu0
        %v2670 = vpop.trf.xlu0
        %v2671 = vpop.trf.xlu0
        %v2672 = vpop.trf.xlu0
        %v2673 = vpop.trf.xlu0
        %v2674 = vpop.trf.xlu0
        %v2675 = vpop.trf.xlu0
        %v2676 = vpop.trf.xlu0
        %v2677 = vpop.trf.xlu0
        %v2678 = vpop.trf.xlu0
        %v2679 = vpop.trf.xlu0
        %v2680 = vpop.trf.xlu0
        %v2681 = vpop.trf.xlu0
        %v2682 = vpop.trf.xlu0
        %v2683 = vpop.trf.xlu0
        %v2684 = vpop.trf.xlu0
        %2685 = vxpose.xlu0.b32.start [1/16] %v2615, 128
        %2686 = vxpose.xlu0.b32.cont [2/16] 0.0, 128
        %2687 = vxpose.xlu0.b32.cont [3/16] 0.0, 128
        %2688 = vxpose.xlu0.b32.cont [4/16] 0.0, 128
        %2689 = vxpose.xlu0.b32.cont [5/16] 0.0, 128
        %2690 = vxpose.xlu0.b32.cont [6/16] 0.0, 128
        %2691 = vxpose.xlu0.b32.cont [7/16] 0.0, 128
        %2692 = vxpose.xlu0.b32.cont [8/16] 0.0, 128
        %2693 = vxpose.xlu0.b32.cont [9/16] 0.0, 128
        %2694 = vxpose.xlu0.b32.cont [10/16] 0.0, 128
        %2695 = vxpose.xlu0.b32.cont [11/16] 0.0, 128
        %2696 = vxpose.xlu0.b32.cont [12/16] 0.0, 128
        %2697 = vxpose.xlu0.b32.cont [13/16] 0.0, 128
        %2698 = vxpose.xlu0.b32.cont [14/16] 0.0, 128
        %2699 = vxpose.xlu0.b32.cont [15/16] 0.0, 128
        %2700 = vxpose.xlu0.b32.end [16/16] 0.0, 128
        %v2701 = vpop.trf.xlu0
        %v2702 = vpop.trf.xlu0
        %v2703 = vpop.trf.xlu0
        %v2704 = vpop.trf.xlu0
        %v2705 = vpop.trf.xlu0
        %v2706 = vpop.trf.xlu0
        %v2707 = vpop.trf.xlu0
        %v2708 = vpop.trf.xlu0
        %v2709 = vpop.trf.xlu0
        %v2710 = vpop.trf.xlu0
        %v2711 = vpop.trf.xlu0
        %v2712 = vpop.trf.xlu0
        %v2713 = vpop.trf.xlu0
        %v2714 = vpop.trf.xlu0
        %v2715 = vpop.trf.xlu0
        %v2716 = vpop.trf.xlu0
        %2717 = vxpose.xlu0.b32.start [1/16] %v2616, 128
        %2718 = vxpose.xlu0.b32.cont [2/16] 0.0, 128
        %2719 = vxpose.xlu0.b32.cont [3/16] 0.0, 128
        %2720 = vxpose.xlu0.b32.cont [4/16] 0.0, 128
        %2721 = vxpose.xlu0.b32.cont [5/16] 0.0, 128
        %2722 = vxpose.xlu0.b32.cont [6/16] 0.0, 128
        %2723 = vxpose.xlu0.b32.cont [7/16] 0.0, 128
        %2724 = vxpose.xlu0.b32.cont [8/16] 0.0, 128
        %2725 = vxpose.xlu0.b32.cont [9/16] 0.0, 128
        %2726 = vxpose.xlu0.b32.cont [10/16] 0.0, 128
        %2727 = vxpose.xlu0.b32.cont [11/16] 0.0, 128
        %2728 = vxpose.xlu0.b32.cont [12/16] 0.0, 128
        %2729 = vxpose.xlu0.b32.cont [13/16] 0.0, 128
        %2730 = vxpose.xlu0.b32.cont [14/16] 0.0, 128
        %2731 = vxpose.xlu0.b32.cont [15/16] 0.0, 128
        %2732 = vxpose.xlu0.b32.end [16/16] 0.0, 128
        %v2733 = vpop.trf.xlu0
        %v2734 = vpop.trf.xlu0
        %v2735 = vpop.trf.xlu0
        %v2736 = vpop.trf.xlu0
        %v2737 = vpop.trf.xlu0
        %v2738 = vpop.trf.xlu0
        %v2739 = vpop.trf.xlu0
        %v2740 = vpop.trf.xlu0
        %v2741 = vpop.trf.xlu0
        %v2742 = vpop.trf.xlu0
        %v2743 = vpop.trf.xlu0
        %v2744 = vpop.trf.xlu0
        %v2745 = vpop.trf.xlu0
        %v2746 = vpop.trf.xlu0
        %v2747 = vpop.trf.xlu0
        %v2748 = vpop.trf.xlu0
        %2749 = vxpose.xlu0.b32.start [1/16] %v2617, 128
        %2750 = vxpose.xlu0.b32.cont [2/16] 0.0, 128
        %2751 = vxpose.xlu0.b32.cont [3/16] 0.0, 128
        %2752 = vxpose.xlu0.b32.cont [4/16] 0.0, 128
        %2753 = vxpose.xlu0.b32.cont [5/16] 0.0, 128
        %2754 = vxpose.xlu0.b32.cont [6/16] 0.0, 128
        %2755 = vxpose.xlu0.b32.cont [7/16] 0.0, 128
        %2756 = vxpose.xlu0.b32.cont [8/16] 0.0, 128
        %2757 = vxpose.xlu0.b32.cont [9/16] 0.0, 128
        %2758 = vxpose.xlu0.b32.cont [10/16] 0.0, 128
        %2759 = vxpose.xlu0.b32.cont [11/16] 0.0, 128
        %2760 = vxpose.xlu0.b32.cont [12/16] 0.0, 128
        %2761 = vxpose.xlu0.b32.cont [13/16] 0.0, 128
        %2762 = vxpose.xlu0.b32.cont [14/16] 0.0, 128
        %2763 = vxpose.xlu0.b32.cont [15/16] 0.0, 128
        %2764 = vxpose.xlu0.b32.end [16/16] 0.0, 128
        %v2765 = vpop.trf.xlu0
        %v2766 = vpop.trf.xlu0
        %v2767 = vpop.trf.xlu0
        %v2768 = vpop.trf.xlu0
        %v2769 = vpop.trf.xlu0
        %v2770 = vpop.trf.xlu0
        %v2771 = vpop.trf.xlu0
        %v2772 = vpop.trf.xlu0
        %v2773 = vpop.trf.xlu0
        %v2774 = vpop.trf.xlu0
        %v2775 = vpop.trf.xlu0
        %v2776 = vpop.trf.xlu0
        %v2777 = vpop.trf.xlu0
        %v2778 = vpop.trf.xlu0
        %v2779 = vpop.trf.xlu0
        %v2780 = vpop.trf.xlu0
        %2781 = vxpose.xlu0.b32.start [1/16] %v2618, 128
        %2782 = vxpose.xlu0.b32.cont [2/16] 0.0, 128
        %2783 = vxpose.xlu0.b32.cont [3/16] 0.0, 128
        %2784 = vxpose.xlu0.b32.cont [4/16] 0.0, 128
        %2785 = vxpose.xlu0.b32.cont [5/16] 0.0, 128
        %2786 = vxpose.xlu0.b32.cont [6/16] 0.0, 128
        %2787 = vxpose.xlu0.b32.cont [7/16] 0.0, 128
        %2788 = vxpose.xlu0.b32.cont [8/16] 0.0, 128
        %2789 = vxpose.xlu0.b32.cont [9/16] 0.0, 128
        %2790 = vxpose.xlu0.b32.cont [10/16] 0.0, 128
        %2791 = vxpose.xlu0.b32.cont [11/16] 0.0, 128
        %2792 = vxpose.xlu0.b32.cont [12/16] 0.0, 128
        %2793 = vxpose.xlu0.b32.cont [13/16] 0.0, 128
        %2794 = vxpose.xlu0.b32.cont [14/16] 0.0, 128
        %2795 = vxpose.xlu0.b32.cont [15/16] 0.0, 128
        %2796 = vxpose.xlu0.b32.end [16/16] 0.0, 128
        %v2797 = vpop.trf.xlu0
        %v2798 = vpop.trf.xlu0
        %v2799 = vpop.trf.xlu0
        %v2800 = vpop.trf.xlu0
        %v2801 = vpop.trf.xlu0
        %v2802 = vpop.trf.xlu0
        %v2803 = vpop.trf.xlu0
        %v2804 = vpop.trf.xlu0
        %v2805 = vpop.trf.xlu0
        %v2806 = vpop.trf.xlu0
        %v2807 = vpop.trf.xlu0
        %v2808 = vpop.trf.xlu0
        %v2809 = vpop.trf.xlu0
        %v2810 = vpop.trf.xlu0
        %v2811 = vpop.trf.xlu0
        %v2812 = vpop.trf.xlu0
        %2813 = vxpose.xlu0.b32.start [1/16] %v2619, 128
        %2814 = vxpose.xlu0.b32.cont [2/16] 0.0, 128
        %2815 = vxpose.xlu0.b32.cont [3/16] 0.0, 128
        %2816 = vxpose.xlu0.b32.cont [4/16] 0.0, 128
        %2817 = vxpose.xlu0.b32.cont [5/16] 0.0, 128
        %2818 = vxpose.xlu0.b32.cont [6/16] 0.0, 128
        %2819 = vxpose.xlu0.b32.cont [7/16] 0.0, 128
        %2820 = vxpose.xlu0.b32.cont [8/16] 0.0, 128
        %2821 = vxpose.xlu0.b32.cont [9/16] 0.0, 128
        %2822 = vxpose.xlu0.b32.cont [10/16] 0.0, 128
        %2823 = vxpose.xlu0.b32.cont [11/16] 0.0, 128
        %2824 = vxpose.xlu0.b32.cont [12/16] 0.0, 128
        %2825 = vxpose.xlu0.b32.cont [13/16] 0.0, 128
        %2826 = vxpose.xlu0.b32.cont [14/16] 0.0, 128
        %2827 = vxpose.xlu0.b32.cont [15/16] 0.0, 128
        %2828 = vxpose.xlu0.b32.end [16/16] 0.0, 128
        %v2829 = vpop.trf.xlu0
        %v2830 = vpop.trf.xlu0
        %v2831 = vpop.trf.xlu0
        %v2832 = vpop.trf.xlu0
        %v2833 = vpop.trf.xlu0
        %v2834 = vpop.trf.xlu0
        %v2835 = vpop.trf.xlu0
        %v2836 = vpop.trf.xlu0
        %v2837 = vpop.trf.xlu0
        %v2838 = vpop.trf.xlu0
        %v2839 = vpop.trf.xlu0
        %v2840 = vpop.trf.xlu0
        %v2841 = vpop.trf.xlu0
        %v2842 = vpop.trf.xlu0
        %v2843 = vpop.trf.xlu0
        %v2844 = vpop.trf.xlu0
        %2845 = vxpose.xlu0.b32.start [1/16] %v2620, 128
        %2846 = vxpose.xlu0.b32.cont [2/16] 0.0, 128
        %2847 = vxpose.xlu0.b32.cont [3/16] 0.0, 128
        %2848 = vxpose.xlu0.b32.cont [4/16] 0.0, 128
        %2849 = vxpose.xlu0.b32.cont [5/16] 0.0, 128
        %2850 = vxpose.xlu0.b32.cont [6/16] 0.0, 128
        %2851 = vxpose.xlu0.b32.cont [7/16] 0.0, 128
        %2852 = vxpose.xlu0.b32.cont [8/16] 0.0, 128
        %2853 = vxpose.xlu0.b32.cont [9/16] 0.0, 128
        %2854 = vxpose.xlu0.b32.cont [10/16] 0.0, 128
        %2855 = vxpose.xlu0.b32.cont [11/16] 0.0, 128
        %2856 = vxpose.xlu0.b32.cont [12/16] 0.0, 128
        %2857 = vxpose.xlu0.b32.cont [13/16] 0.0, 128
        %2858 = vxpose.xlu0.b32.cont [14/16] 0.0, 128
        %2859 = vxpose.xlu0.b32.cont [15/16] 0.0, 128
        %2860 = vxpose.xlu0.b32.end [16/16] 0.0, 128
        %v2861 = vpop.trf.xlu0
        %v2862 = vpop.trf.xlu0
        %v2863 = vpop.trf.xlu0
        %v2864 = vpop.trf.xlu0
        %v2865 = vpop.trf.xlu0
        %v2866 = vpop.trf.xlu0
        %v2867 = vpop.trf.xlu0
        %v2868 = vpop.trf.xlu0
        %v2869 = vpop.trf.xlu0
        %v2870 = vpop.trf.xlu0
        %v2871 = vpop.trf.xlu0
        %v2872 = vpop.trf.xlu0
        %v2873 = vpop.trf.xlu0
        %v2874 = vpop.trf.xlu0
        %v2875 = vpop.trf.xlu0
        %v2876 = vpop.trf.xlu0
        %v2877 = vcombine.low %v2637, %v2701
        %v2879 = vunpack.c.l.s4 1983009808
        %v2880 = vunpack.c.0.s8 %v2879
        %v2881 = vlaneseq
        %v2882 = vshrl.u32 %v2881, 7
        %v2883 = vsub.s32 %v2880, %v2882
        %v2884 = vrot.slane %v2877, %v2883
        %v2885 = vcombine.low %v2669, %v2733
        %v2887 = vunpack.c.l.s4 1983009808
        %v2888 = vunpack.c.0.s8 %v2887
        %v2889 = vlaneseq
        %v2890 = vshrl.u32 %v2889, 7
        %v2891 = vsub.s32 %v2888, %v2890
        %v2892 = vrot.slane %v2885, %v2891
        %v2893 = vcombine.low %v2765, %v2829
        %v2895 = vunpack.c.l.s4 1983009808
        %v2896 = vunpack.c.0.s8 %v2895
        %v2897 = vlaneseq
        %v2898 = vshrl.u32 %v2897, 7
        %v2899 = vsub.s32 %v2896, %v2898
        %v2900 = vrot.slane %v2893, %v2899
        %v2901 = vcombine.low %v2797, %v2861
        %v2903 = vunpack.c.l.s4 1983009808
        %v2904 = vunpack.c.0.s8 %v2903
        %v2905 = vlaneseq
        %v2906 = vshrl.u32 %v2905, 7
        %v2907 = vsub.s32 %v2904, %v2906
        %v2908 = vrot.slane %v2901, %v2907
        %v2909 = vcombine.low %v2884, %v2892
        %v2910 = vcombine.high %v2884, %v2892
        %v2912 = vunpack.c.l.s4 1934713408
        %v2913 = vunpack.c.0.s8 %v2912
        %v2914 = vlaneseq
        %v2915 = vshrl.u32 %v2914, 7
        %v2916 = vsub.s32 %v2913, %v2915
        %v2917 = vrot.slane %v2909, %v2916
        %v2919 = vunpack.c.l.s4 1934713408
        %v2920 = vunpack.c.0.s8 %v2919
        %v2921 = vlaneseq
        %v2922 = vshrl.u32 %v2921, 7
        %v2923 = vsub.s32 %v2920, %v2922
        %v2924 = vrot.slane %v2910, %v2923
        %v2925 = vcombine.low %v2900, %v2908
        %v2926 = vcombine.high %v2900, %v2908
        %v2928 = vunpack.c.l.s4 1934713408
        %v2929 = vunpack.c.0.s8 %v2928
        %v2930 = vlaneseq
        %v2931 = vshrl.u32 %v2930, 7
        %v2932 = vsub.s32 %v2929, %v2931
        %v2933 = vrot.slane %v2925, %v2932
        %v2935 = vunpack.c.l.s4 1934713408
        %v2936 = vunpack.c.0.s8 %v2935
        %v2937 = vlaneseq
        %v2938 = vshrl.u32 %v2937, 7
        %v2939 = vsub.s32 %v2936, %v2938
        %v2940 = vrot.slane %v2926, %v2939
        %v2941 = vcombine.low %v2917, %v2933
        %v2942 = vcombine.high %v2917, %v2933
        %v2943 = vcombine.low %v2924, %v2940
        %v2944 = vcombine.high %v2924, %v2940
        %v2945 = vsel %vm1203, %v849, 0
        %2947 = vmatprep.subr.mxu0 0.0
        %2948 = vmatpush1.msra.mxu0 %v2941
        %2949 = vmatprep.subr.mxu0 0.0
        %2950 = vmatpush1.msra.mxu0 0.0
        %2951 = vmatprep.subr.mxu0 0.0
        %2952 = vmatpush1.msra.mxu0 0.0
        %2953 = vmatprep.subr.mxu0 0.0
        %2954 = vmatpush1.msra.mxu0 0.0
        %2955 = vmatprep.subr.mxu0 0.0
        %2956 = vmatpush1.msra.mxu0 0.0
        %2957 = vmatprep.subr.mxu0 0.0
        %2958 = vmatpush1.msra.mxu0 0.0
        %2959 = vmatprep.subr.mxu0 0.0
        %2960 = vmatpush1.msra.mxu0 0.0
        %2961 = vmatprep.subr.mxu0 0.0
        %2962 = vmatpush1.msra.mxu0 0.0
        %2963 = vmatprep.subr.mxu0 0.0
        %2964 = vmatpush1.msra.mxu0 0.0
        %2965 = vmatprep.subr.mxu0 0.0
        %2966 = vmatpush1.msra.mxu0 0.0
        %2967 = vmatprep.subr.mxu0 0.0
        %2968 = vmatpush1.msra.mxu0 0.0
        %2969 = vmatprep.subr.mxu0 0.0
        %2970 = vmatpush1.msra.mxu0 0.0
        %2971 = vmatprep.subr.mxu0 0.0
        %2972 = vmatpush1.msra.mxu0 0.0
        %2973 = vmatprep.subr.mxu0 0.0
        %2974 = vmatpush1.msra.mxu0 0.0
        %2975 = vmatprep.subr.mxu0 0.0
        %2976 = vmatpush1.msra.mxu0 0.0
        %2977 = vmatprep.subr.mxu0 0.0
        %2978 = vmatpush1.msra.mxu0 0.0
        %2979 = vmatprep.subr.mxu0 0.0
        %2980 = vmatpush1.msra.mxu0 0.0
        %2981 = vmatprep.subr.mxu0 0.0
        %2982 = vmatpush1.msra.mxu0 0.0
        %2983 = vmatprep.subr.mxu0 0.0
        %2984 = vmatpush1.msra.mxu0 0.0
        %2985 = vmatprep.subr.mxu0 0.0
        %2986 = vmatpush1.msra.mxu0 0.0
        %2987 = vmatprep.subr.mxu0 0.0
        %2988 = vmatpush1.msra.mxu0 0.0
        %2989 = vmatprep.subr.mxu0 0.0
        %2990 = vmatpush1.msra.mxu0 0.0
        %2991 = vmatprep.subr.mxu0 0.0
        %2992 = vmatpush1.msra.mxu0 0.0
        %2993 = vmatprep.subr.mxu0 0.0
        %2994 = vmatpush1.msra.mxu0 0.0
        %2995 = vmatprep.subr.mxu0 0.0
        %2996 = vmatpush1.msra.mxu0 0.0
        %2997 = vmatprep.subr.mxu0 0.0
        %2998 = vmatpush1.msra.mxu0 0.0
        %2999 = vmatprep.subr.mxu0 0.0
        %3000 = vmatpush1.msra.mxu0 0.0
        %3001 = vmatprep.subr.mxu0 0.0
        %3002 = vmatpush1.msra.mxu0 0.0
        %3003 = vmatprep.subr.mxu0 0.0
        %3004 = vmatpush1.msra.mxu0 0.0
        %3005 = vmatprep.subr.mxu0 0.0
        %3006 = vmatpush1.msra.mxu0 0.0
        %3007 = vmatprep.subr.mxu0 0.0
        %3008 = vmatpush1.msra.mxu0 0.0
        %3009 = vmatprep.subr.mxu0 0.0
        %3010 = vmatpush1.msra.mxu0 0.0
        %3011 = vmatprep.mubr.f32.mxu0 0.0
        %3012 = vmatmul.mubr.f32.gmra.mrb[0].mxu0 %v2945
        %v3013 = vpop.f32.mrb[0].mxu0
        %v3014 = vadd.f32 %v2225, %v3013
        %v3015 = vpop.f32.mrb[0].mxu0
        %3016 = vdwg.mxu0
        %v3017 = vsel %vm1203, %v852, 0
        %3019 = vmatprep.subr.mxu0 0.0
        %3020 = vmatpush1.msra.mxu0 %v2942
        %3021 = vmatprep.subr.mxu0 0.0
        %3022 = vmatpush1.msra.mxu0 0.0
        %3023 = vmatprep.subr.mxu0 0.0
        %3024 = vmatpush1.msra.mxu0 0.0
        %3025 = vmatprep.subr.mxu0 0.0
        %3026 = vmatpush1.msra.mxu0 0.0
        %3027 = vmatprep.subr.mxu0 0.0
        %3028 = vmatpush1.msra.mxu0 0.0
        %3029 = vmatprep.subr.mxu0 0.0
        %3030 = vmatpush1.msra.mxu0 0.0
        %3031 = vmatprep.subr.mxu0 0.0
        %3032 = vmatpush1.msra.mxu0 0.0
        %3033 = vmatprep.subr.mxu0 0.0
        %3034 = vmatpush1.msra.mxu0 0.0
        %3035 = vmatprep.subr.mxu0 0.0
        %3036 = vmatpush1.msra.mxu0 0.0
        %3037 = vmatprep.subr.mxu0 0.0
        %3038 = vmatpush1.msra.mxu0 0.0
        %3039 = vmatprep.subr.mxu0 0.0
        %3040 = vmatpush1.msra.mxu0 0.0
        %3041 = vmatprep.subr.mxu0 0.0
        %3042 = vmatpush1.msra.mxu0 0.0
        %3043 = vmatprep.subr.mxu0 0.0
        %3044 = vmatpush1.msra.mxu0 0.0
        %3045 = vmatprep.subr.mxu0 0.0
        %3046 = vmatpush1.msra.mxu0 0.0
        %3047 = vmatprep.subr.mxu0 0.0
        %3048 = vmatpush1.msra.mxu0 0.0
        %3049 = vmatprep.subr.mxu0 0.0
        %3050 = vmatpush1.msra.mxu0 0.0
        %3051 = vmatprep.subr.mxu0 0.0
        %3052 = vmatpush1.msra.mxu0 0.0
        %3053 = vmatprep.subr.mxu0 0.0
        %3054 = vmatpush1.msra.mxu0 0.0
        %3055 = vmatprep.subr.mxu0 0.0
        %3056 = vmatpush1.msra.mxu0 0.0
        %3057 = vmatprep.subr.mxu0 0.0
        %3058 = vmatpush1.msra.mxu0 0.0
        %3059 = vmatprep.subr.mxu0 0.0
        %3060 = vmatpush1.msra.mxu0 0.0
        %3061 = vmatprep.subr.mxu0 0.0
        %3062 = vmatpush1.msra.mxu0 0.0
        %3063 = vmatprep.subr.mxu0 0.0
        %3064 = vmatpush1.msra.mxu0 0.0
        %3065 = vmatprep.subr.mxu0 0.0
        %3066 = vmatpush1.msra.mxu0 0.0
        %3067 = vmatprep.subr.mxu0 0.0
        %3068 = vmatpush1.msra.mxu0 0.0
        %3069 = vmatprep.subr.mxu0 0.0
        %3070 = vmatpush1.msra.mxu0 0.0
        %3071 = vmatprep.subr.mxu0 0.0
        %3072 = vmatpush1.msra.mxu0 0.0
        %3073 = vmatprep.subr.mxu0 0.0
        %3074 = vmatpush1.msra.mxu0 0.0
        %3075 = vmatprep.subr.mxu0 0.0
        %3076 = vmatpush1.msra.mxu0 0.0
        %3077 = vmatprep.subr.mxu0 0.0
        %3078 = vmatpush1.msra.mxu0 0.0
        %3079 = vmatprep.subr.mxu0 0.0
        %3080 = vmatpush1.msra.mxu0 0.0
        %3081 = vmatprep.subr.mxu0 0.0
        %3082 = vmatpush1.msra.mxu0 0.0
        %3083 = vmatprep.mubr.f32.mxu0 0.0
        %3084 = vmatmul.mubr.f32.gmra.mrb[0].mxu0 %v3017
        %v3085 = vpop.f32.mrb[0].mxu0
        %v3086 = vadd.f32 %v2226, %v3085
        %v3087 = vpop.f32.mrb[0].mxu0
        %3088 = vdwg.mxu0
        %v3089 = vsel %vm1203, %v855, 0
        %3091 = vmatprep.subr.mxu0 0.0
        %3092 = vmatpush1.msra.mxu0 %v2943
        %3093 = vmatprep.subr.mxu0 0.0
        %3094 = vmatpush1.msra.mxu0 0.0
        %3095 = vmatprep.subr.mxu0 0.0
        %3096 = vmatpush1.msra.mxu0 0.0
        %3097 = vmatprep.subr.mxu0 0.0
        %3098 = vmatpush1.msra.mxu0 0.0
        %3099 = vmatprep.subr.mxu0 0.0
        %3100 = vmatpush1.msra.mxu0 0.0
        %3101 = vmatprep.subr.mxu0 0.0
        %3102 = vmatpush1.msra.mxu0 0.0
        %3103 = vmatprep.subr.mxu0 0.0
        %3104 = vmatpush1.msra.mxu0 0.0
        %3105 = vmatprep.subr.mxu0 0.0
        %3106 = vmatpush1.msra.mxu0 0.0
        %3107 = vmatprep.subr.mxu0 0.0
        %3108 = vmatpush1.msra.mxu0 0.0
        %3109 = vmatprep.subr.mxu0 0.0
        %3110 = vmatpush1.msra.mxu0 0.0
        %3111 = vmatprep.subr.mxu0 0.0
        %3112 = vmatpush1.msra.mxu0 0.0
        %3113 = vmatprep.subr.mxu0 0.0
        %3114 = vmatpush1.msra.mxu0 0.0
        %3115 = vmatprep.subr.mxu0 0.0
        %3116 = vmatpush1.msra.mxu0 0.0
        %3117 = vmatprep.subr.mxu0 0.0
        %3118 = vmatpush1.msra.mxu0 0.0
        %3119 = vmatprep.subr.mxu0 0.0
        %3120 = vmatpush1.msra.mxu0 0.0
        %3121 = vmatprep.subr.mxu0 0.0
        %3122 = vmatpush1.msra.mxu0 0.0
        %3123 = vmatprep.subr.mxu0 0.0
        %3124 = vmatpush1.msra.mxu0 0.0
        %3125 = vmatprep.subr.mxu0 0.0
        %3126 = vmatpush1.msra.mxu0 0.0
        %3127 = vmatprep.subr.mxu0 0.0
        %3128 = vmatpush1.msra.mxu0 0.0
        %3129 = vmatprep.subr.mxu0 0.0
        %3130 = vmatpush1.msra.mxu0 0.0
        %3131 = vmatprep.subr.mxu0 0.0
        %3132 = vmatpush1.msra.mxu0 0.0
        %3133 = vmatprep.subr.mxu0 0.0
        %3134 = vmatpush1.msra.mxu0 0.0
        %3135 = vmatprep.subr.mxu0 0.0
        %3136 = vmatpush1.msra.mxu0 0.0
        %3137 = vmatprep.subr.mxu0 0.0
        %3138 = vmatpush1.msra.mxu0 0.0
        %3139 = vmatprep.subr.mxu0 0.0
        %3140 = vmatpush1.msra.mxu0 0.0
        %3141 = vmatprep.subr.mxu0 0.0
        %3142 = vmatpush1.msra.mxu0 0.0
        %3143 = vmatprep.subr.mxu0 0.0
        %3144 = vmatpush1.msra.mxu0 0.0
        %3145 = vmatprep.subr.mxu0 0.0
        %3146 = vmatpush1.msra.mxu0 0.0
        %3147 = vmatprep.subr.mxu0 0.0
        %3148 = vmatpush1.msra.mxu0 0.0
        %3149 = vmatprep.subr.mxu0 0.0
        %3150 = vmatpush1.msra.mxu0 0.0
        %3151 = vmatprep.subr.mxu0 0.0
        %3152 = vmatpush1.msra.mxu0 0.0
        %3153 = vmatprep.subr.mxu0 0.0
        %3154 = vmatpush1.msra.mxu0 0.0
        %3155 = vmatprep.mubr.f32.mxu0 0.0
        %3156 = vmatmul.mubr.f32.gmra.mrb[0].mxu0 %v3089
        %v3157 = vpop.f32.mrb[0].mxu0
        %v3158 = vadd.f32 %v2227, %v3157
        %v3159 = vpop.f32.mrb[0].mxu0
        %3160 = vdwg.mxu0
        %v3161 = vsel %vm1203, %v858, 0
        %3163 = vmatprep.subr.mxu0 0.0
        %3164 = vmatpush1.msra.mxu0 %v2944
        %3165 = vmatprep.subr.mxu0 0.0
        %3166 = vmatpush1.msra.mxu0 0.0
        %3167 = vmatprep.subr.mxu0 0.0
        %3168 = vmatpush1.msra.mxu0 0.0
        %3169 = vmatprep.subr.mxu0 0.0
        %3170 = vmatpush1.msra.mxu0 0.0
        %3171 = vmatprep.subr.mxu0 0.0
        %3172 = vmatpush1.msra.mxu0 0.0
        %3173 = vmatprep.subr.mxu0 0.0
        %3174 = vmatpush1.msra.mxu0 0.0
        %3175 = vmatprep.subr.mxu0 0.0
        %3176 = vmatpush1.msra.mxu0 0.0
        %3177 = vmatprep.subr.mxu0 0.0
        %3178 = vmatpush1.msra.mxu0 0.0
        %3179 = vmatprep.subr.mxu0 0.0
        %3180 = vmatpush1.msra.mxu0 0.0
        %3181 = vmatprep.subr.mxu0 0.0
        %3182 = vmatpush1.msra.mxu0 0.0
        %3183 = vmatprep.subr.mxu0 0.0
        %3184 = vmatpush1.msra.mxu0 0.0
        %3185 = vmatprep.subr.mxu0 0.0
        %3186 = vmatpush1.msra.mxu0 0.0
        %3187 = vmatprep.subr.mxu0 0.0
        %3188 = vmatpush1.msra.mxu0 0.0
        %3189 = vmatprep.subr.mxu0 0.0
        %3190 = vmatpush1.msra.mxu0 0.0
        %3191 = vmatprep.subr.mxu0 0.0
        %3192 = vmatpush1.msra.mxu0 0.0
        %3193 = vmatprep.subr.mxu0 0.0
        %3194 = vmatpush1.msra.mxu0 0.0
        %3195 = vmatprep.subr.mxu0 0.0
        %3196 = vmatpush1.msra.mxu0 0.0
        %3197 = vmatprep.subr.mxu0 0.0
        %3198 = vmatpush1.msra.mxu0 0.0
        %3199 = vmatprep.subr.mxu0 0.0
        %3200 = vmatpush1.msra.mxu0 0.0
        %3201 = vmatprep.subr.mxu0 0.0
        %3202 = vmatpush1.msra.mxu0 0.0
        %3203 = vmatprep.subr.mxu0 0.0
        %3204 = vmatpush1.msra.mxu0 0.0
        %3205 = vmatprep.subr.mxu0 0.0
        %3206 = vmatpush1.msra.mxu0 0.0
        %3207 = vmatprep.subr.mxu0 0.0
        %3208 = vmatpush1.msra.mxu0 0.0
        %3209 = vmatprep.subr.mxu0 0.0
        %3210 = vmatpush1.msra.mxu0 0.0
        %3211 = vmatprep.subr.mxu0 0.0
        %3212 = vmatpush1.msra.mxu0 0.0
        %3213 = vmatprep.subr.mxu0 0.0
        %3214 = vmatpush1.msra.mxu0 0.0
        %3215 = vmatprep.subr.mxu0 0.0
        %3216 = vmatpush1.msra.mxu0 0.0
        %3217 = vmatprep.subr.mxu0 0.0
        %3218 = vmatpush1.msra.mxu0 0.0
        %3219 = vmatprep.subr.mxu0 0.0
        %3220 = vmatpush1.msra.mxu0 0.0
        %3221 = vmatprep.subr.mxu0 0.0
        %3222 = vmatpush1.msra.mxu0 0.0
        %3223 = vmatprep.subr.mxu0 0.0
        %3224 = vmatpush1.msra.mxu0 0.0
        %3225 = vmatprep.subr.mxu0 0.0
        %3226 = vmatpush1.msra.mxu0 0.0
        %3227 = vmatprep.mubr.f32.mxu0 0.0
        %3228 = vmatmul.mubr.f32.gmra.mrb[0].mxu0 %v3161
        %v3229 = vpop.f32.mrb[0].mxu0
        %v3230 = vadd.f32 %v2228, %v3229
        %v3231 = vpop.f32.mrb[0].mxu0
        %3232 = vdwg.mxu0
        %v3233 = vld [vmem:[#allocation13] sm:$0x1]
        %v3235 = vlaneseq
        %v3236 = vshrl.u32 %v3235, 7
        %v3237 = vsub.s32 0, %v3236
        %v3238 = vrot.slane %v3233, %v3237
        %v3240 = vmul.f32 %v900, %v3238
        %v3241 = vmul.f32 %v924, %v3238
        %v3242 = vmul.f32 %v907, %v3238
        %v3243 = vmul.f32 %v925, %v3238
        %v3244 = vmul.f32 %v916, %v3238
        %v3245 = vmul.f32 %v926, %v3238
        %v3246 = vmul.f32 %v923, %v3238
        %v3247 = vmul.f32 %v927, %v3238
        %vm3248 = vcmask 60416
        %v3249 = vsel %vm3248, %v3240, 0.0
        %3250 = vadd.xlane.f32.xlu0 %v3249
        %v3251 = vpop.xlane.xlu0 %3250
        %v3252 = vsel %vm3248, %v3241, 0.0
        %3253 = vadd.xlane.f32.xlu0 %v3252
        %v3254 = vpop.xlane.xlu0 %3253
        %v3255 = vsel %vm3248, %v3242, 0.0
        %3256 = vadd.xlane.f32.xlu0 %v3255
        %v3257 = vpop.xlane.xlu0 %3256
        %v3258 = vsel %vm3248, %v3243, 0.0
        %3259 = vadd.xlane.f32.xlu0 %v3258
        %v3260 = vpop.xlane.xlu0 %3259
        %v3261 = vsel %vm3248, %v3244, 0.0
        %3262 = vadd.xlane.f32.xlu0 %v3261
        %v3263 = vpop.xlane.xlu0 %3262
        %v3264 = vsel %vm3248, %v3245, 0.0
        %3265 = vadd.xlane.f32.xlu0 %v3264
        %v3266 = vpop.xlane.xlu0 %3265
        %v3267 = vsel %vm3248, %v3246, 0.0
        %3268 = vadd.xlane.f32.xlu0 %v3267
        %v3269 = vpop.xlane.xlu0 %3268
        %v3270 = vsel %vm3248, %v3247, 0.0
        %3271 = vadd.xlane.f32.xlu0 %v3270
        %v3272 = vpop.xlane.xlu0 %3271
        %v3281 = vlaneseq
        %v3282 = vand.u32 %v3281, 127
        %v3283 = vlaneseq
        %v3284 = vshrl.u32 %v3283, 7
        %v3285 = vsub.s32 %v3282, %v3284
        %v3286 = vrot.slane %v3251, %v3285
        %v3287 = vlaneseq
        %v3288 = vshrl.u32 %v3287, 7
        %v3289 = vsub.s32 %v3282, %v3288
        %v3290 = vrot.slane %v3254, %v3289
        %v3291 = vlaneseq
        %v3292 = vshrl.u32 %v3291, 7
        %v3293 = vsub.s32 %v3282, %v3292
        %v3294 = vrot.slane %v3257, %v3293
        %v3295 = vlaneseq
        %v3296 = vshrl.u32 %v3295, 7
        %v3297 = vsub.s32 %v3282, %v3296
        %v3298 = vrot.slane %v3260, %v3297
        %v3299 = vlaneseq
        %v3300 = vshrl.u32 %v3299, 7
        %v3301 = vsub.s32 %v3282, %v3300
        %v3302 = vrot.slane %v3263, %v3301
        %v3303 = vlaneseq
        %v3304 = vshrl.u32 %v3303, 7
        %v3305 = vsub.s32 %v3282, %v3304
        %v3306 = vrot.slane %v3266, %v3305
        %v3307 = vlaneseq
        %v3308 = vshrl.u32 %v3307, 7
        %v3309 = vsub.s32 %v3282, %v3308
        %v3310 = vrot.slane %v3269, %v3309
        %v3311 = vlaneseq
        %v3312 = vshrl.u32 %v3311, 7
        %v3313 = vsub.s32 %v3282, %v3312
        %v3314 = vrot.slane %v3272, %v3313
        %vm3315 = vcmask 1041409
        %v3316 = vsel %vm3315, %v3290, %v3286
        %vm3317 = vcmask 1042434
        %v3318 = vsel %vm3317, %v3294, %v3316
        %vm3319 = vcmask 1043459
        %v3320 = vsel %vm3319, %v3298, %v3318
        %vm3321 = vcmask 1044484
        %v3322 = vsel %vm3321, %v3302, %v3320
        %vm3323 = vcmask 1045509
        %v3324 = vsel %vm3323, %v3306, %v3322
        %vm3325 = vcmask 1046534
        %v3326 = vsel %vm3325, %v3310, %v3324
        %vm3327 = vcmask 1047559
        %v3328 = vsel %vm3327, %v3314, %v3326
        %3330 = vxpose.xlu0.b32.start [1/16] %v3328, 128
        %3331 = vxpose.xlu0.b32.cont [2/16] 0.0, 128
        %3332 = vxpose.xlu0.b32.cont [3/16] 0.0, 128
        %3333 = vxpose.xlu0.b32.cont [4/16] 0.0, 128
        %3334 = vxpose.xlu0.b32.cont [5/16] 0.0, 128
        %3335 = vxpose.xlu0.b32.cont [6/16] 0.0, 128
        %3336 = vxpose.xlu0.b32.cont [7/16] 0.0, 128
        %3337 = vxpose.xlu0.b32.cont [8/16] 0.0, 128
        %3338 = vxpose.xlu0.b32.cont [9/16] 0.0, 128
        %3339 = vxpose.xlu0.b32.cont [10/16] 0.0, 128
        %3340 = vxpose.xlu0.b32.cont [11/16] 0.0, 128
        %3341 = vxpose.xlu0.b32.cont [12/16] 0.0, 128
        %3342 = vxpose.xlu0.b32.cont [13/16] 0.0, 128
        %3343 = vxpose.xlu0.b32.cont [14/16] 0.0, 128
        %3344 = vxpose.xlu0.b32.cont [15/16] 0.0, 128
        %3345 = vxpose.xlu0.b32.end [16/16] 0.0, 128
        %v3346 = vpop.trf.xlu0
        %v3347 = vpop.trf.xlu0
        %v3348 = vpop.trf.xlu0
        %v3349 = vpop.trf.xlu0
        %v3350 = vpop.trf.xlu0
        %v3351 = vpop.trf.xlu0
        %v3352 = vpop.trf.xlu0
        %v3353 = vpop.trf.xlu0
        %v3354 = vpop.trf.xlu0
        %v3355 = vpop.trf.xlu0
        %v3356 = vpop.trf.xlu0
        %v3357 = vpop.trf.xlu0
        %v3358 = vpop.trf.xlu0
        %v3359 = vpop.trf.xlu0
        %v3360 = vpop.trf.xlu0
        %v3361 = vpop.trf.xlu0
        %v3362 = vlaneseq
        %v3363 = vshrl.u32 %v3362, 7
        %v3364 = vsub.s32 0, %v3363
        %v3365 = vrot.slane %v3346, %v3364
        %3367 = vbcast.lane.b32.xlu0 %v3365, 256
        %v3368 = vpop.permute.xlu0 %3367
        %v3369 = vlaneseq
        %v3370 = vshrl.u32 %v3369, 7
        %v3371 = vsub.s32 1, %v3370
        %v3372 = vrot.slane %v3346, %v3371
        %3374 = vbcast.lane.b32.xlu0 %v3372, 256
        %v3375 = vpop.permute.xlu0 %3374
        %v3376 = vlaneseq
        %v3377 = vshrl.u32 %v3376, 7
        %v3378 = vsub.s32 2, %v3377
        %v3379 = vrot.slane %v3346, %v3378
        %3381 = vbcast.lane.b32.xlu0 %v3379, 256
        %v3382 = vpop.permute.xlu0 %3381
        %v3383 = vlaneseq
        %v3384 = vshrl.u32 %v3383, 7
        %v3385 = vsub.s32 3, %v3384
        %v3386 = vrot.slane %v3346, %v3385
        %3388 = vbcast.lane.b32.xlu0 %v3386, 256
        %v3389 = vpop.permute.xlu0 %3388
        %v3390 = vadd.f32 %v3014, %v3368
        %v3391 = vadd.f32 %v3086, %v3375
        %v3392 = vadd.f32 %v3158, %v3382
        %v3393 = vadd.f32 %v3230, %v3389
        %v3395 = vlaneseq
        %v3396 = vshrl.u32 %v3395, 7
        %v3397 = vsub.s32 0, %v3396
        %v3398 = vrot.slane %v755, %v3397
        %v3400 = vadd.f32 %v3390, %v3398
        %v3401 = vadd.f32 %v3391, %v3398
        %v3402 = vadd.f32 %v3392, %v3398
        %v3403 = vadd.f32 %v3393, %v3398
        %v3404 = vsel %vm1203, %v3400, -inf
        %3405 = vmax.xlane.f32.xlu0 %v3404
        %v3406 = vpop.xlane.xlu0 %3405
        %v3407 = vsel %vm1203, %v3401, -inf
        %3408 = vmax.xlane.f32.xlu0 %v3407
        %v3409 = vpop.xlane.xlu0 %3408
        %v3410 = vsel %vm1203, %v3402, -inf
        %3411 = vmax.xlane.f32.xlu0 %v3410
        %v3412 = vpop.xlane.xlu0 %3411
        %v3413 = vsel %vm1203, %v3403, -inf
        %3414 = vmax.xlane.f32.xlu0 %v3413
        %v3415 = vpop.xlane.xlu0 %3414
        %v3416 = vsub.f32 %v3400, %v3406
        %v3417 = vsub.f32 %v3401, %v3409
        %v3418 = vsub.f32 %v3402, %v3412
        %v3419 = vsub.f32 %v3403, %v3415
        %v3420 = vmul.f32 %v3416, 1.442695
        %v3421 = vpow.pop %v3420
        %v3422 = vmul.f32 %v3417, 1.442695
        %v3423 = vpow.pop %v3422
        %v3424 = vmul.f32 %v3418, 1.442695
        %v3425 = vpow.pop %v3424
        %v3426 = vmul.f32 %v3419, 1.442695
        %v3427 = vpow.pop %v3426
        %v3428 = vsel %vm1203, %v3421, 0.0
        %3429 = vadd.xlane.f32.xlu0 %v3428
        %v3430 = vpop.xlane.xlu0 %3429
        %v3431 = vsel %vm1203, %v3423, 0.0
        %3432 = vadd.xlane.f32.xlu0 %v3431
        %v3433 = vpop.xlane.xlu0 %3432
        %v3434 = vsel %vm1203, %v3425, 0.0
        %3435 = vadd.xlane.f32.xlu0 %v3434
        %v3436 = vpop.xlane.xlu0 %3435
        %v3437 = vsel %vm1203, %v3427, 0.0
        %3438 = vadd.xlane.f32.xlu0 %v3437
        %v3439 = vpop.xlane.xlu0 %3438
        %v3440 = vrcp.pop %v3430
        %v3441 = vmul.f32 %v3421, %v3440
        %v3442 = vrcp.pop %v3433
        %v3443 = vmul.f32 %v3423, %v3442
        %v3444 = vrcp.pop %v3436
        %v3445 = vmul.f32 %v3425, %v3444
        %v3446 = vrcp.pop %v3439
        %v3447 = vmul.f32 %v3427, %v3446
        %3448 = vst.msk [vmem:[%s750] sm:$0xff] %vm1203, %v3441
        %3449 = vst.msk [vmem:[%s750 + $0x8] sm:$0xff] %vm1203, %v3443
        %3450 = vst.msk [vmem:[%s750 + $0x10] sm:$0xff] %vm1203, %v3445
        %3451 = vst.msk [vmem:[%s750 + $0x18] sm:$0xff] %vm1203, %v3447
        %3452 = vxpose.xlu0.b32.start [1/16] %v1056, 128
        %3453 = vxpose.xlu0.b32.cont [2/16] 0.0, 128
        %3454 = vxpose.xlu0.b32.cont [3/16] 0.0, 128
        %3455 = vxpose.xlu0.b32.cont [4/16] 0.0, 128
        %3456 = vxpose.xlu0.b32.cont [5/16] 0.0, 128
        %3457 = vxpose.xlu0.b32.cont [6/16] 0.0, 128
        %3458 = vxpose.xlu0.b32.cont [7/16] 0.0, 128
        %3459 = vxpose.xlu0.b32.cont [8/16] 0.0, 128
        %3460 = vxpose.xlu0.b32.cont [9/16] 0.0, 128
        %3461 = vxpose.xlu0.b32.cont [10/16] 0.0, 128
        %3462 = vxpose.xlu0.b32.cont [11/16] 0.0, 128
        %3463 = vxpose.xlu0.b32.cont [12/16] 0.0, 128
        %3464 = vxpose.xlu0.b32.cont [13/16] 0.0, 128
        %3465 = vxpose.xlu0.b32.cont [14/16] 0.0, 128
        %3466 = vxpose.xlu0.b32.cont [15/16] 0.0, 128
        %3467 = vxpose.xlu0.b32.end [16/16] 0.0, 128
        %v3468 = vpop.trf.xlu0
        %v3469 = vpop.trf.xlu0
        %v3470 = vpop.trf.xlu0
        %v3471 = vpop.trf.xlu0
        %v3472 = vpop.trf.xlu0
        %v3473 = vpop.trf.xlu0
        %v3474 = vpop.trf.xlu0
        %v3475 = vpop.trf.xlu0
        %v3476 = vpop.trf.xlu0
        %v3477 = vpop.trf.xlu0
        %v3478 = vpop.trf.xlu0
        %v3479 = vpop.trf.xlu0
        %v3480 = vpop.trf.xlu0
        %v3481 = vpop.trf.xlu0
        %v3482 = vpop.trf.xlu0
        %v3483 = vpop.trf.xlu0
        %3484 = vxpose.xlu0.b32.start [1/16] %v1080, 128
        %3485 = vxpose.xlu0.b32.cont [2/16] 0.0, 128
        %3486 = vxpose.xlu0.b32.cont [3/16] 0.0, 128
        %3487 = vxpose.xlu0.b32.cont [4/16] 0.0, 128
        %3488 = vxpose.xlu0.b32.cont [5/16] 0.0, 128
        %3489 = vxpose.xlu0.b32.cont [6/16] 0.0, 128
        %3490 = vxpose.xlu0.b32.cont [7/16] 0.0, 128
        %3491 = vxpose.xlu0.b32.cont [8/16] 0.0, 128
        %3492 = vxpose.xlu0.b32.cont [9/16] 0.0, 128
        %3493 = vxpose.xlu0.b32.cont [10/16] 0.0, 128
        %3494 = vxpose.xlu0.b32.cont [11/16] 0.0, 128
        %3495 = vxpose.xlu0.b32.cont [12/16] 0.0, 128
        %3496 = vxpose.xlu0.b32.cont [13/16] 0.0, 128
        %3497 = vxpose.xlu0.b32.cont [14/16] 0.0, 128
        %3498 = vxpose.xlu0.b32.cont [15/16] 0.0, 128
        %3499 = vxpose.xlu0.b32.end [16/16] 0.0, 128
        %v3500 = vpop.trf.xlu0
        %v3501 = vpop.trf.xlu0
        %v3502 = vpop.trf.xlu0
        %v3503 = vpop.trf.xlu0
        %v3504 = vpop.trf.xlu0
        %v3505 = vpop.trf.xlu0
        %v3506 = vpop.trf.xlu0
        %v3507 = vpop.trf.xlu0
        %v3508 = vpop.trf.xlu0
        %v3509 = vpop.trf.xlu0
        %v3510 = vpop.trf.xlu0
        %v3511 = vpop.trf.xlu0
        %v3512 = vpop.trf.xlu0
        %v3513 = vpop.trf.xlu0
        %v3514 = vpop.trf.xlu0
        %v3515 = vpop.trf.xlu0
        %3516 = vxpose.xlu0.b32.start [1/16] %v1063, 128
        %3517 = vxpose.xlu0.b32.cont [2/16] 0.0, 128
        %3518 = vxpose.xlu0.b32.cont [3/16] 0.0, 128
        %3519 = vxpose.xlu0.b32.cont [4/16] 0.0, 128
        %3520 = vxpose.xlu0.b32.cont [5/16] 0.0, 128
        %3521 = vxpose.xlu0.b32.cont [6/16] 0.0, 128
        %3522 = vxpose.xlu0.b32.cont [7/16] 0.0, 128
        %3523 = vxpose.xlu0.b32.cont [8/16] 0.0, 128
        %3524 = vxpose.xlu0.b32.cont [9/16] 0.0, 128
        %3525 = vxpose.xlu0.b32.cont [10/16] 0.0, 128
        %3526 = vxpose.xlu0.b32.cont [11/16] 0.0, 128
        %3527 = vxpose.xlu0.b32.cont [12/16] 0.0, 128
        %3528 = vxpose.xlu0.b32.cont [13/16] 0.0, 128
        %3529 = vxpose.xlu0.b32.cont [14/16] 0.0, 128
        %3530 = vxpose.xlu0.b32.cont [15/16] 0.0, 128
        %3531 = vxpose.xlu0.b32.end [16/16] 0.0, 128
        %v3532 = vpop.trf.xlu0
        %v3533 = vpop.trf.xlu0
        %v3534 = vpop.trf.xlu0
        %v3535 = vpop.trf.xlu0
        %v3536 = vpop.trf.xlu0
        %v3537 = vpop.trf.xlu0
        %v3538 = vpop.trf.xlu0
        %v3539 = vpop.trf.xlu0
        %v3540 = vpop.trf.xlu0
        %v3541 = vpop.trf.xlu0
        %v3542 = vpop.trf.xlu0
        %v3543 = vpop.trf.xlu0
        %v3544 = vpop.trf.xlu0
        %v3545 = vpop.trf.xlu0
        %v3546 = vpop.trf.xlu0
        %v3547 = vpop.trf.xlu0
        %3548 = vxpose.xlu0.b32.start [1/16] %v1081, 128
        %3549 = vxpose.xlu0.b32.cont [2/16] 0.0, 128
        %3550 = vxpose.xlu0.b32.cont [3/16] 0.0, 128
        %3551 = vxpose.xlu0.b32.cont [4/16] 0.0, 128
        %3552 = vxpose.xlu0.b32.cont [5/16] 0.0, 128
        %3553 = vxpose.xlu0.b32.cont [6/16] 0.0, 128
        %3554 = vxpose.xlu0.b32.cont [7/16] 0.0, 128
        %3555 = vxpose.xlu0.b32.cont [8/16] 0.0, 128
        %3556 = vxpose.xlu0.b32.cont [9/16] 0.0, 128
        %3557 = vxpose.xlu0.b32.cont [10/16] 0.0, 128
        %3558 = vxpose.xlu0.b32.cont [11/16] 0.0, 128
        %3559 = vxpose.xlu0.b32.cont [12/16] 0.0, 128
        %3560 = vxpose.xlu0.b32.cont [13/16] 0.0, 128
        %3561 = vxpose.xlu0.b32.cont [14/16] 0.0, 128
        %3562 = vxpose.xlu0.b32.cont [15/16] 0.0, 128
        %3563 = vxpose.xlu0.b32.end [16/16] 0.0, 128
        %v3564 = vpop.trf.xlu0
        %v3565 = vpop.trf.xlu0
        %v3566 = vpop.trf.xlu0
        %v3567 = vpop.trf.xlu0
        %v3568 = vpop.trf.xlu0
        %v3569 = vpop.trf.xlu0
        %v3570 = vpop.trf.xlu0
        %v3571 = vpop.trf.xlu0
        %v3572 = vpop.trf.xlu0
        %v3573 = vpop.trf.xlu0
        %v3574 = vpop.trf.xlu0
        %v3575 = vpop.trf.xlu0
        %v3576 = vpop.trf.xlu0
        %v3577 = vpop.trf.xlu0
        %v3578 = vpop.trf.xlu0
        %v3579 = vpop.trf.xlu0
        %3580 = vxpose.xlu0.b32.start [1/16] %v1072, 128
        %3581 = vxpose.xlu0.b32.cont [2/16] 0.0, 128
        %3582 = vxpose.xlu0.b32.cont [3/16] 0.0, 128
        %3583 = vxpose.xlu0.b32.cont [4/16] 0.0, 128
        %3584 = vxpose.xlu0.b32.cont [5/16] 0.0, 128
        %3585 = vxpose.xlu0.b32.cont [6/16] 0.0, 128
        %3586 = vxpose.xlu0.b32.cont [7/16] 0.0, 128
        %3587 = vxpose.xlu0.b32.cont [8/16] 0.0, 128
        %3588 = vxpose.xlu0.b32.cont [9/16] 0.0, 128
        %3589 = vxpose.xlu0.b32.cont [10/16] 0.0, 128
        %3590 = vxpose.xlu0.b32.cont [11/16] 0.0, 128
        %3591 = vxpose.xlu0.b32.cont [12/16] 0.0, 128
        %3592 = vxpose.xlu0.b32.cont [13/16] 0.0, 128
        %3593 = vxpose.xlu0.b32.cont [14/16] 0.0, 128
        %3594 = vxpose.xlu0.b32.cont [15/16] 0.0, 128
        %3595 = vxpose.xlu0.b32.end [16/16] 0.0, 128
        %v3596 = vpop.trf.xlu0
        %v3597 = vpop.trf.xlu0
        %v3598 = vpop.trf.xlu0
        %v3599 = vpop.trf.xlu0
        %v3600 = vpop.trf.xlu0
        %v3601 = vpop.trf.xlu0
        %v3602 = vpop.trf.xlu0
        %v3603 = vpop.trf.xlu0
        %v3604 = vpop.trf.xlu0
        %v3605 = vpop.trf.xlu0
        %v3606 = vpop.trf.xlu0
        %v3607 = vpop.trf.xlu0
        %v3608 = vpop.trf.xlu0
        %v3609 = vpop.trf.xlu0
        %v3610 = vpop.trf.xlu0
        %v3611 = vpop.trf.xlu0
        %3612 = vxpose.xlu0.b32.start [1/16] %v1082, 128
        %3613 = vxpose.xlu0.b32.cont [2/16] 0.0, 128
        %3614 = vxpose.xlu0.b32.cont [3/16] 0.0, 128
        %3615 = vxpose.xlu0.b32.cont [4/16] 0.0, 128
        %3616 = vxpose.xlu0.b32.cont [5/16] 0.0, 128
        %3617 = vxpose.xlu0.b32.cont [6/16] 0.0, 128
        %3618 = vxpose.xlu0.b32.cont [7/16] 0.0, 128
        %3619 = vxpose.xlu0.b32.cont [8/16] 0.0, 128
        %3620 = vxpose.xlu0.b32.cont [9/16] 0.0, 128
        %3621 = vxpose.xlu0.b32.cont [10/16] 0.0, 128
        %3622 = vxpose.xlu0.b32.cont [11/16] 0.0, 128
        %3623 = vxpose.xlu0.b32.cont [12/16] 0.0, 128
        %3624 = vxpose.xlu0.b32.cont [13/16] 0.0, 128
        %3625 = vxpose.xlu0.b32.cont [14/16] 0.0, 128
        %3626 = vxpose.xlu0.b32.cont [15/16] 0.0, 128
        %3627 = vxpose.xlu0.b32.end [16/16] 0.0, 128
        %v3628 = vpop.trf.xlu0
        %v3629 = vpop.trf.xlu0
        %v3630 = vpop.trf.xlu0
        %v3631 = vpop.trf.xlu0
        %v3632 = vpop.trf.xlu0
        %v3633 = vpop.trf.xlu0
        %v3634 = vpop.trf.xlu0
        %v3635 = vpop.trf.xlu0
        %v3636 = vpop.trf.xlu0
        %v3637 = vpop.trf.xlu0
        %v3638 = vpop.trf.xlu0
        %v3639 = vpop.trf.xlu0
        %v3640 = vpop.trf.xlu0
        %v3641 = vpop.trf.xlu0
        %v3642 = vpop.trf.xlu0
        %v3643 = vpop.trf.xlu0
        %3644 = vxpose.xlu0.b32.start [1/16] %v1079, 128
        %3645 = vxpose.xlu0.b32.cont [2/16] 0.0, 128
        %3646 = vxpose.xlu0.b32.cont [3/16] 0.0, 128
        %3647 = vxpose.xlu0.b32.cont [4/16] 0.0, 128
        %3648 = vxpose.xlu0.b32.cont [5/16] 0.0, 128
        %3649 = vxpose.xlu0.b32.cont [6/16] 0.0, 128
        %3650 = vxpose.xlu0.b32.cont [7/16] 0.0, 128
        %3651 = vxpose.xlu0.b32.cont [8/16] 0.0, 128
        %3652 = vxpose.xlu0.b32.cont [9/16] 0.0, 128
        %3653 = vxpose.xlu0.b32.cont [10/16] 0.0, 128
        %3654 = vxpose.xlu0.b32.cont [11/16] 0.0, 128
        %3655 = vxpose.xlu0.b32.cont [12/16] 0.0, 128
        %3656 = vxpose.xlu0.b32.cont [13/16] 0.0, 128
        %3657 = vxpose.xlu0.b32.cont [14/16] 0.0, 128
        %3658 = vxpose.xlu0.b32.cont [15/16] 0.0, 128
        %3659 = vxpose.xlu0.b32.end [16/16] 0.0, 128
        %v3660 = vpop.trf.xlu0
        %v3661 = vpop.trf.xlu0
        %v3662 = vpop.trf.xlu0
        %v3663 = vpop.trf.xlu0
        %v3664 = vpop.trf.xlu0
        %v3665 = vpop.trf.xlu0
        %v3666 = vpop.trf.xlu0
        %v3667 = vpop.trf.xlu0
        %v3668 = vpop.trf.xlu0
        %v3669 = vpop.trf.xlu0
        %v3670 = vpop.trf.xlu0
        %v3671 = vpop.trf.xlu0
        %v3672 = vpop.trf.xlu0
        %v3673 = vpop.trf.xlu0
        %v3674 = vpop.trf.xlu0
        %v3675 = vpop.trf.xlu0
        %3676 = vxpose.xlu0.b32.start [1/16] %v1083, 128
        %3677 = vxpose.xlu0.b32.cont [2/16] 0.0, 128
        %3678 = vxpose.xlu0.b32.cont [3/16] 0.0, 128
        %3679 = vxpose.xlu0.b32.cont [4/16] 0.0, 128
        %3680 = vxpose.xlu0.b32.cont [5/16] 0.0, 128
        %3681 = vxpose.xlu0.b32.cont [6/16] 0.0, 128
        %3682 = vxpose.xlu0.b32.cont [7/16] 0.0, 128
        %3683 = vxpose.xlu0.b32.cont [8/16] 0.0, 128
        %3684 = vxpose.xlu0.b32.cont [9/16] 0.0, 128
        %3685 = vxpose.xlu0.b32.cont [10/16] 0.0, 128
        %3686 = vxpose.xlu0.b32.cont [11/16] 0.0, 128
        %3687 = vxpose.xlu0.b32.cont [12/16] 0.0, 128
        %3688 = vxpose.xlu0.b32.cont [13/16] 0.0, 128
        %3689 = vxpose.xlu0.b32.cont [14/16] 0.0, 128
        %3690 = vxpose.xlu0.b32.cont [15/16] 0.0, 128
        %3691 = vxpose.xlu0.b32.end [16/16] 0.0, 128
        %v3692 = vpop.trf.xlu0
        %v3693 = vpop.trf.xlu0
        %v3694 = vpop.trf.xlu0
        %v3695 = vpop.trf.xlu0
        %v3696 = vpop.trf.xlu0
        %v3697 = vpop.trf.xlu0
        %v3698 = vpop.trf.xlu0
        %v3699 = vpop.trf.xlu0
        %v3700 = vpop.trf.xlu0
        %v3701 = vpop.trf.xlu0
        %v3702 = vpop.trf.xlu0
        %v3703 = vpop.trf.xlu0
        %v3704 = vpop.trf.xlu0
        %v3705 = vpop.trf.xlu0
        %v3706 = vpop.trf.xlu0
        %v3707 = vpop.trf.xlu0
        %v3708 = vcombine.low %v3468, %v3532
        %v3709 = vcombine.high %v3468, %v3532
        %v3711 = vunpack.c.l.s4 1983009808
        %v3712 = vunpack.c.0.s8 %v3711
        %v3713 = vlaneseq
        %v3714 = vshrl.u32 %v3713, 7
        %v3715 = vsub.s32 %v3712, %v3714
        %v3716 = vrot.slane %v3708, %v3715
        %v3718 = vunpack.c.l.s4 1983009808
        %v3719 = vunpack.c.0.s8 %v3718
        %v3720 = vlaneseq
        %v3721 = vshrl.u32 %v3720, 7
        %v3722 = vsub.s32 %v3719, %v3721
        %v3723 = vrot.slane %v3709, %v3722
        %v3724 = vcombine.low %v3500, %v3564
        %v3725 = vcombine.high %v3500, %v3564
        %v3727 = vunpack.c.l.s4 1983009808
        %v3728 = vunpack.c.0.s8 %v3727
        %v3729 = vlaneseq
        %v3730 = vshrl.u32 %v3729, 7
        %v3731 = vsub.s32 %v3728, %v3730
        %v3732 = vrot.slane %v3724, %v3731
        %v3734 = vunpack.c.l.s4 1983009808
        %v3735 = vunpack.c.0.s8 %v3734
        %v3736 = vlaneseq
        %v3737 = vshrl.u32 %v3736, 7
        %v3738 = vsub.s32 %v3735, %v3737
        %v3739 = vrot.slane %v3725, %v3738
        %v3740 = vcombine.low %v3596, %v3660
        %v3741 = vcombine.high %v3596, %v3660
        %v3743 = vunpack.c.l.s4 1983009808
        %v3744 = vunpack.c.0.s8 %v3743
        %v3745 = vlaneseq
        %v3746 = vshrl.u32 %v3745, 7
        %v3747 = vsub.s32 %v3744, %v3746
        %v3748 = vrot.slane %v3740, %v3747
        %v3750 = vunpack.c.l.s4 1983009808
        %v3751 = vunpack.c.0.s8 %v3750
        %v3752 = vlaneseq
        %v3753 = vshrl.u32 %v3752, 7
        %v3754 = vsub.s32 %v3751, %v3753
        %v3755 = vrot.slane %v3741, %v3754
        %v3756 = vcombine.low %v3628, %v3692
        %v3757 = vcombine.high %v3628, %v3692
        %v3759 = vunpack.c.l.s4 1983009808
        %v3760 = vunpack.c.0.s8 %v3759
        %v3761 = vlaneseq
        %v3762 = vshrl.u32 %v3761, 7
        %v3763 = vsub.s32 %v3760, %v3762
        %v3764 = vrot.slane %v3756, %v3763
        %v3766 = vunpack.c.l.s4 1983009808
        %v3767 = vunpack.c.0.s8 %v3766
        %v3768 = vlaneseq
        %v3769 = vshrl.u32 %v3768, 7
        %v3770 = vsub.s32 %v3767, %v3769
        %v3771 = vrot.slane %v3757, %v3770
        %v3772 = vcombine.low %v3716, %v3732
        %v3773 = vcombine.high %v3716, %v3732
        %v3775 = vunpack.c.l.s4 1934713408
        %v3776 = vunpack.c.0.s8 %v3775
        %v3777 = vlaneseq
        %v3778 = vshrl.u32 %v3777, 7
        %v3779 = vsub.s32 %v3776, %v3778
        %v3780 = vrot.slane %v3772, %v3779
        %v3782 = vunpack.c.l.s4 1934713408
        %v3783 = vunpack.c.0.s8 %v3782
        %v3784 = vlaneseq
        %v3785 = vshrl.u32 %v3784, 7
        %v3786 = vsub.s32 %v3783, %v3785
        %v3787 = vrot.slane %v3773, %v3786
        %v3788 = vcombine.low %v3723, %v3739
        %v3789 = vcombine.high %v3723, %v3739
        %v3791 = vunpack.c.l.s4 1934713408
        %v3792 = vunpack.c.0.s8 %v3791
        %v3793 = vlaneseq
        %v3794 = vshrl.u32 %v3793, 7
        %v3795 = vsub.s32 %v3792, %v3794
        %v3796 = vrot.slane %v3788, %v3795
        %v3798 = vunpack.c.l.s4 1934713408
        %v3799 = vunpack.c.0.s8 %v3798
        %v3800 = vlaneseq
        %v3801 = vshrl.u32 %v3800, 7
        %v3802 = vsub.s32 %v3799, %v3801
        %v3803 = vrot.slane %v3789, %v3802
        %v3804 = vcombine.low %v3748, %v3764
        %v3805 = vcombine.high %v3748, %v3764
        %v3807 = vunpack.c.l.s4 1934713408
        %v3808 = vunpack.c.0.s8 %v3807
        %v3809 = vlaneseq
        %v3810 = vshrl.u32 %v3809, 7
        %v3811 = vsub.s32 %v3808, %v3810
        %v3812 = vrot.slane %v3804, %v3811
        %v3814 = vunpack.c.l.s4 1934713408
        %v3815 = vunpack.c.0.s8 %v3814
        %v3816 = vlaneseq
        %v3817 = vshrl.u32 %v3816, 7
        %v3818 = vsub.s32 %v3815, %v3817
        %v3819 = vrot.slane %v3805, %v3818
        %v3820 = vcombine.low %v3755, %v3771
        %v3821 = vcombine.high %v3755, %v3771
        %v3823 = vunpack.c.l.s4 1934713408
        %v3824 = vunpack.c.0.s8 %v3823
        %v3825 = vlaneseq
        %v3826 = vshrl.u32 %v3825, 7
        %v3827 = vsub.s32 %v3824, %v3826
        %v3828 = vrot.slane %v3820, %v3827
        %v3830 = vunpack.c.l.s4 1934713408
        %v3831 = vunpack.c.0.s8 %v3830
        %v3832 = vlaneseq
        %v3833 = vshrl.u32 %v3832, 7
        %v3834 = vsub.s32 %v3831, %v3833
        %v3835 = vrot.slane %v3821, %v3834
        %v3836 = vcombine.low %v3780, %v3812
        %v3837 = vcombine.high %v3780, %v3812
        %v3838 = vcombine.low %v3787, %v3819
        %v3839 = vcombine.high %v3787, %v3819
        %v3840 = vcombine.low %v3796, %v3828
        %v3841 = vcombine.high %v3796, %v3828
        %v3842 = vcombine.low %v3803, %v3835
        %v3843 = vcombine.high %v3803, %v3835
        %3844 = vxpose.xlu0.b32.start [1/16] %v3836, 128
        %3845 = vxpose.xlu0.b32.cont [2/16] 0.0, 128
        %3846 = vxpose.xlu0.b32.cont [3/16] 0.0, 128
        %3847 = vxpose.xlu0.b32.cont [4/16] 0.0, 128
        %3848 = vxpose.xlu0.b32.cont [5/16] 0.0, 128
        %3849 = vxpose.xlu0.b32.cont [6/16] 0.0, 128
        %3850 = vxpose.xlu0.b32.cont [7/16] 0.0, 128
        %3851 = vxpose.xlu0.b32.cont [8/16] 0.0, 128
        %3852 = vxpose.xlu0.b32.cont [9/16] 0.0, 128
        %3853 = vxpose.xlu0.b32.cont [10/16] 0.0, 128
        %3854 = vxpose.xlu0.b32.cont [11/16] 0.0, 128
        %3855 = vxpose.xlu0.b32.cont [12/16] 0.0, 128
        %3856 = vxpose.xlu0.b32.cont [13/16] 0.0, 128
        %3857 = vxpose.xlu0.b32.cont [14/16] 0.0, 128
        %3858 = vxpose.xlu0.b32.cont [15/16] 0.0, 128
        %3859 = vxpose.xlu0.b32.end [16/16] 0.0, 128
        %v3860 = vpop.trf.xlu0
        %v3861 = vpop.trf.xlu0
        %v3862 = vpop.trf.xlu0
        %v3863 = vpop.trf.xlu0
        %v3864 = vpop.trf.xlu0
        %v3865 = vpop.trf.xlu0
        %v3866 = vpop.trf.xlu0
        %v3867 = vpop.trf.xlu0
        %v3868 = vpop.trf.xlu0
        %v3869 = vpop.trf.xlu0
        %v3870 = vpop.trf.xlu0
        %v3871 = vpop.trf.xlu0
        %v3872 = vpop.trf.xlu0
        %v3873 = vpop.trf.xlu0
        %v3874 = vpop.trf.xlu0
        %v3875 = vpop.trf.xlu0
        %3876 = vxpose.xlu0.b32.start [1/16] %v3837, 128
        %3877 = vxpose.xlu0.b32.cont [2/16] 0.0, 128
        %3878 = vxpose.xlu0.b32.cont [3/16] 0.0, 128
        %3879 = vxpose.xlu0.b32.cont [4/16] 0.0, 128
        %3880 = vxpose.xlu0.b32.cont [5/16] 0.0, 128
        %3881 = vxpose.xlu0.b32.cont [6/16] 0.0, 128
        %3882 = vxpose.xlu0.b32.cont [7/16] 0.0, 128
        %3883 = vxpose.xlu0.b32.cont [8/16] 0.0, 128
        %3884 = vxpose.xlu0.b32.cont [9/16] 0.0, 128
        %3885 = vxpose.xlu0.b32.cont [10/16] 0.0, 128
        %3886 = vxpose.xlu0.b32.cont [11/16] 0.0, 128
        %3887 = vxpose.xlu0.b32.cont [12/16] 0.0, 128
        %3888 = vxpose.xlu0.b32.cont [13/16] 0.0, 128
        %3889 = vxpose.xlu0.b32.cont [14/16] 0.0, 128
        %3890 = vxpose.xlu0.b32.cont [15/16] 0.0, 128
        %3891 = vxpose.xlu0.b32.end [16/16] 0.0, 128
        %v3892 = vpop.trf.xlu0
        %v3893 = vpop.trf.xlu0
        %v3894 = vpop.trf.xlu0
        %v3895 = vpop.trf.xlu0
        %v3896 = vpop.trf.xlu0
        %v3897 = vpop.trf.xlu0
        %v3898 = vpop.trf.xlu0
        %v3899 = vpop.trf.xlu0
        %v3900 = vpop.trf.xlu0
        %v3901 = vpop.trf.xlu0
        %v3902 = vpop.trf.xlu0
        %v3903 = vpop.trf.xlu0
        %v3904 = vpop.trf.xlu0
        %v3905 = vpop.trf.xlu0
        %v3906 = vpop.trf.xlu0
        %v3907 = vpop.trf.xlu0
        %3908 = vxpose.xlu0.b32.start [1/16] %v3838, 128
        %3909 = vxpose.xlu0.b32.cont [2/16] 0.0, 128
        %3910 = vxpose.xlu0.b32.cont [3/16] 0.0, 128
        %3911 = vxpose.xlu0.b32.cont [4/16] 0.0, 128
        %3912 = vxpose.xlu0.b32.cont [5/16] 0.0, 128
        %3913 = vxpose.xlu0.b32.cont [6/16] 0.0, 128
        %3914 = vxpose.xlu0.b32.cont [7/16] 0.0, 128
        %3915 = vxpose.xlu0.b32.cont [8/16] 0.0, 128
        %3916 = vxpose.xlu0.b32.cont [9/16] 0.0, 128
        %3917 = vxpose.xlu0.b32.cont [10/16] 0.0, 128
        %3918 = vxpose.xlu0.b32.cont [11/16] 0.0, 128
        %3919 = vxpose.xlu0.b32.cont [12/16] 0.0, 128
        %3920 = vxpose.xlu0.b32.cont [13/16] 0.0, 128
        %3921 = vxpose.xlu0.b32.cont [14/16] 0.0, 128
        %3922 = vxpose.xlu0.b32.cont [15/16] 0.0, 128
        %3923 = vxpose.xlu0.b32.end [16/16] 0.0, 128
        %v3924 = vpop.trf.xlu0
        %v3925 = vpop.trf.xlu0
        %v3926 = vpop.trf.xlu0
        %v3927 = vpop.trf.xlu0
        %v3928 = vpop.trf.xlu0
        %v3929 = vpop.trf.xlu0
        %v3930 = vpop.trf.xlu0
        %v3931 = vpop.trf.xlu0
        %v3932 = vpop.trf.xlu0
        %v3933 = vpop.trf.xlu0
        %v3934 = vpop.trf.xlu0
        %v3935 = vpop.trf.xlu0
        %v3936 = vpop.trf.xlu0
        %v3937 = vpop.trf.xlu0
        %v3938 = vpop.trf.xlu0
        %v3939 = vpop.trf.xlu0
        %3940 = vxpose.xlu0.b32.start [1/16] %v3839, 128
        %3941 = vxpose.xlu0.b32.cont [2/16] 0.0, 128
        %3942 = vxpose.xlu0.b32.cont [3/16] 0.0, 128
        %3943 = vxpose.xlu0.b32.cont [4/16] 0.0, 128
        %3944 = vxpose.xlu0.b32.cont [5/16] 0.0, 128
        %3945 = vxpose.xlu0.b32.cont [6/16] 0.0, 128
        %3946 = vxpose.xlu0.b32.cont [7/16] 0.0, 128
        %3947 = vxpose.xlu0.b32.cont [8/16] 0.0, 128
        %3948 = vxpose.xlu0.b32.cont [9/16] 0.0, 128
        %3949 = vxpose.xlu0.b32.cont [10/16] 0.0, 128
        %3950 = vxpose.xlu0.b32.cont [11/16] 0.0, 128
        %3951 = vxpose.xlu0.b32.cont [12/16] 0.0, 128
        %3952 = vxpose.xlu0.b32.cont [13/16] 0.0, 128
        %3953 = vxpose.xlu0.b32.cont [14/16] 0.0, 128
        %3954 = vxpose.xlu0.b32.cont [15/16] 0.0, 128
        %3955 = vxpose.xlu0.b32.end [16/16] 0.0, 128
        %v3956 = vpop.trf.xlu0
        %v3957 = vpop.trf.xlu0
        %v3958 = vpop.trf.xlu0
        %v3959 = vpop.trf.xlu0
        %v3960 = vpop.trf.xlu0
        %v3961 = vpop.trf.xlu0
        %v3962 = vpop.trf.xlu0
        %v3963 = vpop.trf.xlu0
        %v3964 = vpop.trf.xlu0
        %v3965 = vpop.trf.xlu0
        %v3966 = vpop.trf.xlu0
        %v3967 = vpop.trf.xlu0
        %v3968 = vpop.trf.xlu0
        %v3969 = vpop.trf.xlu0
        %v3970 = vpop.trf.xlu0
        %v3971 = vpop.trf.xlu0
        %3972 = vxpose.xlu0.b32.start [1/16] %v3840, 128
        %3973 = vxpose.xlu0.b32.cont [2/16] 0.0, 128
        %3974 = vxpose.xlu0.b32.cont [3/16] 0.0, 128
        %3975 = vxpose.xlu0.b32.cont [4/16] 0.0, 128
        %3976 = vxpose.xlu0.b32.cont [5/16] 0.0, 128
        %3977 = vxpose.xlu0.b32.cont [6/16] 0.0, 128
        %3978 = vxpose.xlu0.b32.cont [7/16] 0.0, 128
        %3979 = vxpose.xlu0.b32.cont [8/16] 0.0, 128
        %3980 = vxpose.xlu0.b32.cont [9/16] 0.0, 128
        %3981 = vxpose.xlu0.b32.cont [10/16] 0.0, 128
        %3982 = vxpose.xlu0.b32.cont [11/16] 0.0, 128
        %3983 = vxpose.xlu0.b32.cont [12/16] 0.0, 128
        %3984 = vxpose.xlu0.b32.cont [13/16] 0.0, 128
        %3985 = vxpose.xlu0.b32.cont [14/16] 0.0, 128
        %3986 = vxpose.xlu0.b32.cont [15/16] 0.0, 128
        %3987 = vxpose.xlu0.b32.end [16/16] 0.0, 128
        %v3988 = vpop.trf.xlu0
        %v3989 = vpop.trf.xlu0
        %v3990 = vpop.trf.xlu0
        %v3991 = vpop.trf.xlu0
        %v3992 = vpop.trf.xlu0
        %v3993 = vpop.trf.xlu0
        %v3994 = vpop.trf.xlu0
        %v3995 = vpop.trf.xlu0
        %v3996 = vpop.trf.xlu0
        %v3997 = vpop.trf.xlu0
        %v3998 = vpop.trf.xlu0
        %v3999 = vpop.trf.xlu0
        %v4000 = vpop.trf.xlu0
        %v4001 = vpop.trf.xlu0
        %v4002 = vpop.trf.xlu0
        %v4003 = vpop.trf.xlu0
        %4004 = vxpose.xlu0.b32.start [1/16] %v3841, 128
        %4005 = vxpose.xlu0.b32.cont [2/16] 0.0, 128
        %4006 = vxpose.xlu0.b32.cont [3/16] 0.0, 128
        %4007 = vxpose.xlu0.b32.cont [4/16] 0.0, 128
        %4008 = vxpose.xlu0.b32.cont [5/16] 0.0, 128
        %4009 = vxpose.xlu0.b32.cont [6/16] 0.0, 128
        %4010 = vxpose.xlu0.b32.cont [7/16] 0.0, 128
        %4011 = vxpose.xlu0.b32.cont [8/16] 0.0, 128
        %4012 = vxpose.xlu0.b32.cont [9/16] 0.0, 128
        %4013 = vxpose.xlu0.b32.cont [10/16] 0.0, 128
        %4014 = vxpose.xlu0.b32.cont [11/16] 0.0, 128
        %4015 = vxpose.xlu0.b32.cont [12/16] 0.0, 128
        %4016 = vxpose.xlu0.b32.cont [13/16] 0.0, 128
        %4017 = vxpose.xlu0.b32.cont [14/16] 0.0, 128
        %4018 = vxpose.xlu0.b32.cont [15/16] 0.0, 128
        %4019 = vxpose.xlu0.b32.end [16/16] 0.0, 128
        %v4020 = vpop.trf.xlu0
        %v4021 = vpop.trf.xlu0
        %v4022 = vpop.trf.xlu0
        %v4023 = vpop.trf.xlu0
        %v4024 = vpop.trf.xlu0
        %v4025 = vpop.trf.xlu0
        %v4026 = vpop.trf.xlu0
        %v4027 = vpop.trf.xlu0
        %v4028 = vpop.trf.xlu0
        %v4029 = vpop.trf.xlu0
        %v4030 = vpop.trf.xlu0
        %v4031 = vpop.trf.xlu0
        %v4032 = vpop.trf.xlu0
        %v4033 = vpop.trf.xlu0
        %v4034 = vpop.trf.xlu0
        %v4035 = vpop.trf.xlu0
        %4036 = vxpose.xlu0.b32.start [1/16] %v3842, 128
        %4037 = vxpose.xlu0.b32.cont [2/16] 0.0, 128
        %4038 = vxpose.xlu0.b32.cont [3/16] 0.0, 128
        %4039 = vxpose.xlu0.b32.cont [4/16] 0.0, 128
        %4040 = vxpose.xlu0.b32.cont [5/16] 0.0, 128
        %4041 = vxpose.xlu0.b32.cont [6/16] 0.0, 128
        %4042 = vxpose.xlu0.b32.cont [7/16] 0.0, 128
        %4043 = vxpose.xlu0.b32.cont [8/16] 0.0, 128
        %4044 = vxpose.xlu0.b32.cont [9/16] 0.0, 128
        %4045 = vxpose.xlu0.b32.cont [10/16] 0.0, 128
        %4046 = vxpose.xlu0.b32.cont [11/16] 0.0, 128
        %4047 = vxpose.xlu0.b32.cont [12/16] 0.0, 128
        %4048 = vxpose.xlu0.b32.cont [13/16] 0.0, 128
        %4049 = vxpose.xlu0.b32.cont [14/16] 0.0, 128
        %4050 = vxpose.xlu0.b32.cont [15/16] 0.0, 128
        %4051 = vxpose.xlu0.b32.end [16/16] 0.0, 128
        %v4052 = vpop.trf.xlu0
        %v4053 = vpop.trf.xlu0
        %v4054 = vpop.trf.xlu0
        %v4055 = vpop.trf.xlu0
        %v4056 = vpop.trf.xlu0
        %v4057 = vpop.trf.xlu0
        %v4058 = vpop.trf.xlu0
        %v4059 = vpop.trf.xlu0
        %v4060 = vpop.trf.xlu0
        %v4061 = vpop.trf.xlu0
        %v4062 = vpop.trf.xlu0
        %v4063 = vpop.trf.xlu0
        %v4064 = vpop.trf.xlu0
        %v4065 = vpop.trf.xlu0
        %v4066 = vpop.trf.xlu0
        %v4067 = vpop.trf.xlu0
        %4068 = vxpose.xlu0.b32.start [1/16] %v3843, 128
        %4069 = vxpose.xlu0.b32.cont [2/16] 0.0, 128
        %4070 = vxpose.xlu0.b32.cont [3/16] 0.0, 128
        %4071 = vxpose.xlu0.b32.cont [4/16] 0.0, 128
        %4072 = vxpose.xlu0.b32.cont [5/16] 0.0, 128
        %4073 = vxpose.xlu0.b32.cont [6/16] 0.0, 128
        %4074 = vxpose.xlu0.b32.cont [7/16] 0.0, 128
        %4075 = vxpose.xlu0.b32.cont [8/16] 0.0, 128
        %4076 = vxpose.xlu0.b32.cont [9/16] 0.0, 128
        %4077 = vxpose.xlu0.b32.cont [10/16] 0.0, 128
        %4078 = vxpose.xlu0.b32.cont [11/16] 0.0, 128
        %4079 = vxpose.xlu0.b32.cont [12/16] 0.0, 128
        %4080 = vxpose.xlu0.b32.cont [13/16] 0.0, 128
        %4081 = vxpose.xlu0.b32.cont [14/16] 0.0, 128
        %4082 = vxpose.xlu0.b32.cont [15/16] 0.0, 128
        %4083 = vxpose.xlu0.b32.end [16/16] 0.0, 128
        %v4084 = vpop.trf.xlu0
        %v4085 = vpop.trf.xlu0
        %v4086 = vpop.trf.xlu0
        %v4087 = vpop.trf.xlu0
        %v4088 = vpop.trf.xlu0
        %v4089 = vpop.trf.xlu0
        %v4090 = vpop.trf.xlu0
        %v4091 = vpop.trf.xlu0
        %v4092 = vpop.trf.xlu0
        %v4093 = vpop.trf.xlu0
        %v4094 = vpop.trf.xlu0
        %v4095 = vpop.trf.xlu0
        %v4096 = vpop.trf.xlu0
        %v4097 = vpop.trf.xlu0
        %v4098 = vpop.trf.xlu0
        %v4099 = vpop.trf.xlu0
        %v4100 = vcombine.low %v3860, %v3924
        %v4102 = vunpack.c.l.s4 1983009808
        %v4103 = vunpack.c.0.s8 %v4102
        %v4104 = vlaneseq
        %v4105 = vshrl.u32 %v4104, 7
        %v4106 = vsub.s32 %v4103, %v4105
        %v4107 = vrot.slane %v4100, %v4106
        %v4108 = vcombine.low %v3892, %v3956
        %v4110 = vunpack.c.l.s4 1983009808
        %v4111 = vunpack.c.0.s8 %v4110
        %v4112 = vlaneseq
        %v4113 = vshrl.u32 %v4112, 7
        %v4114 = vsub.s32 %v4111, %v4113
        %v4115 = vrot.slane %v4108, %v4114
        %v4116 = vcombine.low %v3988, %v4052
        %v4118 = vunpack.c.l.s4 1983009808
        %v4119 = vunpack.c.0.s8 %v4118
        %v4120 = vlaneseq
        %v4121 = vshrl.u32 %v4120, 7
        %v4122 = vsub.s32 %v4119, %v4121
        %v4123 = vrot.slane %v4116, %v4122
        %v4124 = vcombine.low %v4020, %v4084
        %v4126 = vunpack.c.l.s4 1983009808
        %v4127 = vunpack.c.0.s8 %v4126
        %v4128 = vlaneseq
        %v4129 = vshrl.u32 %v4128, 7
        %v4130 = vsub.s32 %v4127, %v4129
        %v4131 = vrot.slane %v4124, %v4130
        %v4132 = vcombine.low %v4107, %v4115
        %v4133 = vcombine.high %v4107, %v4115
        %v4135 = vunpack.c.l.s4 1934713408
        %v4136 = vunpack.c.0.s8 %v4135
        %v4137 = vlaneseq
        %v4138 = vshrl.u32 %v4137, 7
        %v4139 = vsub.s32 %v4136, %v4138
        %v4140 = vrot.slane %v4132, %v4139
        %v4142 = vunpack.c.l.s4 1934713408
        %v4143 = vunpack.c.0.s8 %v4142
        %v4144 = vlaneseq
        %v4145 = vshrl.u32 %v4144, 7
        %v4146 = vsub.s32 %v4143, %v4145
        %v4147 = vrot.slane %v4133, %v4146
        %v4148 = vcombine.low %v4123, %v4131
        %v4149 = vcombine.high %v4123, %v4131
        %v4151 = vunpack.c.l.s4 1934713408
        %v4152 = vunpack.c.0.s8 %v4151
        %v4153 = vlaneseq
        %v4154 = vshrl.u32 %v4153, 7
        %v4155 = vsub.s32 %v4152, %v4154
        %v4156 = vrot.slane %v4148, %v4155
        %v4158 = vunpack.c.l.s4 1934713408
        %v4159 = vunpack.c.0.s8 %v4158
        %v4160 = vlaneseq
        %v4161 = vshrl.u32 %v4160, 7
        %v4162 = vsub.s32 %v4159, %v4161
        %v4163 = vrot.slane %v4149, %v4162
        %v4164 = vcombine.low %v4140, %v4156
        %v4165 = vcombine.high %v4140, %v4156
        %v4166 = vcombine.low %v4147, %v4163
        %v4167 = vcombine.high %v4147, %v4163
        %v4169 = vsel %vm1203, %v4164, 0
        %v4172 = vsel %vm1203, %v3441, 0
        %4174 = vmatprep.subr.mxu0 0.0
        %4175 = vmatpush1.xpose.msra.mxu0 %v4172
        %4176 = vmatprep.subr.mxu0 0.0
        %4177 = vmatpush1.xpose.msra.mxu0 0.0
        %4178 = vmatprep.subr.mxu0 0.0
        %4179 = vmatpush1.xpose.msra.mxu0 0.0
        %4180 = vmatprep.subr.mxu0 0.0
        %4181 = vmatpush1.xpose.msra.mxu0 0.0
        %4182 = vmatprep.subr.mxu0 0.0
        %4183 = vmatpush1.xpose.msra.mxu0 0.0
        %4184 = vmatprep.subr.mxu0 0.0
        %4185 = vmatpush1.xpose.msra.mxu0 0.0
        %4186 = vmatprep.subr.mxu0 0.0
        %4187 = vmatpush1.xpose.msra.mxu0 0.0
        %4188 = vmatprep.subr.mxu0 0.0
        %4189 = vmatpush1.xpose.msra.mxu0 0.0
        %4190 = vmatprep.subr.mxu0 0.0
        %4191 = vmatpush1.xpose.msra.mxu0 0.0
        %4192 = vmatprep.subr.mxu0 0.0
        %4193 = vmatpush1.xpose.msra.mxu0 0.0
        %4194 = vmatprep.subr.mxu0 0.0
        %4195 = vmatpush1.xpose.msra.mxu0 0.0
        %4196 = vmatprep.subr.mxu0 0.0
        %4197 = vmatpush1.xpose.msra.mxu0 0.0
        %4198 = vmatprep.subr.mxu0 0.0
        %4199 = vmatpush1.xpose.msra.mxu0 0.0
        %4200 = vmatprep.subr.mxu0 0.0
        %4201 = vmatpush1.xpose.msra.mxu0 0.0
        %4202 = vmatprep.subr.mxu0 0.0
        %4203 = vmatpush1.xpose.msra.mxu0 0.0
        %4204 = vmatprep.subr.mxu0 0.0
        %4205 = vmatpush1.xpose.msra.mxu0 0.0
        %4206 = vmatprep.subr.mxu0 0.0
        %4207 = vmatpush1.xpose.msra.mxu0 0.0
        %4208 = vmatprep.subr.mxu0 0.0
        %4209 = vmatpush1.xpose.msra.mxu0 0.0
        %4210 = vmatprep.subr.mxu0 0.0
        %4211 = vmatpush1.xpose.msra.mxu0 0.0
        %4212 = vmatprep.subr.mxu0 0.0
        %4213 = vmatpush1.xpose.msra.mxu0 0.0
        %4214 = vmatprep.subr.mxu0 0.0
        %4215 = vmatpush1.xpose.msra.mxu0 0.0
        %4216 = vmatprep.subr.mxu0 0.0
        %4217 = vmatpush1.xpose.msra.mxu0 0.0
        %4218 = vmatprep.subr.mxu0 0.0
        %4219 = vmatpush1.xpose.msra.mxu0 0.0
        %4220 = vmatprep.subr.mxu0 0.0
        %4221 = vmatpush1.xpose.msra.mxu0 0.0
        %4222 = vmatprep.subr.mxu0 0.0
        %4223 = vmatpush1.xpose.msra.mxu0 0.0
        %4224 = vmatprep.subr.mxu0 0.0
        %4225 = vmatpush1.xpose.msra.mxu0 0.0
        %4226 = vmatprep.subr.mxu0 0.0
        %4227 = vmatpush1.xpose.msra.mxu0 0.0
        %4228 = vmatprep.subr.mxu0 0.0
        %4229 = vmatpush1.xpose.msra.mxu0 0.0
        %4230 = vmatprep.subr.mxu0 0.0
        %4231 = vmatpush1.xpose.msra.mxu0 0.0
        %4232 = vmatprep.subr.mxu0 0.0
        %4233 = vmatpush1.xpose.msra.mxu0 0.0
        %4234 = vmatprep.subr.mxu0 0.0
        %4235 = vmatpush1.xpose.msra.mxu0 0.0
        %4236 = vmatprep.subr.mxu0 0.0
        %4237 = vmatpush1.xpose.msra.mxu0 0.0
        %4238 = vmatprep.mubr.f32.mxu0 0.0
        %4239 = vmatmul.mubr.f32.gmra.mrb[0].mxu0 %v4169
        %v4240 = vpop.f32.mrb[0].mxu0
        %v4241 = vadd.f32 0.0, %v4240
        %v4242 = vpop.f32.mrb[0].mxu0
        %4243 = vdwg.mxu0
        %v4245 = vsel %vm1203, %v4165, 0
        %v4248 = vsel %vm1203, %v3443, 0
        %4250 = vmatprep.subr.mxu0 0.0
        %4251 = vmatpush1.xpose.msra.mxu0 %v4248
        %4252 = vmatprep.subr.mxu0 0.0
        %4253 = vmatpush1.xpose.msra.mxu0 0.0
        %4254 = vmatprep.subr.mxu0 0.0
        %4255 = vmatpush1.xpose.msra.mxu0 0.0
        %4256 = vmatprep.subr.mxu0 0.0
        %4257 = vmatpush1.xpose.msra.mxu0 0.0
        %4258 = vmatprep.subr.mxu0 0.0
        %4259 = vmatpush1.xpose.msra.mxu0 0.0
        %4260 = vmatprep.subr.mxu0 0.0
        %4261 = vmatpush1.xpose.msra.mxu0 0.0
        %4262 = vmatprep.subr.mxu0 0.0
        %4263 = vmatpush1.xpose.msra.mxu0 0.0
        %4264 = vmatprep.subr.mxu0 0.0
        %4265 = vmatpush1.xpose.msra.mxu0 0.0
        %4266 = vmatprep.subr.mxu0 0.0
        %4267 = vmatpush1.xpose.msra.mxu0 0.0
        %4268 = vmatprep.subr.mxu0 0.0
        %4269 = vmatpush1.xpose.msra.mxu0 0.0
        %4270 = vmatprep.subr.mxu0 0.0
        %4271 = vmatpush1.xpose.msra.mxu0 0.0
        %4272 = vmatprep.subr.mxu0 0.0
        %4273 = vmatpush1.xpose.msra.mxu0 0.0
        %4274 = vmatprep.subr.mxu0 0.0
        %4275 = vmatpush1.xpose.msra.mxu0 0.0
        %4276 = vmatprep.subr.mxu0 0.0
        %4277 = vmatpush1.xpose.msra.mxu0 0.0
        %4278 = vmatprep.subr.mxu0 0.0
        %4279 = vmatpush1.xpose.msra.mxu0 0.0
        %4280 = vmatprep.subr.mxu0 0.0
        %4281 = vmatpush1.xpose.msra.mxu0 0.0
        %4282 = vmatprep.subr.mxu0 0.0
        %4283 = vmatpush1.xpose.msra.mxu0 0.0
        %4284 = vmatprep.subr.mxu0 0.0
        %4285 = vmatpush1.xpose.msra.mxu0 0.0
        %4286 = vmatprep.subr.mxu0 0.0
        %4287 = vmatpush1.xpose.msra.mxu0 0.0
        %4288 = vmatprep.subr.mxu0 0.0
        %4289 = vmatpush1.xpose.msra.mxu0 0.0
        %4290 = vmatprep.subr.mxu0 0.0
        %4291 = vmatpush1.xpose.msra.mxu0 0.0
        %4292 = vmatprep.subr.mxu0 0.0
        %4293 = vmatpush1.xpose.msra.mxu0 0.0
        %4294 = vmatprep.subr.mxu0 0.0
        %4295 = vmatpush1.xpose.msra.mxu0 0.0
        %4296 = vmatprep.subr.mxu0 0.0
        %4297 = vmatpush1.xpose.msra.mxu0 0.0
        %4298 = vmatprep.subr.mxu0 0.0
        %4299 = vmatpush1.xpose.msra.mxu0 0.0
        %4300 = vmatprep.subr.mxu0 0.0
        %4301 = vmatpush1.xpose.msra.mxu0 0.0
        %4302 = vmatprep.subr.mxu0 0.0
        %4303 = vmatpush1.xpose.msra.mxu0 0.0
        %4304 = vmatprep.subr.mxu0 0.0
        %4305 = vmatpush1.xpose.msra.mxu0 0.0
        %4306 = vmatprep.subr.mxu0 0.0
        %4307 = vmatpush1.xpose.msra.mxu0 0.0
        %4308 = vmatprep.subr.mxu0 0.0
        %4309 = vmatpush1.xpose.msra.mxu0 0.0
        %4310 = vmatprep.subr.mxu0 0.0
        %4311 = vmatpush1.xpose.msra.mxu0 0.0
        %4312 = vmatprep.subr.mxu0 0.0
        %4313 = vmatpush1.xpose.msra.mxu0 0.0
        %4314 = vmatprep.mubr.f32.mxu0 0.0
        %4315 = vmatmul.mubr.f32.gmra.mrb[0].mxu0 %v4245
        %v4316 = vpop.f32.mrb[0].mxu0
        %v4317 = vadd.f32 0.0, %v4316
        %v4318 = vpop.f32.mrb[0].mxu0
        %4319 = vdwg.mxu0
        %v4321 = vsel %vm1203, %v4166, 0
        %v4324 = vsel %vm1203, %v3445, 0
        %4326 = vmatprep.subr.mxu0 0.0
        %4327 = vmatpush1.xpose.msra.mxu0 %v4324
        %4328 = vmatprep.subr.mxu0 0.0
        %4329 = vmatpush1.xpose.msra.mxu0 0.0
        %4330 = vmatprep.subr.mxu0 0.0
        %4331 = vmatpush1.xpose.msra.mxu0 0.0
        %4332 = vmatprep.subr.mxu0 0.0
        %4333 = vmatpush1.xpose.msra.mxu0 0.0
        %4334 = vmatprep.subr.mxu0 0.0
        %4335 = vmatpush1.xpose.msra.mxu0 0.0
        %4336 = vmatprep.subr.mxu0 0.0
        %4337 = vmatpush1.xpose.msra.mxu0 0.0
        %4338 = vmatprep.subr.mxu0 0.0
        %4339 = vmatpush1.xpose.msra.mxu0 0.0
        %4340 = vmatprep.subr.mxu0 0.0
        %4341 = vmatpush1.xpose.msra.mxu0 0.0
        %4342 = vmatprep.subr.mxu0 0.0
        %4343 = vmatpush1.xpose.msra.mxu0 0.0
        %4344 = vmatprep.subr.mxu0 0.0
        %4345 = vmatpush1.xpose.msra.mxu0 0.0
        %4346 = vmatprep.subr.mxu0 0.0
        %4347 = vmatpush1.xpose.msra.mxu0 0.0
        %4348 = vmatprep.subr.mxu0 0.0
        %4349 = vmatpush1.xpose.msra.mxu0 0.0
        %4350 = vmatprep.subr.mxu0 0.0
        %4351 = vmatpush1.xpose.msra.mxu0 0.0
        %4352 = vmatprep.subr.mxu0 0.0
        %4353 = vmatpush1.xpose.msra.mxu0 0.0
        %4354 = vmatprep.subr.mxu0 0.0
        %4355 = vmatpush1.xpose.msra.mxu0 0.0
        %4356 = vmatprep.subr.mxu0 0.0
        %4357 = vmatpush1.xpose.msra.mxu0 0.0
        %4358 = vmatprep.subr.mxu0 0.0
        %4359 = vmatpush1.xpose.msra.mxu0 0.0
        %4360 = vmatprep.subr.mxu0 0.0
        %4361 = vmatpush1.xpose.msra.mxu0 0.0
        %4362 = vmatprep.subr.mxu0 0.0
        %4363 = vmatpush1.xpose.msra.mxu0 0.0
        %4364 = vmatprep.subr.mxu0 0.0
        %4365 = vmatpush1.xpose.msra.mxu0 0.0
        %4366 = vmatprep.subr.mxu0 0.0
        %4367 = vmatpush1.xpose.msra.mxu0 0.0
        %4368 = vmatprep.subr.mxu0 0.0
        %4369 = vmatpush1.xpose.msra.mxu0 0.0
        %4370 = vmatprep.subr.mxu0 0.0
        %4371 = vmatpush1.xpose.msra.mxu0 0.0
        %4372 = vmatprep.subr.mxu0 0.0
        %4373 = vmatpush1.xpose.msra.mxu0 0.0
        %4374 = vmatprep.subr.mxu0 0.0
        %4375 = vmatpush1.xpose.msra.mxu0 0.0
        %4376 = vmatprep.subr.mxu0 0.0
        %4377 = vmatpush1.xpose.msra.mxu0 0.0
        %4378 = vmatprep.subr.mxu0 0.0
        %4379 = vmatpush1.xpose.msra.mxu0 0.0
        %4380 = vmatprep.subr.mxu0 0.0
        %4381 = vmatpush1.xpose.msra.mxu0 0.0
        %4382 = vmatprep.subr.mxu0 0.0
        %4383 = vmatpush1.xpose.msra.mxu0 0.0
        %4384 = vmatprep.subr.mxu0 0.0
        %4385 = vmatpush1.xpose.msra.mxu0 0.0
        %4386 = vmatprep.subr.mxu0 0.0
        %4387 = vmatpush1.xpose.msra.mxu0 0.0
        %4388 = vmatprep.subr.mxu0 0.0
        %4389 = vmatpush1.xpose.msra.mxu0 0.0
        %4390 = vmatprep.mubr.f32.mxu0 0.0
        %4391 = vmatmul.mubr.f32.gmra.mrb[0].mxu0 %v4321
        %v4392 = vpop.f32.mrb[0].mxu0
        %v4393 = vadd.f32 0.0, %v4392
        %v4394 = vpop.f32.mrb[0].mxu0
        %4395 = vdwg.mxu0
        %v4397 = vsel %vm1203, %v4167, 0
        %v4400 = vsel %vm1203, %v3447, 0
        %4402 = vmatprep.subr.mxu0 0.0
        %4403 = vmatpush1.xpose.msra.mxu0 %v4400
        %4404 = vmatprep.subr.mxu0 0.0
        %4405 = vmatpush1.xpose.msra.mxu0 0.0
        %4406 = vmatprep.subr.mxu0 0.0
        %4407 = vmatpush1.xpose.msra.mxu0 0.0
        %4408 = vmatprep.subr.mxu0 0.0
        %4409 = vmatpush1.xpose.msra.mxu0 0.0
        %4410 = vmatprep.subr.mxu0 0.0
        %4411 = vmatpush1.xpose.msra.mxu0 0.0
        %4412 = vmatprep.subr.mxu0 0.0
        %4413 = vmatpush1.xpose.msra.mxu0 0.0
        %4414 = vmatprep.subr.mxu0 0.0
        %4415 = vmatpush1.xpose.msra.mxu0 0.0
        %4416 = vmatprep.subr.mxu0 0.0
        %4417 = vmatpush1.xpose.msra.mxu0 0.0
        %4418 = vmatprep.subr.mxu0 0.0
        %4419 = vmatpush1.xpose.msra.mxu0 0.0
        %4420 = vmatprep.subr.mxu0 0.0
        %4421 = vmatpush1.xpose.msra.mxu0 0.0
        %4422 = vmatprep.subr.mxu0 0.0
        %4423 = vmatpush1.xpose.msra.mxu0 0.0
        %4424 = vmatprep.subr.mxu0 0.0
        %4425 = vmatpush1.xpose.msra.mxu0 0.0
        %4426 = vmatprep.subr.mxu0 0.0
        %4427 = vmatpush1.xpose.msra.mxu0 0.0
        %4428 = vmatprep.subr.mxu0 0.0
        %4429 = vmatpush1.xpose.msra.mxu0 0.0
        %4430 = vmatprep.subr.mxu0 0.0
        %4431 = vmatpush1.xpose.msra.mxu0 0.0
        %4432 = vmatprep.subr.mxu0 0.0
        %4433 = vmatpush1.xpose.msra.mxu0 0.0
        %4434 = vmatprep.subr.mxu0 0.0
        %4435 = vmatpush1.xpose.msra.mxu0 0.0
        %4436 = vmatprep.subr.mxu0 0.0
        %4437 = vmatpush1.xpose.msra.mxu0 0.0
        %4438 = vmatprep.subr.mxu0 0.0
        %4439 = vmatpush1.xpose.msra.mxu0 0.0
        %4440 = vmatprep.subr.mxu0 0.0
        %4441 = vmatpush1.xpose.msra.mxu0 0.0
        %4442 = vmatprep.subr.mxu0 0.0
        %4443 = vmatpush1.xpose.msra.mxu0 0.0
        %4444 = vmatprep.subr.mxu0 0.0
        %4445 = vmatpush1.xpose.msra.mxu0 0.0
        %4446 = vmatprep.subr.mxu0 0.0
        %4447 = vmatpush1.xpose.msra.mxu0 0.0
        %4448 = vmatprep.subr.mxu0 0.0
        %4449 = vmatpush1.xpose.msra.mxu0 0.0
        %4450 = vmatprep.subr.mxu0 0.0
        %4451 = vmatpush1.xpose.msra.mxu0 0.0
        %4452 = vmatprep.subr.mxu0 0.0
        %4453 = vmatpush1.xpose.msra.mxu0 0.0
        %4454 = vmatprep.subr.mxu0 0.0
        %4455 = vmatpush1.xpose.msra.mxu0 0.0
        %4456 = vmatprep.subr.mxu0 0.0
        %4457 = vmatpush1.xpose.msra.mxu0 0.0
        %4458 = vmatprep.subr.mxu0 0.0
        %4459 = vmatpush1.xpose.msra.mxu0 0.0
        %4460 = vmatprep.subr.mxu0 0.0
        %4461 = vmatpush1.xpose.msra.mxu0 0.0
        %4462 = vmatprep.subr.mxu0 0.0
        %4463 = vmatpush1.xpose.msra.mxu0 0.0
        %4464 = vmatprep.subr.mxu0 0.0
        %4465 = vmatpush1.xpose.msra.mxu0 0.0
        %4466 = vmatprep.mubr.f32.mxu0 0.0
        %4467 = vmatmul.mubr.f32.gmra.mrb[0].mxu0 %v4397
        %v4468 = vpop.f32.mrb[0].mxu0
        %v4469 = vadd.f32 0.0, %v4468
        %v4470 = vpop.f32.mrb[0].mxu0
        %4471 = vdwg.mxu0
        %4472 = vxpose.xlu0.b32.start [1/16] %v4241, 128
        %4473 = vxpose.xlu0.b32.cont [2/16] 0.0, 128
        %4474 = vxpose.xlu0.b32.cont [3/16] 0.0, 128
        %4475 = vxpose.xlu0.b32.cont [4/16] 0.0, 128
        %4476 = vxpose.xlu0.b32.cont [5/16] 0.0, 128
        %4477 = vxpose.xlu0.b32.cont [6/16] 0.0, 128
        %4478 = vxpose.xlu0.b32.cont [7/16] 0.0, 128
        %4479 = vxpose.xlu0.b32.cont [8/16] 0.0, 128
        %4480 = vxpose.xlu0.b32.cont [9/16] 0.0, 128
        %4481 = vxpose.xlu0.b32.cont [10/16] 0.0, 128
        %4482 = vxpose.xlu0.b32.cont [11/16] 0.0, 128
        %4483 = vxpose.xlu0.b32.cont [12/16] 0.0, 128
        %4484 = vxpose.xlu0.b32.cont [13/16] 0.0, 128
        %4485 = vxpose.xlu0.b32.cont [14/16] 0.0, 128
        %4486 = vxpose.xlu0.b32.cont [15/16] 0.0, 128
        %4487 = vxpose.xlu0.b32.end [16/16] 0.0, 128
        %v4488 = vpop.trf.xlu0
        %v4489 = vpop.trf.xlu0
        %v4490 = vpop.trf.xlu0
        %v4491 = vpop.trf.xlu0
        %v4492 = vpop.trf.xlu0
        %v4493 = vpop.trf.xlu0
        %v4494 = vpop.trf.xlu0
        %v4495 = vpop.trf.xlu0
        %v4496 = vpop.trf.xlu0
        %v4497 = vpop.trf.xlu0
        %v4498 = vpop.trf.xlu0
        %v4499 = vpop.trf.xlu0
        %v4500 = vpop.trf.xlu0
        %v4501 = vpop.trf.xlu0
        %v4502 = vpop.trf.xlu0
        %v4503 = vpop.trf.xlu0
        %4504 = vxpose.xlu0.b32.start [1/16] %v4317, 128
        %4505 = vxpose.xlu0.b32.cont [2/16] 0.0, 128
        %4506 = vxpose.xlu0.b32.cont [3/16] 0.0, 128
        %4507 = vxpose.xlu0.b32.cont [4/16] 0.0, 128
        %4508 = vxpose.xlu0.b32.cont [5/16] 0.0, 128
        %4509 = vxpose.xlu0.b32.cont [6/16] 0.0, 128
        %4510 = vxpose.xlu0.b32.cont [7/16] 0.0, 128
        %4511 = vxpose.xlu0.b32.cont [8/16] 0.0, 128
        %4512 = vxpose.xlu0.b32.cont [9/16] 0.0, 128
        %4513 = vxpose.xlu0.b32.cont [10/16] 0.0, 128
        %4514 = vxpose.xlu0.b32.cont [11/16] 0.0, 128
        %4515 = vxpose.xlu0.b32.cont [12/16] 0.0, 128
        %4516 = vxpose.xlu0.b32.cont [13/16] 0.0, 128
        %4517 = vxpose.xlu0.b32.cont [14/16] 0.0, 128
        %4518 = vxpose.xlu0.b32.cont [15/16] 0.0, 128
        %4519 = vxpose.xlu0.b32.end [16/16] 0.0, 128
        %v4520 = vpop.trf.xlu0
        %v4521 = vpop.trf.xlu0
        %v4522 = vpop.trf.xlu0
        %v4523 = vpop.trf.xlu0
        %v4524 = vpop.trf.xlu0
        %v4525 = vpop.trf.xlu0
        %v4526 = vpop.trf.xlu0
        %v4527 = vpop.trf.xlu0
        %v4528 = vpop.trf.xlu0
        %v4529 = vpop.trf.xlu0
        %v4530 = vpop.trf.xlu0
        %v4531 = vpop.trf.xlu0
        %v4532 = vpop.trf.xlu0
        %v4533 = vpop.trf.xlu0
        %v4534 = vpop.trf.xlu0
        %v4535 = vpop.trf.xlu0
        %4536 = vxpose.xlu0.b32.start [1/16] %v4393, 128
        %4537 = vxpose.xlu0.b32.cont [2/16] 0.0, 128
        %4538 = vxpose.xlu0.b32.cont [3/16] 0.0, 128
        %4539 = vxpose.xlu0.b32.cont [4/16] 0.0, 128
        %4540 = vxpose.xlu0.b32.cont [5/16] 0.0, 128
        %4541 = vxpose.xlu0.b32.cont [6/16] 0.0, 128
        %4542 = vxpose.xlu0.b32.cont [7/16] 0.0, 128
        %4543 = vxpose.xlu0.b32.cont [8/16] 0.0, 128
        %4544 = vxpose.xlu0.b32.cont [9/16] 0.0, 128
        %4545 = vxpose.xlu0.b32.cont [10/16] 0.0, 128
        %4546 = vxpose.xlu0.b32.cont [11/16] 0.0, 128
        %4547 = vxpose.xlu0.b32.cont [12/16] 0.0, 128
        %4548 = vxpose.xlu0.b32.cont [13/16] 0.0, 128
        %4549 = vxpose.xlu0.b32.cont [14/16] 0.0, 128
        %4550 = vxpose.xlu0.b32.cont [15/16] 0.0, 128
        %4551 = vxpose.xlu0.b32.end [16/16] 0.0, 128
        %v4552 = vpop.trf.xlu0
        %v4553 = vpop.trf.xlu0
        %v4554 = vpop.trf.xlu0
        %v4555 = vpop.trf.xlu0
        %v4556 = vpop.trf.xlu0
        %v4557 = vpop.trf.xlu0
        %v4558 = vpop.trf.xlu0
        %v4559 = vpop.trf.xlu0
        %v4560 = vpop.trf.xlu0
        %v4561 = vpop.trf.xlu0
        %v4562 = vpop.trf.xlu0
        %v4563 = vpop.trf.xlu0
        %v4564 = vpop.trf.xlu0
        %v4565 = vpop.trf.xlu0
        %v4566 = vpop.trf.xlu0
        %v4567 = vpop.trf.xlu0
        %4568 = vxpose.xlu0.b32.start [1/16] %v4469, 128
        %4569 = vxpose.xlu0.b32.cont [2/16] 0.0, 128
        %4570 = vxpose.xlu0.b32.cont [3/16] 0.0, 128
        %4571 = vxpose.xlu0.b32.cont [4/16] 0.0, 128
        %4572 = vxpose.xlu0.b32.cont [5/16] 0.0, 128
        %4573 = vxpose.xlu0.b32.cont [6/16] 0.0, 128
        %4574 = vxpose.xlu0.b32.cont [7/16] 0.0, 128
        %4575 = vxpose.xlu0.b32.cont [8/16] 0.0, 128
        %4576 = vxpose.xlu0.b32.cont [9/16] 0.0, 128
        %4577 = vxpose.xlu0.b32.cont [10/16] 0.0, 128
        %4578 = vxpose.xlu0.b32.cont [11/16] 0.0, 128
        %4579 = vxpose.xlu0.b32.cont [12/16] 0.0, 128
        %4580 = vxpose.xlu0.b32.cont [13/16] 0.0, 128
        %4581 = vxpose.xlu0.b32.cont [14/16] 0.0, 128
        %4582 = vxpose.xlu0.b32.cont [15/16] 0.0, 128
        %4583 = vxpose.xlu0.b32.end [16/16] 0.0, 128
        %v4584 = vpop.trf.xlu0
        %v4585 = vpop.trf.xlu0
        %v4586 = vpop.trf.xlu0
        %v4587 = vpop.trf.xlu0
        %v4588 = vpop.trf.xlu0
        %v4589 = vpop.trf.xlu0
        %v4590 = vpop.trf.xlu0
        %v4591 = vpop.trf.xlu0
        %v4592 = vpop.trf.xlu0
        %v4593 = vpop.trf.xlu0
        %v4594 = vpop.trf.xlu0
        %v4595 = vpop.trf.xlu0
        %v4596 = vpop.trf.xlu0
        %v4597 = vpop.trf.xlu0
        %v4598 = vpop.trf.xlu0
        %v4599 = vpop.trf.xlu0
        %v4600 = vcombine.low %v4488, %v4552
        %v4601 = vcombine.high %v4488, %v4552
        %v4603 = vunpack.c.l.s4 1983009808
        %v4604 = vunpack.c.0.s8 %v4603
        %v4605 = vlaneseq
        %v4606 = vshrl.u32 %v4605, 7
        %v4607 = vsub.s32 %v4604, %v4606
        %v4608 = vrot.slane %v4600, %v4607
        %v4610 = vunpack.c.l.s4 1983009808
        %v4611 = vunpack.c.0.s8 %v4610
        %v4612 = vlaneseq
        %v4613 = vshrl.u32 %v4612, 7
        %v4614 = vsub.s32 %v4611, %v4613
        %v4615 = vrot.slane %v4601, %v4614
        %v4616 = vcombine.low %v4520, %v4584
        %v4617 = vcombine.high %v4520, %v4584
        %v4619 = vunpack.c.l.s4 1983009808
        %v4620 = vunpack.c.0.s8 %v4619
        %v4621 = vlaneseq
        %v4622 = vshrl.u32 %v4621, 7
        %v4623 = vsub.s32 %v4620, %v4622
        %v4624 = vrot.slane %v4616, %v4623
        %v4626 = vunpack.c.l.s4 1983009808
        %v4627 = vunpack.c.0.s8 %v4626
        %v4628 = vlaneseq
        %v4629 = vshrl.u32 %v4628, 7
        %v4630 = vsub.s32 %v4627, %v4629
        %v4631 = vrot.slane %v4617, %v4630
        %v4632 = vcombine.low %v4608, %v4624
        %v4633 = vcombine.high %v4608, %v4624
        %v4635 = vunpack.c.l.s4 1934713408
        %v4636 = vunpack.c.0.s8 %v4635
        %v4637 = vlaneseq
        %v4638 = vshrl.u32 %v4637, 7
        %v4639 = vsub.s32 %v4636, %v4638
        %v4640 = vrot.slane %v4632, %v4639
        %v4642 = vunpack.c.l.s4 1934713408
        %v4643 = vunpack.c.0.s8 %v4642
        %v4644 = vlaneseq
        %v4645 = vshrl.u32 %v4644, 7
        %v4646 = vsub.s32 %v4643, %v4645
        %v4647 = vrot.slane %v4633, %v4646
        %v4648 = vcombine.low %v4615, %v4631
        %v4649 = vcombine.high %v4615, %v4631
        %v4651 = vunpack.c.l.s4 1934713408
        %v4652 = vunpack.c.0.s8 %v4651
        %v4653 = vlaneseq
        %v4654 = vshrl.u32 %v4653, 7
        %v4655 = vsub.s32 %v4652, %v4654
        %v4656 = vrot.slane %v4648, %v4655
        %v4658 = vunpack.c.l.s4 1934713408
        %v4659 = vunpack.c.0.s8 %v4658
        %v4660 = vlaneseq
        %v4661 = vshrl.u32 %v4660, 7
        %v4662 = vsub.s32 %v4659, %v4661
        %v4663 = vrot.slane %v4649, %v4662
        %v4664 = vcombine.high %v4640, 0.0
        %v4665 = vcombine.high %v4647, 0.0
        %v4666 = vcombine.high %v4656, 0.0
        %v4667 = vcombine.high %v4663, 0.0
        %v4668 = vcombine.low %v3441, %v3445
        %v4669 = vcombine.high %v3441, %v3445
        %v4671 = vunpack.c.l.s4 1983009808
        %v4672 = vunpack.c.0.s8 %v4671
        %v4673 = vlaneseq
        %v4674 = vshrl.u32 %v4673, 7
        %v4675 = vsub.s32 %v4672, %v4674
        %v4676 = vrot.slane %v4668, %v4675
        %v4678 = vunpack.c.l.s4 1983009808
        %v4679 = vunpack.c.0.s8 %v4678
        %v4680 = vlaneseq
        %v4681 = vshrl.u32 %v4680, 7
        %v4682 = vsub.s32 %v4679, %v4681
        %v4683 = vrot.slane %v4669, %v4682
        %v4684 = vcombine.low %v3443, %v3447
        %v4685 = vcombine.high %v3443, %v3447
        %v4687 = vunpack.c.l.s4 1983009808
        %v4688 = vunpack.c.0.s8 %v4687
        %v4689 = vlaneseq
        %v4690 = vshrl.u32 %v4689, 7
        %v4691 = vsub.s32 %v4688, %v4690
        %v4692 = vrot.slane %v4684, %v4691
        %v4694 = vunpack.c.l.s4 1983009808
        %v4695 = vunpack.c.0.s8 %v4694
        %v4696 = vlaneseq
        %v4697 = vshrl.u32 %v4696, 7
        %v4698 = vsub.s32 %v4695, %v4697
        %v4699 = vrot.slane %v4685, %v4698
        %v4700 = vcombine.low %v4676, %v4692
        %v4701 = vcombine.high %v4676, %v4692
        %v4703 = vunpack.c.l.s4 1934713408
        %v4704 = vunpack.c.0.s8 %v4703
        %v4705 = vlaneseq
        %v4706 = vshrl.u32 %v4705, 7
        %v4707 = vsub.s32 %v4704, %v4706
        %v4708 = vrot.slane %v4700, %v4707
        %v4710 = vunpack.c.l.s4 1934713408
        %v4711 = vunpack.c.0.s8 %v4710
        %v4712 = vlaneseq
        %v4713 = vshrl.u32 %v4712, 7
        %v4714 = vsub.s32 %v4711, %v4713
        %v4715 = vrot.slane %v4701, %v4714
        %v4716 = vcombine.low %v4683, %v4699
        %v4717 = vcombine.high %v4683, %v4699
        %v4719 = vunpack.c.l.s4 1934713408
        %v4720 = vunpack.c.0.s8 %v4719
        %v4721 = vlaneseq
        %v4722 = vshrl.u32 %v4721, 7
        %v4723 = vsub.s32 %v4720, %v4722
        %v4724 = vrot.slane %v4716, %v4723
        %v4726 = vunpack.c.l.s4 1934713408
        %v4727 = vunpack.c.0.s8 %v4726
        %v4728 = vlaneseq
        %v4729 = vshrl.u32 %v4728, 7
        %v4730 = vsub.s32 %v4727, %v4729
        %v4731 = vrot.slane %v4717, %v4730
        %v4732 = vcombine.high %v4708, 0.0
        %v4733 = vcombine.high %v4715, 0.0
        %v4734 = vcombine.high %v4724, 0.0
        %v4735 = vcombine.high %v4731, 0.0
        %v4737 = vsel %vm1203, %v4708, 0
        %4739 = vmatprep.subr.mxu0 0.0
        %4740 = vmatpush1.msra.mxu0 %v1182
        %4741 = vmatprep.subr.mxu0 0.0
        %4742 = vmatpush1.msra.mxu0 0.0
        %4743 = vmatprep.subr.mxu0 0.0
        %4744 = vmatpush1.msra.mxu0 0.0
        %4745 = vmatprep.subr.mxu0 0.0
        %4746 = vmatpush1.msra.mxu0 0.0
        %4747 = vmatprep.subr.mxu0 0.0
        %4748 = vmatpush1.msra.mxu0 0.0
        %4749 = vmatprep.subr.mxu0 0.0
        %4750 = vmatpush1.msra.mxu0 0.0
        %4751 = vmatprep.subr.mxu0 0.0
        %4752 = vmatpush1.msra.mxu0 0.0
        %4753 = vmatprep.subr.mxu0 0.0
        %4754 = vmatpush1.msra.mxu0 0.0
        %4755 = vmatprep.subr.mxu0 0.0
        %4756 = vmatpush1.msra.mxu0 0.0
        %4757 = vmatprep.subr.mxu0 0.0
        %4758 = vmatpush1.msra.mxu0 0.0
        %4759 = vmatprep.subr.mxu0 0.0
        %4760 = vmatpush1.msra.mxu0 0.0
        %4761 = vmatprep.subr.mxu0 0.0
        %4762 = vmatpush1.msra.mxu0 0.0
        %4763 = vmatprep.subr.mxu0 0.0
        %4764 = vmatpush1.msra.mxu0 0.0
        %4765 = vmatprep.subr.mxu0 0.0
        %4766 = vmatpush1.msra.mxu0 0.0
        %4767 = vmatprep.subr.mxu0 0.0
        %4768 = vmatpush1.msra.mxu0 0.0
        %4769 = vmatprep.subr.mxu0 0.0
        %4770 = vmatpush1.msra.mxu0 0.0
        %4771 = vmatprep.subr.mxu0 0.0
        %4772 = vmatpush1.msra.mxu0 0.0
        %4773 = vmatprep.subr.mxu0 0.0
        %4774 = vmatpush1.msra.mxu0 0.0
        %4775 = vmatprep.subr.mxu0 0.0
        %4776 = vmatpush1.msra.mxu0 0.0
        %4777 = vmatprep.subr.mxu0 0.0
        %4778 = vmatpush1.msra.mxu0 0.0
        %4779 = vmatprep.subr.mxu0 0.0
        %4780 = vmatpush1.msra.mxu0 0.0
        %4781 = vmatprep.subr.mxu0 0.0
        %4782 = vmatpush1.msra.mxu0 0.0
        %4783 = vmatprep.subr.mxu0 0.0
        %4784 = vmatpush1.msra.mxu0 0.0
        %4785 = vmatprep.subr.mxu0 0.0
        %4786 = vmatpush1.msra.mxu0 0.0
        %4787 = vmatprep.subr.mxu0 0.0
        %4788 = vmatpush1.msra.mxu0 0.0
        %4789 = vmatprep.subr.mxu0 0.0
        %4790 = vmatpush1.msra.mxu0 0.0
        %4791 = vmatprep.subr.mxu0 0.0
        %4792 = vmatpush1.msra.mxu0 0.0
        %4793 = vmatprep.subr.mxu0 0.0
        %4794 = vmatpush1.msra.mxu0 0.0
        %4795 = vmatprep.subr.mxu0 0.0
        %4796 = vmatpush1.msra.mxu0 0.0
        %4797 = vmatprep.subr.mxu0 0.0
        %4798 = vmatpush1.msra.mxu0 0.0
        %4799 = vmatprep.subr.mxu0 0.0
        %4800 = vmatpush1.msra.mxu0 0.0
        %4801 = vmatprep.subr.mxu0 0.0
        %4802 = vmatpush1.msra.mxu0 0.0
        %4803 = vmatprep.mubr.f32.mxu0 0.0
        %4804 = vmatmul.mubr.f32.gmra.mrb[0].mxu0 %v4737
        %v4805 = vpop.f32.mrb[0].mxu0
        %v4806 = vadd.f32 0.0, %v4805
        %v4807 = vpop.f32.mrb[0].mxu0
        %4808 = vdwg.mxu0
        %v4810 = vsel %vm1203, %v4732, 0
        %4812 = vmatprep.subr.mxu0 0.0
        %4813 = vmatpush1.msra.mxu0 %v1183
        %4814 = vmatprep.subr.mxu0 0.0
        %4815 = vmatpush1.msra.mxu0 0.0
        %4816 = vmatprep.subr.mxu0 0.0
        %4817 = vmatpush1.msra.mxu0 0.0
        %4818 = vmatprep.subr.mxu0 0.0
        %4819 = vmatpush1.msra.mxu0 0.0
        %4820 = vmatprep.subr.mxu0 0.0
        %4821 = vmatpush1.msra.mxu0 0.0
        %4822 = vmatprep.subr.mxu0 0.0
        %4823 = vmatpush1.msra.mxu0 0.0
        %4824 = vmatprep.subr.mxu0 0.0
        %4825 = vmatpush1.msra.mxu0 0.0
        %4826 = vmatprep.subr.mxu0 0.0
        %4827 = vmatpush1.msra.mxu0 0.0
        %4828 = vmatprep.subr.mxu0 0.0
        %4829 = vmatpush1.msra.mxu0 0.0
        %4830 = vmatprep.subr.mxu0 0.0
        %4831 = vmatpush1.msra.mxu0 0.0
        %4832 = vmatprep.subr.mxu0 0.0
        %4833 = vmatpush1.msra.mxu0 0.0
        %4834 = vmatprep.subr.mxu0 0.0
        %4835 = vmatpush1.msra.mxu0 0.0
        %4836 = vmatprep.subr.mxu0 0.0
        %4837 = vmatpush1.msra.mxu0 0.0
        %4838 = vmatprep.subr.mxu0 0.0
        %4839 = vmatpush1.msra.mxu0 0.0
        %4840 = vmatprep.subr.mxu0 0.0
        %4841 = vmatpush1.msra.mxu0 0.0
        %4842 = vmatprep.subr.mxu0 0.0
        %4843 = vmatpush1.msra.mxu0 0.0
        %4844 = vmatprep.subr.mxu0 0.0
        %4845 = vmatpush1.msra.mxu0 0.0
        %4846 = vmatprep.subr.mxu0 0.0
        %4847 = vmatpush1.msra.mxu0 0.0
        %4848 = vmatprep.subr.mxu0 0.0
        %4849 = vmatpush1.msra.mxu0 0.0
        %4850 = vmatprep.subr.mxu0 0.0
        %4851 = vmatpush1.msra.mxu0 0.0
        %4852 = vmatprep.subr.mxu0 0.0
        %4853 = vmatpush1.msra.mxu0 0.0
        %4854 = vmatprep.subr.mxu0 0.0
        %4855 = vmatpush1.msra.mxu0 0.0
        %4856 = vmatprep.subr.mxu0 0.0
        %4857 = vmatpush1.msra.mxu0 0.0
        %4858 = vmatprep.subr.mxu0 0.0
        %4859 = vmatpush1.msra.mxu0 0.0
        %4860 = vmatprep.subr.mxu0 0.0
        %4861 = vmatpush1.msra.mxu0 0.0
        %4862 = vmatprep.subr.mxu0 0.0
        %4863 = vmatpush1.msra.mxu0 0.0
        %4864 = vmatprep.subr.mxu0 0.0
        %4865 = vmatpush1.msra.mxu0 0.0
        %4866 = vmatprep.subr.mxu0 0.0
        %4867 = vmatpush1.msra.mxu0 0.0
        %4868 = vmatprep.subr.mxu0 0.0
        %4869 = vmatpush1.msra.mxu0 0.0
        %4870 = vmatprep.subr.mxu0 0.0
        %4871 = vmatpush1.msra.mxu0 0.0
        %4872 = vmatprep.subr.mxu0 0.0
        %4873 = vmatpush1.msra.mxu0 0.0
        %4874 = vmatprep.subr.mxu0 0.0
        %4875 = vmatpush1.msra.mxu0 0.0
        %4876 = vmatprep.mubr.f32.mxu0 0.0
        %4877 = vmatmul.mubr.f32.gmra.mrb[0].mxu0 %v4810
        %v4878 = vpop.f32.mrb[0].mxu0
        %v4879 = vadd.f32 0.0, %v4878
        %v4880 = vpop.f32.mrb[0].mxu0
        %4881 = vdwg.mxu0
        %v4883 = vsel %vm1203, %v4715, 0
        %4885 = vmatprep.subr.mxu0 0.0
        %4886 = vmatpush1.msra.mxu0 %v1184
        %4887 = vmatprep.subr.mxu0 0.0
        %4888 = vmatpush1.msra.mxu0 0.0
        %4889 = vmatprep.subr.mxu0 0.0
        %4890 = vmatpush1.msra.mxu0 0.0
        %4891 = vmatprep.subr.mxu0 0.0
        %4892 = vmatpush1.msra.mxu0 0.0
        %4893 = vmatprep.subr.mxu0 0.0
        %4894 = vmatpush1.msra.mxu0 0.0
        %4895 = vmatprep.subr.mxu0 0.0
        %4896 = vmatpush1.msra.mxu0 0.0
        %4897 = vmatprep.subr.mxu0 0.0
        %4898 = vmatpush1.msra.mxu0 0.0
        %4899 = vmatprep.subr.mxu0 0.0
        %4900 = vmatpush1.msra.mxu0 0.0
        %4901 = vmatprep.subr.mxu0 0.0
        %4902 = vmatpush1.msra.mxu0 0.0
        %4903 = vmatprep.subr.mxu0 0.0
        %4904 = vmatpush1.msra.mxu0 0.0
        %4905 = vmatprep.subr.mxu0 0.0
        %4906 = vmatpush1.msra.mxu0 0.0
        %4907 = vmatprep.subr.mxu0 0.0
        %4908 = vmatpush1.msra.mxu0 0.0
        %4909 = vmatprep.subr.mxu0 0.0
        %4910 = vmatpush1.msra.mxu0 0.0
        %4911 = vmatprep.subr.mxu0 0.0
        %4912 = vmatpush1.msra.mxu0 0.0
        %4913 = vmatprep.subr.mxu0 0.0
        %4914 = vmatpush1.msra.mxu0 0.0
        %4915 = vmatprep.subr.mxu0 0.0
        %4916 = vmatpush1.msra.mxu0 0.0
        %4917 = vmatprep.subr.mxu0 0.0
        %4918 = vmatpush1.msra.mxu0 0.0
        %4919 = vmatprep.subr.mxu0 0.0
        %4920 = vmatpush1.msra.mxu0 0.0
        %4921 = vmatprep.subr.mxu0 0.0
        %4922 = vmatpush1.msra.mxu0 0.0
        %4923 = vmatprep.subr.mxu0 0.0
        %4924 = vmatpush1.msra.mxu0 0.0
        %4925 = vmatprep.subr.mxu0 0.0
        %4926 = vmatpush1.msra.mxu0 0.0
        %4927 = vmatprep.subr.mxu0 0.0
        %4928 = vmatpush1.msra.mxu0 0.0
        %4929 = vmatprep.subr.mxu0 0.0
        %4930 = vmatpush1.msra.mxu0 0.0
        %4931 = vmatprep.subr.mxu0 0.0
        %4932 = vmatpush1.msra.mxu0 0.0
        %4933 = vmatprep.subr.mxu0 0.0
        %4934 = vmatpush1.msra.mxu0 0.0
        %4935 = vmatprep.subr.mxu0 0.0
        %4936 = vmatpush1.msra.mxu0 0.0
        %4937 = vmatprep.subr.mxu0 0.0
        %4938 = vmatpush1.msra.mxu0 0.0
        %4939 = vmatprep.subr.mxu0 0.0
        %4940 = vmatpush1.msra.mxu0 0.0
        %4941 = vmatprep.subr.mxu0 0.0
        %4942 = vmatpush1.msra.mxu0 0.0
        %4943 = vmatprep.subr.mxu0 0.0
        %4944 = vmatpush1.msra.mxu0 0.0
        %4945 = vmatprep.subr.mxu0 0.0
        %4946 = vmatpush1.msra.mxu0 0.0
        %4947 = vmatprep.subr.mxu0 0.0
        %4948 = vmatpush1.msra.mxu0 0.0
        %4949 = vmatprep.mubr.f32.mxu0 0.0
        %4950 = vmatmul.mubr.f32.gmra.mrb[0].mxu0 %v4883
        %v4951 = vpop.f32.mrb[0].mxu0
        %v4952 = vadd.f32 0.0, %v4951
        %v4953 = vpop.f32.mrb[0].mxu0
        %4954 = vdwg.mxu0
        %v4956 = vsel %vm1203, %v4733, 0
        %4958 = vmatprep.subr.mxu0 0.0
        %4959 = vmatpush1.msra.mxu0 %v1185
        %4960 = vmatprep.subr.mxu0 0.0
        %4961 = vmatpush1.msra.mxu0 0.0
        %4962 = vmatprep.subr.mxu0 0.0
        %4963 = vmatpush1.msra.mxu0 0.0
        %4964 = vmatprep.subr.mxu0 0.0
        %4965 = vmatpush1.msra.mxu0 0.0
        %4966 = vmatprep.subr.mxu0 0.0
        %4967 = vmatpush1.msra.mxu0 0.0
        %4968 = vmatprep.subr.mxu0 0.0
        %4969 = vmatpush1.msra.mxu0 0.0
        %4970 = vmatprep.subr.mxu0 0.0
        %4971 = vmatpush1.msra.mxu0 0.0
        %4972 = vmatprep.subr.mxu0 0.0
        %4973 = vmatpush1.msra.mxu0 0.0
        %4974 = vmatprep.subr.mxu0 0.0
        %4975 = vmatpush1.msra.mxu0 0.0
        %4976 = vmatprep.subr.mxu0 0.0
        %4977 = vmatpush1.msra.mxu0 0.0
        %4978 = vmatprep.subr.mxu0 0.0
        %4979 = vmatpush1.msra.mxu0 0.0
        %4980 = vmatprep.subr.mxu0 0.0
        %4981 = vmatpush1.msra.mxu0 0.0
        %4982 = vmatprep.subr.mxu0 0.0
        %4983 = vmatpush1.msra.mxu0 0.0
        %4984 = vmatprep.subr.mxu0 0.0
        %4985 = vmatpush1.msra.mxu0 0.0
        %4986 = vmatprep.subr.mxu0 0.0
        %4987 = vmatpush1.msra.mxu0 0.0
        %4988 = vmatprep.subr.mxu0 0.0
        %4989 = vmatpush1.msra.mxu0 0.0
        %4990 = vmatprep.subr.mxu0 0.0
        %4991 = vmatpush1.msra.mxu0 0.0
        %4992 = vmatprep.subr.mxu0 0.0
        %4993 = vmatpush1.msra.mxu0 0.0
        %4994 = vmatprep.subr.mxu0 0.0
        %4995 = vmatpush1.msra.mxu0 0.0
        %4996 = vmatprep.subr.mxu0 0.0
        %4997 = vmatpush1.msra.mxu0 0.0
        %4998 = vmatprep.subr.mxu0 0.0
        %4999 = vmatpush1.msra.mxu0 0.0
        %5000 = vmatprep.subr.mxu0 0.0
        %5001 = vmatpush1.msra.mxu0 0.0
        %5002 = vmatprep.subr.mxu0 0.0
        %5003 = vmatpush1.msra.mxu0 0.0
        %5004 = vmatprep.subr.mxu0 0.0
        %5005 = vmatpush1.msra.mxu0 0.0
        %5006 = vmatprep.subr.mxu0 0.0
        %5007 = vmatpush1.msra.mxu0 0.0
        %5008 = vmatprep.subr.mxu0 0.0
        %5009 = vmatpush1.msra.mxu0 0.0
        %5010 = vmatprep.subr.mxu0 0.0
        %5011 = vmatpush1.msra.mxu0 0.0
        %5012 = vmatprep.subr.mxu0 0.0
        %5013 = vmatpush1.msra.mxu0 0.0
        %5014 = vmatprep.subr.mxu0 0.0
        %5015 = vmatpush1.msra.mxu0 0.0
        %5016 = vmatprep.subr.mxu0 0.0
        %5017 = vmatpush1.msra.mxu0 0.0
        %5018 = vmatprep.subr.mxu0 0.0
        %5019 = vmatpush1.msra.mxu0 0.0
        %5020 = vmatprep.subr.mxu0 0.0
        %5021 = vmatpush1.msra.mxu0 0.0
        %5022 = vmatprep.mubr.f32.mxu0 0.0
        %5023 = vmatmul.mubr.f32.gmra.mrb[0].mxu0 %v4956
        %v5024 = vpop.f32.mrb[0].mxu0
        %v5025 = vadd.f32 0.0, %v5024
        %v5026 = vpop.f32.mrb[0].mxu0
        %5027 = vdwg.mxu0
        %v5029 = vsel %vm1203, %v4724, 0
        %5031 = vmatprep.subr.mxu0 0.0
        %5032 = vmatpush1.msra.mxu0 %v1186
        %5033 = vmatprep.subr.mxu0 0.0
        %5034 = vmatpush1.msra.mxu0 0.0
        %5035 = vmatprep.subr.mxu0 0.0
        %5036 = vmatpush1.msra.mxu0 0.0
        %5037 = vmatprep.subr.mxu0 0.0
        %5038 = vmatpush1.msra.mxu0 0.0
        %5039 = vmatprep.subr.mxu0 0.0
        %5040 = vmatpush1.msra.mxu0 0.0
        %5041 = vmatprep.subr.mxu0 0.0
        %5042 = vmatpush1.msra.mxu0 0.0
        %5043 = vmatprep.subr.mxu0 0.0
        %5044 = vmatpush1.msra.mxu0 0.0
        %5045 = vmatprep.subr.mxu0 0.0
        %5046 = vmatpush1.msra.mxu0 0.0
        %5047 = vmatprep.subr.mxu0 0.0
        %5048 = vmatpush1.msra.mxu0 0.0
        %5049 = vmatprep.subr.mxu0 0.0
        %5050 = vmatpush1.msra.mxu0 0.0
        %5051 = vmatprep.subr.mxu0 0.0
        %5052 = vmatpush1.msra.mxu0 0.0
        %5053 = vmatprep.subr.mxu0 0.0
        %5054 = vmatpush1.msra.mxu0 0.0
        %5055 = vmatprep.subr.mxu0 0.0
        %5056 = vmatpush1.msra.mxu0 0.0
        %5057 = vmatprep.subr.mxu0 0.0
        %5058 = vmatpush1.msra.mxu0 0.0
        %5059 = vmatprep.subr.mxu0 0.0
        %5060 = vmatpush1.msra.mxu0 0.0
        %5061 = vmatprep.subr.mxu0 0.0
        %5062 = vmatpush1.msra.mxu0 0.0
        %5063 = vmatprep.subr.mxu0 0.0
        %5064 = vmatpush1.msra.mxu0 0.0
        %5065 = vmatprep.subr.mxu0 0.0
        %5066 = vmatpush1.msra.mxu0 0.0
        %5067 = vmatprep.subr.mxu0 0.0
        %5068 = vmatpush1.msra.mxu0 0.0
        %5069 = vmatprep.subr.mxu0 0.0
        %5070 = vmatpush1.msra.mxu0 0.0
        %5071 = vmatprep.subr.mxu0 0.0
        %5072 = vmatpush1.msra.mxu0 0.0
        %5073 = vmatprep.subr.mxu0 0.0
        %5074 = vmatpush1.msra.mxu0 0.0
        %5075 = vmatprep.subr.mxu0 0.0
        %5076 = vmatpush1.msra.mxu0 0.0
        %5077 = vmatprep.subr.mxu0 0.0
        %5078 = vmatpush1.msra.mxu0 0.0
        %5079 = vmatprep.subr.mxu0 0.0
        %5080 = vmatpush1.msra.mxu0 0.0
        %5081 = vmatprep.subr.mxu0 0.0
        %5082 = vmatpush1.msra.mxu0 0.0
        %5083 = vmatprep.subr.mxu0 0.0
        %5084 = vmatpush1.msra.mxu0 0.0
        %5085 = vmatprep.subr.mxu0 0.0
        %5086 = vmatpush1.msra.mxu0 0.0
        %5087 = vmatprep.subr.mxu0 0.0
        %5088 = vmatpush1.msra.mxu0 0.0
        %5089 = vmatprep.subr.mxu0 0.0
        %5090 = vmatpush1.msra.mxu0 0.0
        %5091 = vmatprep.subr.mxu0 0.0
        %5092 = vmatpush1.msra.mxu0 0.0
        %5093 = vmatprep.subr.mxu0 0.0
        %5094 = vmatpush1.msra.mxu0 0.0
        %5095 = vmatprep.mubr.f32.mxu0 0.0
        %5096 = vmatmul.mubr.f32.gmra.mrb[0].mxu0 %v5029
        %v5097 = vpop.f32.mrb[0].mxu0
        %v5098 = vadd.f32 0.0, %v5097
        %v5099 = vpop.f32.mrb[0].mxu0
        %5100 = vdwg.mxu0
        %v5102 = vsel %vm1203, %v4734, 0
        %5104 = vmatprep.subr.mxu0 0.0
        %5105 = vmatpush1.msra.mxu0 %v1187
        %5106 = vmatprep.subr.mxu0 0.0
        %5107 = vmatpush1.msra.mxu0 0.0
        %5108 = vmatprep.subr.mxu0 0.0
        %5109 = vmatpush1.msra.mxu0 0.0
        %5110 = vmatprep.subr.mxu0 0.0
        %5111 = vmatpush1.msra.mxu0 0.0
        %5112 = vmatprep.subr.mxu0 0.0
        %5113 = vmatpush1.msra.mxu0 0.0
        %5114 = vmatprep.subr.mxu0 0.0
        %5115 = vmatpush1.msra.mxu0 0.0
        %5116 = vmatprep.subr.mxu0 0.0
        %5117 = vmatpush1.msra.mxu0 0.0
        %5118 = vmatprep.subr.mxu0 0.0
        %5119 = vmatpush1.msra.mxu0 0.0
        %5120 = vmatprep.subr.mxu0 0.0
        %5121 = vmatpush1.msra.mxu0 0.0
        %5122 = vmatprep.subr.mxu0 0.0
        %5123 = vmatpush1.msra.mxu0 0.0
        %5124 = vmatprep.subr.mxu0 0.0
        %5125 = vmatpush1.msra.mxu0 0.0
        %5126 = vmatprep.subr.mxu0 0.0
        %5127 = vmatpush1.msra.mxu0 0.0
        %5128 = vmatprep.subr.mxu0 0.0
        %5129 = vmatpush1.msra.mxu0 0.0
        %5130 = vmatprep.subr.mxu0 0.0
        %5131 = vmatpush1.msra.mxu0 0.0
        %5132 = vmatprep.subr.mxu0 0.0
        %5133 = vmatpush1.msra.mxu0 0.0
        %5134 = vmatprep.subr.mxu0 0.0
        %5135 = vmatpush1.msra.mxu0 0.0
        %5136 = vmatprep.subr.mxu0 0.0
        %5137 = vmatpush1.msra.mxu0 0.0
        %5138 = vmatprep.subr.mxu0 0.0
        %5139 = vmatpush1.msra.mxu0 0.0
        %5140 = vmatprep.subr.mxu0 0.0
        %5141 = vmatpush1.msra.mxu0 0.0
        %5142 = vmatprep.subr.mxu0 0.0
        %5143 = vmatpush1.msra.mxu0 0.0
        %5144 = vmatprep.subr.mxu0 0.0
        %5145 = vmatpush1.msra.mxu0 0.0
        %5146 = vmatprep.subr.mxu0 0.0
        %5147 = vmatpush1.msra.mxu0 0.0
        %5148 = vmatprep.subr.mxu0 0.0
        %5149 = vmatpush1.msra.mxu0 0.0
        %5150 = vmatprep.subr.mxu0 0.0
        %5151 = vmatpush1.msra.mxu0 0.0
        %5152 = vmatprep.subr.mxu0 0.0
        %5153 = vmatpush1.msra.mxu0 0.0
        %5154 = vmatprep.subr.mxu0 0.0
        %5155 = vmatpush1.msra.mxu0 0.0
        %5156 = vmatprep.subr.mxu0 0.0
        %5157 = vmatpush1.msra.mxu0 0.0
        %5158 = vmatprep.subr.mxu0 0.0
        %5159 = vmatpush1.msra.mxu0 0.0
        %5160 = vmatprep.subr.mxu0 0.0
        %5161 = vmatpush1.msra.mxu0 0.0
        %5162 = vmatprep.subr.mxu0 0.0
        %5163 = vmatpush1.msra.mxu0 0.0
        %5164 = vmatprep.subr.mxu0 0.0
        %5165 = vmatpush1.msra.mxu0 0.0
        %5166 = vmatprep.subr.mxu0 0.0
        %5167 = vmatpush1.msra.mxu0 0.0
        %5168 = vmatprep.mubr.f32.mxu0 0.0
        %5169 = vmatmul.mubr.f32.gmra.mrb[0].mxu0 %v5102
        %v5170 = vpop.f32.mrb[0].mxu0
        %v5171 = vadd.f32 0.0, %v5170
        %v5172 = vpop.f32.mrb[0].mxu0
        %5173 = vdwg.mxu0
        %v5175 = vsel %vm1203, %v4731, 0
        %5177 = vmatprep.subr.mxu0 0.0
        %5178 = vmatpush1.msra.mxu0 %v1188
        %5179 = vmatprep.subr.mxu0 0.0
        %5180 = vmatpush1.msra.mxu0 0.0
        %5181 = vmatprep.subr.mxu0 0.0
        %5182 = vmatpush1.msra.mxu0 0.0
        %5183 = vmatprep.subr.mxu0 0.0
        %5184 = vmatpush1.msra.mxu0 0.0
        %5185 = vmatprep.subr.mxu0 0.0
        %5186 = vmatpush1.msra.mxu0 0.0
        %5187 = vmatprep.subr.mxu0 0.0
        %5188 = vmatpush1.msra.mxu0 0.0
        %5189 = vmatprep.subr.mxu0 0.0
        %5190 = vmatpush1.msra.mxu0 0.0
        %5191 = vmatprep.subr.mxu0 0.0
        %5192 = vmatpush1.msra.mxu0 0.0
        %5193 = vmatprep.subr.mxu0 0.0
        %5194 = vmatpush1.msra.mxu0 0.0
        %5195 = vmatprep.subr.mxu0 0.0
        %5196 = vmatpush1.msra.mxu0 0.0
        %5197 = vmatprep.subr.mxu0 0.0
        %5198 = vmatpush1.msra.mxu0 0.0
        %5199 = vmatprep.subr.mxu0 0.0
        %5200 = vmatpush1.msra.mxu0 0.0
        %5201 = vmatprep.subr.mxu0 0.0
        %5202 = vmatpush1.msra.mxu0 0.0
        %5203 = vmatprep.subr.mxu0 0.0
        %5204 = vmatpush1.msra.mxu0 0.0
        %5205 = vmatprep.subr.mxu0 0.0
        %5206 = vmatpush1.msra.mxu0 0.0
        %5207 = vmatprep.subr.mxu0 0.0
        %5208 = vmatpush1.msra.mxu0 0.0
        %5209 = vmatprep.subr.mxu0 0.0
        %5210 = vmatpush1.msra.mxu0 0.0
        %5211 = vmatprep.subr.mxu0 0.0
        %5212 = vmatpush1.msra.mxu0 0.0
        %5213 = vmatprep.subr.mxu0 0.0
        %5214 = vmatpush1.msra.mxu0 0.0
        %5215 = vmatprep.subr.mxu0 0.0
        %5216 = vmatpush1.msra.mxu0 0.0
        %5217 = vmatprep.subr.mxu0 0.0
        %5218 = vmatpush1.msra.mxu0 0.0
        %5219 = vmatprep.subr.mxu0 0.0
        %5220 = vmatpush1.msra.mxu0 0.0
        %5221 = vmatprep.subr.mxu0 0.0
        %5222 = vmatpush1.msra.mxu0 0.0
        %5223 = vmatprep.subr.mxu0 0.0
        %5224 = vmatpush1.msra.mxu0 0.0
        %5225 = vmatprep.subr.mxu0 0.0
        %5226 = vmatpush1.msra.mxu0 0.0
        %5227 = vmatprep.subr.mxu0 0.0
        %5228 = vmatpush1.msra.mxu0 0.0
        %5229 = vmatprep.subr.mxu0 0.0
        %5230 = vmatpush1.msra.mxu0 0.0
        %5231 = vmatprep.subr.mxu0 0.0
        %5232 = vmatpush1.msra.mxu0 0.0
        %5233 = vmatprep.subr.mxu0 0.0
        %5234 = vmatpush1.msra.mxu0 0.0
        %5235 = vmatprep.subr.mxu0 0.0
        %5236 = vmatpush1.msra.mxu0 0.0
        %5237 = vmatprep.subr.mxu0 0.0
        %5238 = vmatpush1.msra.mxu0 0.0
        %5239 = vmatprep.subr.mxu0 0.0
        %5240 = vmatpush1.msra.mxu0 0.0
        %5241 = vmatprep.mubr.f32.mxu0 0.0
        %5242 = vmatmul.mubr.f32.gmra.mrb[0].mxu0 %v5175
        %v5243 = vpop.f32.mrb[0].mxu0
        %v5244 = vadd.f32 0.0, %v5243
        %v5245 = vpop.f32.mrb[0].mxu0
        %5246 = vdwg.mxu0
        %v5248 = vsel %vm1203, %v4735, 0
        %5250 = vmatprep.subr.mxu0 0.0
        %5251 = vmatpush1.msra.mxu0 %v1189
        %5252 = vmatprep.subr.mxu0 0.0
        %5253 = vmatpush1.msra.mxu0 0.0
        %5254 = vmatprep.subr.mxu0 0.0
        %5255 = vmatpush1.msra.mxu0 0.0
        %5256 = vmatprep.subr.mxu0 0.0
        %5257 = vmatpush1.msra.mxu0 0.0
        %5258 = vmatprep.subr.mxu0 0.0
        %5259 = vmatpush1.msra.mxu0 0.0
        %5260 = vmatprep.subr.mxu0 0.0
        %5261 = vmatpush1.msra.mxu0 0.0
        %5262 = vmatprep.subr.mxu0 0.0
        %5263 = vmatpush1.msra.mxu0 0.0
        %5264 = vmatprep.subr.mxu0 0.0
        %5265 = vmatpush1.msra.mxu0 0.0
        %5266 = vmatprep.subr.mxu0 0.0
        %5267 = vmatpush1.msra.mxu0 0.0
        %5268 = vmatprep.subr.mxu0 0.0
        %5269 = vmatpush1.msra.mxu0 0.0
        %5270 = vmatprep.subr.mxu0 0.0
        %5271 = vmatpush1.msra.mxu0 0.0
        %5272 = vmatprep.subr.mxu0 0.0
        %5273 = vmatpush1.msra.mxu0 0.0
        %5274 = vmatprep.subr.mxu0 0.0
        %5275 = vmatpush1.msra.mxu0 0.0
        %5276 = vmatprep.subr.mxu0 0.0
        %5277 = vmatpush1.msra.mxu0 0.0
        %5278 = vmatprep.subr.mxu0 0.0
        %5279 = vmatpush1.msra.mxu0 0.0
        %5280 = vmatprep.subr.mxu0 0.0
        %5281 = vmatpush1.msra.mxu0 0.0
        %5282 = vmatprep.subr.mxu0 0.0
        %5283 = vmatpush1.msra.mxu0 0.0
        %5284 = vmatprep.subr.mxu0 0.0
        %5285 = vmatpush1.msra.mxu0 0.0
        %5286 = vmatprep.subr.mxu0 0.0
        %5287 = vmatpush1.msra.mxu0 0.0
        %5288 = vmatprep.subr.mxu0 0.0
        %5289 = vmatpush1.msra.mxu0 0.0
        %5290 = vmatprep.subr.mxu0 0.0
        %5291 = vmatpush1.msra.mxu0 0.0
        %5292 = vmatprep.subr.mxu0 0.0
        %5293 = vmatpush1.msra.mxu0 0.0
        %5294 = vmatprep.subr.mxu0 0.0
        %5295 = vmatpush1.msra.mxu0 0.0
        %5296 = vmatprep.subr.mxu0 0.0
        %5297 = vmatpush1.msra.mxu0 0.0
        %5298 = vmatprep.subr.mxu0 0.0
        %5299 = vmatpush1.msra.mxu0 0.0
        %5300 = vmatprep.subr.mxu0 0.0
        %5301 = vmatpush1.msra.mxu0 0.0
        %5302 = vmatprep.subr.mxu0 0.0
        %5303 = vmatpush1.msra.mxu0 0.0
        %5304 = vmatprep.subr.mxu0 0.0
        %5305 = vmatpush1.msra.mxu0 0.0
        %5306 = vmatprep.subr.mxu0 0.0
        %5307 = vmatpush1.msra.mxu0 0.0
        %5308 = vmatprep.subr.mxu0 0.0
        %5309 = vmatpush1.msra.mxu0 0.0
        %5310 = vmatprep.subr.mxu0 0.0
        %5311 = vmatpush1.msra.mxu0 0.0
        %5312 = vmatprep.subr.mxu0 0.0
        %5313 = vmatpush1.msra.mxu0 0.0
        %5314 = vmatprep.mubr.f32.mxu0 0.0
        %5315 = vmatmul.mubr.f32.gmra.mrb[0].mxu0 %v5248
        %v5316 = vpop.f32.mrb[0].mxu0
        %v5317 = vadd.f32 0.0, %v5316
        %v5318 = vpop.f32.mrb[0].mxu0
        %5319 = vdwg.mxu0
        %v5320 = vsel %vm1203, %v3441, 0.0
        %5321 = vadd.xlane.f32.xlu0 %v5320
        %v5322 = vpop.xlane.xlu0 %5321
        %v5323 = vsel %vm1203, %v3443, 0.0
        %5324 = vadd.xlane.f32.xlu0 %v5323
        %v5325 = vpop.xlane.xlu0 %5324
        %v5326 = vsel %vm1203, %v3445, 0.0
        %5327 = vadd.xlane.f32.xlu0 %v5326
        %v5328 = vpop.xlane.xlu0 %5327
        %v5329 = vsel %vm1203, %v3447, 0.0
        %5330 = vadd.xlane.f32.xlu0 %v5329
        %v5331 = vpop.xlane.xlu0 %5330
        %v5332 = vld [vmem:[%s9] sm:$0xff]
        %v5333 = vld [vmem:[%s9 + $0x8] sm:$0xff]
        %v5338 = vlaneseq
        %v5339 = vshrl.u32 %v5338, 7
        %v5340 = vsub.s32 %v3282, %v5339
        %v5341 = vrot.slane %v5322, %v5340
        %v5342 = vlaneseq
        %v5343 = vshrl.u32 %v5342, 7
        %v5344 = vsub.s32 %v3282, %v5343
        %v5345 = vrot.slane %v5325, %v5344
        %v5346 = vlaneseq
        %v5347 = vshrl.u32 %v5346, 7
        %v5348 = vsub.s32 %v3282, %v5347
        %v5349 = vrot.slane %v5328, %v5348
        %v5350 = vlaneseq
        %v5351 = vshrl.u32 %v5350, 7
        %v5352 = vsub.s32 %v3282, %v5351
        %v5353 = vrot.slane %v5331, %v5352
        %v5354 = vsel %vm3315, %v5345, %v5341
        %v5355 = vsel %vm3317, %v5349, %v5354
        %v5356 = vsel %vm3319, %v5353, %v5355
        %5358 = vxpose.xlu0.b32.start [1/16] %v5356, 128
        %5359 = vxpose.xlu0.b32.cont [2/16] 0.0, 128
        %5360 = vxpose.xlu0.b32.cont [3/16] 0.0, 128
        %5361 = vxpose.xlu0.b32.cont [4/16] 0.0, 128
        %5362 = vxpose.xlu0.b32.cont [5/16] 0.0, 128
        %5363 = vxpose.xlu0.b32.cont [6/16] 0.0, 128
        %5364 = vxpose.xlu0.b32.cont [7/16] 0.0, 128
        %5365 = vxpose.xlu0.b32.cont [8/16] 0.0, 128
        %5366 = vxpose.xlu0.b32.cont [9/16] 0.0, 128
        %5367 = vxpose.xlu0.b32.cont [10/16] 0.0, 128
        %5368 = vxpose.xlu0.b32.cont [11/16] 0.0, 128
        %5369 = vxpose.xlu0.b32.cont [12/16] 0.0, 128
        %5370 = vxpose.xlu0.b32.cont [13/16] 0.0, 128
        %5371 = vxpose.xlu0.b32.cont [14/16] 0.0, 128
        %5372 = vxpose.xlu0.b32.cont [15/16] 0.0, 128
        %5373 = vxpose.xlu0.b32.end [16/16] 0.0, 128
        %v5374 = vpop.trf.xlu0
        %v5375 = vpop.trf.xlu0
        %v5376 = vpop.trf.xlu0
        %v5377 = vpop.trf.xlu0
        %v5378 = vpop.trf.xlu0
        %v5379 = vpop.trf.xlu0
        %v5380 = vpop.trf.xlu0
        %v5381 = vpop.trf.xlu0
        %v5382 = vpop.trf.xlu0
        %v5383 = vpop.trf.xlu0
        %v5384 = vpop.trf.xlu0
        %v5385 = vpop.trf.xlu0
        %v5386 = vpop.trf.xlu0
        %v5387 = vpop.trf.xlu0
        %v5388 = vpop.trf.xlu0
        %v5389 = vpop.trf.xlu0
        %v5390 = vlaneseq
        %v5391 = vshrl.u32 %v5390, 7
        %v5392 = vsub.s32 0, %v5391
        %v5393 = vrot.slane %v5374, %v5392
        %5395 = vbcast.lane.b32.xlu0 %v5393, 256
        %v5396 = vpop.permute.xlu0 %5395
        %v5397 = vlaneseq
        %v5398 = vshrl.u32 %v5397, 7
        %v5399 = vsub.s32 1, %v5398
        %v5400 = vrot.slane %v5374, %v5399
        %5402 = vbcast.lane.b32.xlu0 %v5400, 256
        %v5403 = vpop.permute.xlu0 %5402
        %v5404 = vlaneseq
        %v5405 = vshrl.u32 %v5404, 7
        %v5406 = vsub.s32 2, %v5405
        %v5407 = vrot.slane %v5374, %v5406
        %5409 = vbcast.lane.b32.xlu0 %v5407, 256
        %v5410 = vpop.permute.xlu0 %5409
        %v5411 = vlaneseq
        %v5412 = vshrl.u32 %v5411, 7
        %v5413 = vsub.s32 3, %v5412
        %v5414 = vrot.slane %v5374, %v5413
        %5416 = vbcast.lane.b32.xlu0 %v5414, 256
        %v5417 = vpop.permute.xlu0 %5416
        %v5418 = vlaneseq
        %v5419 = vshrl.u32 %v5418, 7
        %v5420 = vsub.s32 4, %v5419
        %v5421 = vrot.slane %v5374, %v5420
        %5423 = vbcast.lane.b32.xlu0 %v5421, 256
        %v5424 = vpop.permute.xlu0 %5423
        %v5425 = vlaneseq
        %v5426 = vshrl.u32 %v5425, 7
        %v5427 = vsub.s32 5, %v5426
        %v5428 = vrot.slane %v5374, %v5427
        %5430 = vbcast.lane.b32.xlu0 %v5428, 256
        %v5431 = vpop.permute.xlu0 %5430
        %v5432 = vlaneseq
        %v5433 = vshrl.u32 %v5432, 7
        %v5434 = vsub.s32 6, %v5433
        %v5435 = vrot.slane %v5374, %v5434
        %5437 = vbcast.lane.b32.xlu0 %v5435, 256
        %v5438 = vpop.permute.xlu0 %5437
        %v5439 = vlaneseq
        %v5440 = vshrl.u32 %v5439, 7
        %v5441 = vsub.s32 7, %v5440
        %v5442 = vrot.slane %v5374, %v5441
        %5444 = vbcast.lane.b32.xlu0 %v5442, 256
        %v5445 = vpop.permute.xlu0 %5444
        %v5446 = vld [vmem:[#allocation14] sm:$0x1]
        %v5448 = vlaneseq
        %v5449 = vshrl.u32 %v5448, 7
        %v5450 = vsub.s32 0, %v5449
        %v5451 = vrot.slane %v5446, %v5450
        %v5453 = vmul.f32 %v5396, %v5451
        %v5454 = vmul.f32 %v5403, %v5451
        %v5455 = vmul.f32 %v5410, %v5451
        %v5456 = vmul.f32 %v5417, %v5451
        %v5457 = vmul.f32 %v5424, %v5451
        %v5458 = vmul.f32 %v5431, %v5451
        %v5459 = vmul.f32 %v5438, %v5451
        %v5460 = vmul.f32 %v5445, %v5451
        %v5469 = vcombine.low %v4806, %v4879
        %v5470 = vcombine.low %v4952, %v5025
        %v5471 = vcombine.low %v5098, %v5171
        %v5472 = vcombine.low %v5244, %v5317
        %v5481 = vcombine.low %v5453, %v5454
        %v5482 = vcombine.low %v5455, %v5456
        %v5483 = vcombine.low %v5457, %v5458
        %v5484 = vcombine.low %v5459, %v5460
        %v5489 = vsel %vm1084, %v5469, 0
        %v5491 = vsel %vm1084, %v5470, 0
        %v5493 = vsel %vm1084, %v5471, 0
        %v5495 = vsel %vm1084, %v5472, 0
        %5497 = vmatprep.subr.mxu0 0.0
        %5498 = vmatpush1.msra.mxu0 %v5332
        %5499 = vmatprep.subr.mxu0 0.0
        %5500 = vmatpush1.msra.mxu0 %v5333
        %5501 = vmatprep.subr.mxu0 0.0
        %5502 = vmatpush1.msra.mxu0 0.0
        %5503 = vmatprep.subr.mxu0 0.0
        %5504 = vmatpush1.msra.mxu0 0.0
        %5505 = vmatprep.subr.mxu0 0.0
        %5506 = vmatpush1.msra.mxu0 0.0
        %5507 = vmatprep.subr.mxu0 0.0
        %5508 = vmatpush1.msra.mxu0 0.0
        %5509 = vmatprep.subr.mxu0 0.0
        %5510 = vmatpush1.msra.mxu0 0.0
        %5511 = vmatprep.subr.mxu0 0.0
        %5512 = vmatpush1.msra.mxu0 0.0
        %5513 = vmatprep.subr.mxu0 0.0
        %5514 = vmatpush1.msra.mxu0 0.0
        %5515 = vmatprep.subr.mxu0 0.0
        %5516 = vmatpush1.msra.mxu0 0.0
        %5517 = vmatprep.subr.mxu0 0.0
        %5518 = vmatpush1.msra.mxu0 0.0
        %5519 = vmatprep.subr.mxu0 0.0
        %5520 = vmatpush1.msra.mxu0 0.0
        %5521 = vmatprep.subr.mxu0 0.0
        %5522 = vmatpush1.msra.mxu0 0.0
        %5523 = vmatprep.subr.mxu0 0.0
        %5524 = vmatpush1.msra.mxu0 0.0
        %5525 = vmatprep.subr.mxu0 0.0
        %5526 = vmatpush1.msra.mxu0 0.0
        %5527 = vmatprep.subr.mxu0 0.0
        %5528 = vmatpush1.msra.mxu0 0.0
        %5529 = vmatprep.subr.mxu0 0.0
        %5530 = vmatpush1.msra.mxu0 0.0
        %5531 = vmatprep.subr.mxu0 0.0
        %5532 = vmatpush1.msra.mxu0 0.0
        %5533 = vmatprep.subr.mxu0 0.0
        %5534 = vmatpush1.msra.mxu0 0.0
        %5535 = vmatprep.subr.mxu0 0.0
        %5536 = vmatpush1.msra.mxu0 0.0
        %5537 = vmatprep.subr.mxu0 0.0
        %5538 = vmatpush1.msra.mxu0 0.0
        %5539 = vmatprep.subr.mxu0 0.0
        %5540 = vmatpush1.msra.mxu0 0.0
        %5541 = vmatprep.subr.mxu0 0.0
        %5542 = vmatpush1.msra.mxu0 0.0
        %5543 = vmatprep.subr.mxu0 0.0
        %5544 = vmatpush1.msra.mxu0 0.0
        %5545 = vmatprep.subr.mxu0 0.0
        %5546 = vmatpush1.msra.mxu0 0.0
        %5547 = vmatprep.subr.mxu0 0.0
        %5548 = vmatpush1.msra.mxu0 0.0
        %5549 = vmatprep.subr.mxu0 0.0
        %5550 = vmatpush1.msra.mxu0 0.0
        %5551 = vmatprep.subr.mxu0 0.0
        %5552 = vmatpush1.msra.mxu0 0.0
        %5553 = vmatprep.subr.mxu0 0.0
        %5554 = vmatpush1.msra.mxu0 0.0
        %5555 = vmatprep.subr.mxu0 0.0
        %5556 = vmatpush1.msra.mxu0 0.0
        %5557 = vmatprep.subr.mxu0 0.0
        %5558 = vmatpush1.msra.mxu0 0.0
        %5559 = vmatprep.subr.mxu0 0.0
        %5560 = vmatpush1.msra.mxu0 0.0
        %5561 = vmatprep.mubr.f32.mxu0 0.0
        %5562 = vmatmul.mubr.f32.gmra.mrb[0].mxu0 %v5489
        %v5563 = vpop.f32.mrb[0].mxu0
        %v5564 = vadd.f32 %v5481, %v5563
        %v5565 = vpop.f32.mrb[0].mxu0
        %5566 = vmatprep.mubr.f32.mxu0 0.0
        %5567 = vmatmul.mubr.f32.gmra.mrb[0].mxu0 %v5491
        %v5568 = vpop.f32.mrb[0].mxu0
        %v5569 = vadd.f32 %v5482, %v5568
        %v5570 = vpop.f32.mrb[0].mxu0
        %5571 = vmatprep.mubr.f32.mxu0 0.0
        %5572 = vmatmul.mubr.f32.gmra.mrb[0].mxu0 %v5493
        %v5573 = vpop.f32.mrb[0].mxu0
        %v5574 = vadd.f32 %v5483, %v5573
        %v5575 = vpop.f32.mrb[0].mxu0
        %5576 = vmatprep.mubr.f32.mxu0 0.0
        %5577 = vmatmul.mubr.f32.gmra.mrb[0].mxu0 %v5495
        %v5578 = vpop.f32.mrb[0].mxu0
        %v5579 = vadd.f32 %v5484, %v5578
        %v5580 = vpop.f32.mrb[0].mxu0
        %5581 = vdwg.mxu0
        %v5586 = vcombine.high %v5564, %v5564
        %v5587 = vcombine.high %v5569, %v5569
        %v5588 = vcombine.high %v5574, %v5574
        %v5589 = vcombine.high %v5579, %v5579
        %v5594 = vadd.f32 %v4640, %v5564
        %v5595 = vadd.f32 %v4664, %v5586
        %v5596 = vadd.f32 %v4647, %v5569
        %v5597 = vadd.f32 %v4665, %v5587
        %v5598 = vadd.f32 %v4656, %v5574
        %v5599 = vadd.f32 %v4666, %v5588
        %v5600 = vadd.f32 %v4663, %v5579
        %v5601 = vadd.f32 %v4667, %v5589
        %v5602 = vcombine.low %v5594, %v5596
        %v5604 = vunpack.c.l.s4 1983009808
        %v5605 = vunpack.c.0.s8 %v5604
        %v5606 = vlaneseq
        %v5607 = vshrl.u32 %v5606, 7
        %v5608 = vsub.s32 %v5605, %v5607
        %v5609 = vrot.slane %v5602, %v5608
        %v5610 = vcombine.low %v5595, %v5597
        %v5612 = vunpack.c.l.s4 1983009808
        %v5613 = vunpack.c.0.s8 %v5612
        %v5614 = vlaneseq
        %v5615 = vshrl.u32 %v5614, 7
        %v5616 = vsub.s32 %v5613, %v5615
        %v5617 = vrot.slane %v5610, %v5616
        %v5618 = vcombine.low %v5598, %v5600
        %v5620 = vunpack.c.l.s4 1983009808
        %v5621 = vunpack.c.0.s8 %v5620
        %v5622 = vlaneseq
        %v5623 = vshrl.u32 %v5622, 7
        %v5624 = vsub.s32 %v5621, %v5623
        %v5625 = vrot.slane %v5618, %v5624
        %v5626 = vcombine.low %v5599, %v5601
        %v5628 = vunpack.c.l.s4 1983009808
        %v5629 = vunpack.c.0.s8 %v5628
        %v5630 = vlaneseq
        %v5631 = vshrl.u32 %v5630, 7
        %v5632 = vsub.s32 %v5629, %v5631
        %v5633 = vrot.slane %v5626, %v5632
        %v5634 = vcombine.low %v5609, %v5617
        %v5635 = vcombine.high %v5609, %v5617
        %v5637 = vunpack.c.l.s4 1934713408
        %v5638 = vunpack.c.0.s8 %v5637
        %v5639 = vlaneseq
        %v5640 = vshrl.u32 %v5639, 7
        %v5641 = vsub.s32 %v5638, %v5640
        %v5642 = vrot.slane %v5634, %v5641
        %v5644 = vunpack.c.l.s4 1934713408
        %v5645 = vunpack.c.0.s8 %v5644
        %v5646 = vlaneseq
        %v5647 = vshrl.u32 %v5646, 7
        %v5648 = vsub.s32 %v5645, %v5647
        %v5649 = vrot.slane %v5635, %v5648
        %v5650 = vcombine.low %v5625, %v5633
        %v5651 = vcombine.high %v5625, %v5633
        %v5653 = vunpack.c.l.s4 1934713408
        %v5654 = vunpack.c.0.s8 %v5653
        %v5655 = vlaneseq
        %v5656 = vshrl.u32 %v5655, 7
        %v5657 = vsub.s32 %v5654, %v5656
        %v5658 = vrot.slane %v5650, %v5657
        %v5660 = vunpack.c.l.s4 1934713408
        %v5661 = vunpack.c.0.s8 %v5660
        %v5662 = vlaneseq
        %v5663 = vshrl.u32 %v5662, 7
        %v5664 = vsub.s32 %v5661, %v5663
        %v5665 = vrot.slane %v5651, %v5664
        %v5666 = vcombine.low %v5642, %v5658
        %v5667 = vcombine.high %v5642, %v5658
        %v5668 = vcombine.low %v5649, %v5665
        %v5669 = vcombine.high %v5649, %v5665
        %5671 = vrot.lane.b32.xlu0 %v5667, 8
        %v5672 = vpop.permute.xlu0 %5671
        %5675 = vrot.lane.b32.xlu0 %v5668, 16
        %v5676 = vpop.permute.xlu0 %5675
        %5679 = vrot.lane.b32.xlu0 %v5669, 24
        %v5680 = vpop.permute.xlu0 %5679
        %v5682 = vsel %vm1203, %v5666, %v5672
        %v5683 = vsel %vm1084, %v5682, %v5676
        %vm5684 = vcmask 195584
        %v5685 = vsel %vm5684, %v5683, %v5680
        %v5686 = vld [vmem:[%s11] sm:$0xff]
        %v5687 = vld [vmem:[%s11 + $0x8] sm:$0xff]
        %v5688 = vld [vmem:[%s11 + $0x10] sm:$0xff]
        %v5689 = vld [vmem:[%s11 + $0x18] sm:$0xff]
        %v5690 = vld [vmem:[%s12] sm:$0x1]
        %v5692 = vlaneseq
        %v5693 = vshrl.u32 %v5692, 7
        %v5694 = vsub.s32 0, %v5693
        %v5695 = vrot.slane %v5690, %v5694
        %v5698 = vsel %vm775, %v5685, 0
        %5700 = vmatprep.subr.mxu0 0.0
        %5701 = vmatpush1.msra.mxu0 %v5686
        %5702 = vmatprep.subr.mxu0 0.0
        %5703 = vmatpush1.msra.mxu0 %v5687
        %5704 = vmatprep.subr.mxu0 0.0
        %5705 = vmatpush1.msra.mxu0 %v5688
        %5706 = vmatprep.subr.mxu0 0.0
        %5707 = vmatpush1.msra.mxu0 %v5689
        %5708 = vmatprep.subr.mxu0 0.0
        %5709 = vmatpush1.msra.mxu0 0.0
        %5710 = vmatprep.subr.mxu0 0.0
        %5711 = vmatpush1.msra.mxu0 0.0
        %5712 = vmatprep.subr.mxu0 0.0
        %5713 = vmatpush1.msra.mxu0 0.0
        %5714 = vmatprep.subr.mxu0 0.0
        %5715 = vmatpush1.msra.mxu0 0.0
        %5716 = vmatprep.subr.mxu0 0.0
        %5717 = vmatpush1.msra.mxu0 0.0
        %5718 = vmatprep.subr.mxu0 0.0
        %5719 = vmatpush1.msra.mxu0 0.0
        %5720 = vmatprep.subr.mxu0 0.0
        %5721 = vmatpush1.msra.mxu0 0.0
        %5722 = vmatprep.subr.mxu0 0.0
        %5723 = vmatpush1.msra.mxu0 0.0
        %5724 = vmatprep.subr.mxu0 0.0
        %5725 = vmatpush1.msra.mxu0 0.0
        %5726 = vmatprep.subr.mxu0 0.0
        %5727 = vmatpush1.msra.mxu0 0.0
        %5728 = vmatprep.subr.mxu0 0.0
        %5729 = vmatpush1.msra.mxu0 0.0
        %5730 = vmatprep.subr.mxu0 0.0
        %5731 = vmatpush1.msra.mxu0 0.0
        %5732 = vmatprep.subr.mxu0 0.0
        %5733 = vmatpush1.msra.mxu0 0.0
        %5734 = vmatprep.subr.mxu0 0.0
        %5735 = vmatpush1.msra.mxu0 0.0
        %5736 = vmatprep.subr.mxu0 0.0
        %5737 = vmatpush1.msra.mxu0 0.0
        %5738 = vmatprep.subr.mxu0 0.0
        %5739 = vmatpush1.msra.mxu0 0.0
        %5740 = vmatprep.subr.mxu0 0.0
        %5741 = vmatpush1.msra.mxu0 0.0
        %5742 = vmatprep.subr.mxu0 0.0
        %5743 = vmatpush1.msra.mxu0 0.0
        %5744 = vmatprep.subr.mxu0 0.0
        %5745 = vmatpush1.msra.mxu0 0.0
        %5746 = vmatprep.subr.mxu0 0.0
        %5747 = vmatpush1.msra.mxu0 0.0
        %5748 = vmatprep.subr.mxu0 0.0
        %5749 = vmatpush1.msra.mxu0 0.0
        %5750 = vmatprep.subr.mxu0 0.0
        %5751 = vmatpush1.msra.mxu0 0.0
        %5752 = vmatprep.subr.mxu0 0.0
        %5753 = vmatpush1.msra.mxu0 0.0
        %5754 = vmatprep.subr.mxu0 0.0
        %5755 = vmatpush1.msra.mxu0 0.0
        %5756 = vmatprep.subr.mxu0 0.0
        %5757 = vmatpush1.msra.mxu0 0.0
        %5758 = vmatprep.subr.mxu0 0.0
        %5759 = vmatpush1.msra.mxu0 0.0
        %5760 = vmatprep.subr.mxu0 0.0
        %5761 = vmatpush1.msra.mxu0 0.0
        %5762 = vmatprep.subr.mxu0 0.0
        %5763 = vmatpush1.msra.mxu0 0.0
        %5764 = vmatprep.mubr.f32.mxu0 0.0
        %5765 = vmatmul.mubr.f32.gmra.mrb[0].mxu0 %v5698
        %v5766 = vpop.f32.mrb[0].mxu0
        %v5767 = vadd.f32 %v5695, %v5766
        %v5768 = vpop.f32.mrb[0].mxu0
        %5769 = vdwg.mxu0
        %v5770 = vmax.f32 %v5767, 0.0
        %v5771 = vadd.f32 %v752, %v5770
        %v5772 = vsel %vm775, %v5771, 0.0
        %5773 = vadd.xlane.f32.xlu0 %v5772
        %v5774 = vpop.xlane.xlu0 %5773
        %v5775 = vrcp.pop 32.0
        %v5776 = vmul.f32 %v5774, %v5775
        %v5777 = vsub.f32 %v5771, %v5776
        %v5778 = vmul.f32 %v5777, %v5777
        %v5779 = vsel %vm775, %v5778, 0.0
        %5780 = vadd.xlane.f32.xlu0 %v5779
        %v5781 = vpop.xlane.xlu0 %5780
        %v5782 = vmul.f32 %v5781, %v5775
        %v5783 = vadd.f32 %v5782, 1e-05
        %v5784 = vrsqrt.pop %v5783
        %v5785 = vmul.f32 %v5777, %v5784
        %v5786 = vld [vmem:[%s13] sm:$0x1]
        %v5788 = vlaneseq
        %v5789 = vshrl.u32 %v5788, 7
        %v5790 = vsub.s32 0, %v5789
        %v5791 = vrot.slane %v5786, %v5790
        %v5793 = vmul.f32 %v5785, %v5791
        %v5794 = vld [vmem:[%s14] sm:$0x1]
        %v5796 = vlaneseq
        %v5797 = vshrl.u32 %v5796, 7
        %v5798 = vsub.s32 0, %v5797
        %v5799 = vrot.slane %v5794, %v5798
        %v5801 = vadd.f32 %v5793, %v5799
        %5802 = vst.msk [vmem:[%s743] sm:$0xff] %vm775, %v5801
        %s5803 = sand.u32 %s411, 1
        %s5804 = scalar_lea.sflag [#allocation4], %s5803
        %s5805 = sand.u32 %s411, 1
        %s5806 = smul.addr %s5805, 8
        %s5807 = scalar_lea.vmem [#allocation16], %s5806
        %s5808 = sand.u32 %s439, 1
        %s5809 = scalar_lea.sflag [#allocation18], %s5808
        %s5810 = sand.u32 %s439, 1
        %s5811 = smul.addr %s5810, 32
        %s5812 = scalar_lea.vmem [#allocation17], %s5811
        // Predicated region
        $region113: #{tpu_custom_call.1} parent=79 // pred_check
          %p5813 = pneg %p421
        $region114: #{tpu_custom_call.1} parent=79 // pred_check_branch
          %5815 = sbr.rel (%p5813) target = $region116
        $region115: #{tpu_custom_call.1} parent=79 // pred_region
          %s5817 = ssub.s32 128, 128
          %5818 = vsyncadd %s5804, %s5817
          %s5819 = sadd.s32 %s50, %s49
          %s5820 = smul.addr %s5819, 128
          %s5821 = scalar_lea.hbm %s15, %s5820
          %s5823 = sshll.u32 %s5807, 4
          %s5824 = int_to_ptr.vmem [resolvable:$true] %s5823
          %5826 = dma.vmem_to_hbm [thread:$0]  %s5824, 128, %s5821, %s5804
        $region116: #{tpu_custom_call.1} parent=79 // pred_fallthru
          _
        // Predicated region
        $region117: #{tpu_custom_call.1} parent=79 // pred_check
          %p5827 = pneg %p449
        $region118: #{tpu_custom_call.1} parent=79 // pred_check_branch
          %5829 = sbr.rel (%p5827) target = $region120
        $region119: #{tpu_custom_call.1} parent=79 // pred_region
          %s5831 = ssub.s32 512, 512
          %5832 = vsyncadd %s5809, %s5831
          %s5833 = smul.addr %s49, 4
          %s5834 = sadd.s32 %s50, %s5833
          %s5835 = smul.addr %s5834, 128
          %s5836 = scalar_lea.hbm %s16, %s5835
          %s5837 = sshll.u32 %s5812, 4
          %s5838 = int_to_ptr.vmem [resolvable:$true] %s5837
          %5843 = dma.vmem_to_hbm [thread:$0]  %s5838, 512, %s5836, %s5809, 128, 128, 8
        $region120: #{tpu_custom_call.1} parent=79 // pred_fallthru
          _
      $region80: #{tpu_custom_call.1} parent=5 // pred_fallthru
        _
      %p5844 = scmp.le.s32.totalorder 2, %s40
      // Predicated region
      $region121: #{tpu_custom_call.1} parent=5 // pred_check
        %p5845 = pneg %p5844
      $region122: #{tpu_custom_call.1} parent=5 // pred_check_branch
        %5847 = sbr.rel (%p5845) target = $region124
      $region123: #{tpu_custom_call.1} parent=5 // pred_region
        %s5848 = ssub.s32 %s40, 2
        // Predicated region
        $region125: #{tpu_custom_call.1} parent=123 // pred_check
          %p5849 = pneg %p427
        $region126: #{tpu_custom_call.1} parent=123 // pred_check_branch
          %5851 = sbr.rel (%p5849) target = $region128
        $region127: #{tpu_custom_call.1} parent=123 // pred_region
          %s5852 = sand.u32 %s412, 1
          %s5853 = scalar_lea.sflag [#allocation4], %s5852
          %s5854 = sand.u32 %s412, 1
          %s5855 = smul.addr %s5854, 8
          %s5856 = scalar_lea.vmem [#allocation16], %s5855
          %5857 = dma.done %s5853, 128
        $region128: #{tpu_custom_call.1} parent=123 // pred_fallthru
          _
        // Predicated region
        $region129: #{tpu_custom_call.1} parent=123 // pred_check
          %p5858 = pneg %p455
        $region130: #{tpu_custom_call.1} parent=123 // pred_check_branch
          %5860 = sbr.rel (%p5858) target = $region132
        $region131: #{tpu_custom_call.1} parent=123 // pred_region
          %s5861 = sand.u32 %s440, 1
          %s5862 = scalar_lea.sflag [#allocation18], %s5861
          %s5863 = sand.u32 %s440, 1
          %s5864 = smul.addr %s5863, 32
          %s5865 = scalar_lea.vmem [#allocation17], %s5864
          %5866 = dma.done %s5862, 512
        $region132: #{tpu_custom_call.1} parent=123 // pred_fallthru
          _
      $region124: #{tpu_custom_call.1} parent=5 // pred_fallthru
        _
    $region6: #{tpu_custom_call.1} parent=1 // loop_footer
      %s44 = sadd.s32 1, %s40
    $region7: #{tpu_custom_call.1} parent=1 // loop_footer_branch
      %39 = sbr.rel target = $region3
    $region8: #{tpu_custom_call.1} parent=1 // loop_exit
      _
    %5867 = vsyncpa [#allocation3], 1
    %s5868 = scalar_lea.sflag [#allocation3], 1
    %5869 = vsyncpa %s5868, 1
    %5870 = vsyncpa [#allocation6], 1
    %s5871 = scalar_lea.sflag [#allocation6], 1
    %5872 = vsyncpa %s5871, 1
    %5873 = vsyncpa [#allocation9], 1
    %s5874 = scalar_lea.sflag [#allocation9], 1
    %5875 = vsyncpa %s5874, 1
    %5876 = vsyncpa [#allocation12], 1
    %5877 = vsyncpa [#allocation15], 1
    %5878 = vsyncpa [#allocation4], 1
    %s5879 = scalar_lea.sflag [#allocation4], 1
    %5880 = vsyncpa %s5879, 1
    %5881 = vsyncpa [#allocation18], 1
    %s5882 = scalar_lea.sflag [#allocation18], 1
    %5883 = vsyncpa %s5882, 1

</llo_original>
